<compile_context>
chip_gen: v5e
topology: v5e:2x2
jax: 0.10.0
libtpu: 0.0.40
codegen_flags: <defaults>
</compile_context>

<pallas_src>
import jax
import jax.numpy as jnp
from jax.experimental import pallas as pl
from jax.experimental.pallas import tpu as pltpu

EPS = 1e-5          # nn.InstanceNorm3d default eps
NEG_SLOPE = 0.2     # nn.LeakyReLU(0.2)


# ----------------------------- static helpers ------------------------------

def _tap_offsets(D, H, W):
    """Flattened-index offset of each of the 27 conv taps (kd, kh, kw outer->inner)."""
    return [kd * H * W + kh * W + kw
            for kd in (-1, 0, 1) for kh in (-1, 0, 1) for kw in (-1, 0, 1)]


def _tap_masks(D, H, W):
    """(27, D*H*W) float32 validity mask per tap — implements the zero padding."""
    d = jnp.arange(D).reshape(D, 1, 1)
    h = jnp.arange(H).reshape(1, H, 1)
    w = jnp.arange(W).reshape(1, 1, W)
    rows = []
    for kd in (-1, 0, 1):
        for kh in (-1, 0, 1):
            for kw in (-1, 0, 1):
                valid = ((d + kd >= 0) & (d + kd < D) &
                         (h + kh >= 0) & (h + kh < H) &
                         (w + kw >= 0) & (w + kw < W))
                rows.append(valid.reshape(-1))
    return jnp.stack(rows, axis=0).astype(jnp.float32)


# --------------------------------- kernel -----------------------------------

def _make_res_block_kernel(D, H, W, Cin, Cout):
    L = D * H * W
    offsets = _tap_offsets(D, H, W)

    def lane_roll(x, off):
        """y[:, l] = x[:, (l + off) % L]  — static lane rotation of a (C, L) value."""
        o = off % L
        if o == 0:
            return x
        return jnp.concatenate([x[:, o:], x[:, :o]], axis=1)

    def im2col(x, mask_ref, patch_ref, C):
        # patch[t*C + c, l] = mask_t[l] * x[c, l + off_t]   (every lane rewritten,
        # so the scratch never needs zero-initialization).
        for t, off in enumerate(offsets):
            patch_ref[t * C:(t + 1) * C, :] = (
                lane_roll(x, off) * mask_ref[t:t + 1, :])

    def inorm_lrelu(y):
        # InstanceNorm3d defaults (biased var, eps=1e-5, no affine) + LeakyReLU(0.2).
        # Per-channel statistics are lane reductions over the DHW axis.
        mean = jnp.mean(y, axis=1, keepdims=True)
        var = jnp.mean(jnp.square(y - mean), axis=1, keepdims=True)
        z = (y - mean) * jax.lax.rsqrt(var + EPS)
        return jnp.where(z >= 0, z, NEG_SLOPE * z)

    def kernel(x_ref, w1_ref, b1_ref, w2_ref, b2_ref, mask_ref,
               o_ref, p1_ref, p2_ref):
        # x_ref : (1, Cin, L)       one batch sample, channels on sublanes
        # w*_ref: (Cout, 27*C)      im2col weight matrices;  b*_ref: (Cout, 1)
        # mask  : (27, L) tap validity;  o_ref: (1, Cout, L)
        # p1/p2 : VMEM scratch (27*Cin, L) / (27*Cout, L) patch matrices
        x = x_ref[0]                                           # (Cin, L)

        # ---- conv1 as a single im2col GEMM + InstanceNorm + LeakyReLU ----
        im2col(x, mask_ref, p1_ref, Cin)
        y1 = jnp.dot(w1_ref[...], p1_ref[...],
                     preferred_element_type=jnp.float32) + b1_ref[...]
        y1 = inorm_lrelu(y1)                                   # (Cout, L)

        # ---- conv2 as a single im2col GEMM + InstanceNorm + LeakyReLU ----
        im2col(y1, mask_ref, p2_ref, Cout)
        y2 = jnp.dot(w2_ref[...], p2_ref[...],
                     preferred_element_type=jnp.float32) + b2_ref[...]
        y2 = inorm_lrelu(y2)                                   # (Cout, L)

        o_ref[0] = y2.astype(o_ref.dtype)                      # lane-dense store

    return kernel


# ------------------------------ pallas wrapper ------------------------------

@jax.jit
def res_block_instance_forward(x1, x2, w1, b1, w2, b2):
    """x1: (N, Cin, D, H, W), x2: (N, C2, D, H, W) — PyTorch NCDHW convention.
    w1: (Cout, Cin, 3, 3, 3), b1: (Cout,), w2: (Cout, Cout, 3, 3, 3), b2: (Cout,).
    Returns (N, Cout + C2, D, H, W)."""
    N, Cin, D, H, W = x1.shape
    Cout = w1.shape[0]
    L = D * H * W

    # NCDHW -> (N, C, D*H*W): pure reshape (no transpose, no pad).
    x1r = x1.reshape(N, Cin, L).astype(jnp.float32)

    # (O, I, kd, kh, kw) -> (O, 27*I) im2col weight matrix (tap-major, channel-minor).
    w1g = jnp.transpose(w1, (0, 2, 3, 4, 1)).reshape(Cout, 27 * Cin).astype(jnp.float32)
    w2g = jnp.transpose(w2, (0, 2, 3, 4, 1)).reshape(Cout, 27 * Cout).astype(jnp.float32)
    b1r = b1.reshape(Cout, 1).astype(jnp.float32)
    b2r = b2.reshape(Cout, 1).astype(jnp.float32)
    masks = _tap_masks(D, H, W)                                  # (27, L)

    kernel = _make_res_block_kernel(D, H, W, Cin, Cout)

    y = pl.pallas_call(
        kernel,
        out_shape=jax.ShapeDtypeStruct((N, Cout, L), jnp.float32),
        grid_spec=pltpu.PrefetchScalarGridSpec(
            num_scalar_prefetch=0,
            grid=(N,),
            in_specs=[
                pl.BlockSpec((1, Cin, L), lambda n: (n, 0, 0)),
                pl.BlockSpec((Cout, 27 * Cin), lambda n: (0, 0)),
                pl.BlockSpec((Cout, 1), lambda n: (0, 0)),
                pl.BlockSpec((Cout, 27 * Cout), lambda n: (0, 0)),
                pl.BlockSpec((Cout, 1), lambda n: (0, 0)),
                pl.BlockSpec((27, L), lambda n: (0, 0)),
            ],
            out_specs=pl.BlockSpec((1, Cout, L), lambda n: (n, 0, 0)),
            scratch_shapes=[
                pltpu.VMEM((27 * Cin, L), jnp.float32),
                pltpu.VMEM((27 * Cout, L), jnp.float32),
            ],
        ),
        # Samples are independent -> let v7x shard the batch across its 2 TCs.
        compiler_params=pltpu.CompilerParams(
            dimension_semantics=("parallel",)),
    )(x1r, w1g, b1r, w2g, b2r, masks)

    # (N, Cout, DHW) -> NCDHW is a pure reshape; then channel concat with x2.
    y5 = y.reshape(N, Cout, D, H, W)
    return jnp.concatenate([y5, x2.astype(jnp.float32)], axis=1)


# ------------------------------ pure-JAX ref --------------------------------

def _ref_forward(x1, x2, w1, b1, w2, b2):
    dn = jax.lax.conv_dimension_numbers(x1.shape, w1.shape,
                                        ('NCDHW', 'OIDHW', 'NCDHW'))

    def conv(x, w, b):
        y = jax.lax.conv_general_dilated(x, w, (1, 1, 1),
                                         [(1, 1), (1, 1), (1, 1)],
                                         dimension_numbers=dn)
        return y + b.reshape(1, -1, 1, 1, 1)

    def inorm_lrelu(x):
        mean = jnp.mean(x, axis=(2, 3, 4), keepdims=True)
        var = jnp.mean(jnp.square(x - mean), axis=(2, 3, 4), keepdims=True)
        y = (x - mean) * jax.lax.rsqrt(var + EPS)
        return jnp.where(y >= 0, y, NEG_SLOPE * y)

    y = inorm_lrelu(conv(x1, w1, b1))
    y = inorm_lrelu(conv(y, w2, b2))
    return jnp.concatenate([y, x2], axis=1)


# ----------------------------------- main -----------------------------------

if __name__ == "__main__":
    key = jax.random.PRNGKey(0)
    k1, k2, k3, k4, k5, k6 = jax.random.split(key, 6)

    N, in_ch, out_ch = 2, 4, 4
    D = H = W = 8
    x2_ch = 4

    x1 = jax.random.normal(k1, (N, in_ch, D, H, W), jnp.float32)
    x2 = jax.random.normal(k2, (N, x2_ch, D, H, W), jnp.float32)

    # deterministic synthetic parameters (shapes from nn.Conv3d(in, out, 3, padding=1))
    w1 = 0.1 * jax.random.normal(k3, (out_ch, in_ch, 3, 3, 3), jnp.float32)
    b1 = 0.1 * jax.random.normal(k4, (out_ch,), jnp.float32)
    w2 = 0.1 * jax.random.normal(k5, (out_ch, out_ch, 3, 3, 3), jnp.float32)
    b2 = 0.1 * jax.random.normal(k6, (out_ch,), jnp.float32)

    out = res_block_instance_forward(x1, x2, w1, b1, w2, b2)
    out = jax.block_until_ready(out)

    ref = jax.block_until_ready(_ref_forward(x1, x2, w1, b1, w2, b2))
    assert out.shape == (N, out_ch + x2_ch, D, H, W), out.shape
    if not jnp.allclose(out, ref, atol=2e-4, rtol=2e-4):
        raise AssertionError("Pallas output does not match JAX reference")

    print("KERNEL_OK")
</pallas_src>

<mosaic_0001>
module attributes {stable_mosaic.version = 11 : i64} {
  func.func @kernel(%arg0: i32, %arg1: memref<1x4x512xf32, #tpu.memory_space<vmem>>, %arg2: memref<4x108xf32, #tpu.memory_space<vmem>>, %arg3: memref<4x1xf32, #tpu.memory_space<vmem>>, %arg4: memref<4x108xf32, #tpu.memory_space<vmem>>, %arg5: memref<4x1xf32, #tpu.memory_space<vmem>>, %arg6: memref<27x512xf32, #tpu.memory_space<vmem>>, %arg7: memref<1x4x512xf32, #tpu.memory_space<vmem>>, %arg8: memref<108x512xf32, #tpu.memory_space<vmem>>, %arg9: memref<108x512xf32, #tpu.memory_space<vmem>>) attributes {dimension_semantics = [#tpu.dimension_semantics<parallel>], iteration_bounds = array<i64: 2>, scalar_prefetch = 0 : i64, scratch_operands = 2 : i64, tpu.core_type = #tpu.core_type<tc>, window_params = [{transform_indices = @transform_0, window_bounds = array<i64: 1, 4, 512>}, {pipeline_mode = #tpu.pipeline_mode<synchronous>, transform_indices = @transform_1, window_bounds = array<i64: 4, 108>}, {pipeline_mode = #tpu.pipeline_mode<synchronous>, transform_indices = @transform_2, window_bounds = array<i64: 4, 1>}, {pipeline_mode = #tpu.pipeline_mode<synchronous>, transform_indices = @transform_3, window_bounds = array<i64: 4, 108>}, {pipeline_mode = #tpu.pipeline_mode<synchronous>, transform_indices = @transform_4, window_bounds = array<i64: 4, 1>}, {pipeline_mode = #tpu.pipeline_mode<synchronous>, transform_indices = @transform_5, window_bounds = array<i64: 27, 512>}, {transform_indices = @transform_6, window_bounds = array<i64: 1, 4, 512>}]} {
    %c0 = arith.constant 0 : index
    %c0_0 = arith.constant 0 : index
    %c0_1 = arith.constant 0 : index
    %0 = vector.load %arg1[%c0, %c0_0, %c0_1] : memref<1x4x512xf32, #tpu.memory_space<vmem>>, vector<1x4x512xf32>
    %1 = vector.shape_cast %0 : vector<1x4x512xf32> to vector<4x512xf32>
    %2 = vector.extract_strided_slice %1 {offsets = [0, 439], sizes = [4, 73], strides = [1, 1]} : vector<4x512xf32> to vector<4x73xf32>
    %3 = vector.extract_strided_slice %1 {offsets = [0, 0], sizes = [4, 439], strides = [1, 1]} : vector<4x512xf32> to vector<4x439xf32>
    %4 = tpu.concatenate %2, %3 in 1 : vector<4x73xf32>, vector<4x439xf32> -> vector<4x512xf32>
    %c0_2 = arith.constant 0 : index
    %c0_3 = arith.constant 0 : index
    %5 = vector.load %arg6[%c0_2, %c0_3] : memref<27x512xf32, #tpu.memory_space<vmem>>, vector<1x512xf32>
    %6 = vector.broadcast %5 : vector<1x512xf32> to vector<4x512xf32>
    %7 = arith.mulf %4, %6 : vector<4x512xf32>
    %c0_4 = arith.constant 0 : index
    %c0_5 = arith.constant 0 : index
    %8 = vector.load %arg8[%c0_4, %c0_5] : memref<108x512xf32, #tpu.memory_space<vmem>>, vector<4x512xf32>
    tpu.vector_store %arg8[%c0_4, %c0_5], %7 {strides = array<i32>} : memref<108x512xf32, #tpu.memory_space<vmem>>, vector<4x512xf32>,
    %9 = vector.extract_strided_slice %1 {offsets = [0, 440], sizes = [4, 72], strides = [1, 1]} : vector<4x512xf32> to vector<4x72xf32>
    %10 = vector.extract_strided_slice %1 {offsets = [0, 0], sizes = [4, 440], strides = [1, 1]} : vector<4x512xf32> to vector<4x440xf32>
    %11 = tpu.concatenate %9, %10 in 1 : vector<4x72xf32>, vector<4x440xf32> -> vector<4x512xf32>
    %c1 = arith.constant 1 : index
    %c0_6 = arith.constant 0 : index
    %12 = vector.load %arg6[%c1, %c0_6] : memref<27x512xf32, #tpu.memory_space<vmem>>, vector<1x512xf32>
    %13 = vector.broadcast %12 : vector<1x512xf32> to vector<4x512xf32>
    %14 = arith.mulf %11, %13 : vector<4x512xf32>
    %c4 = arith.constant 4 : index
    %c0_7 = arith.constant 0 : index
    %15 = vector.load %arg8[%c4, %c0_7] : memref<108x512xf32, #tpu.memory_space<vmem>>, vector<4x512xf32>
    tpu.vector_store %arg8[%c4, %c0_7], %14 {strides = array<i32>} : memref<108x512xf32, #tpu.memory_space<vmem>>, vector<4x512xf32>,
    %16 = vector.extract_strided_slice %1 {offsets = [0, 441], sizes = [4, 71], strides = [1, 1]} : vector<4x512xf32> to vector<4x71xf32>
    %17 = vector.extract_strided_slice %1 {offsets = [0, 0], sizes = [4, 441], strides = [1, 1]} : vector<4x512xf32> to vector<4x441xf32>
    %18 = tpu.concatenate %16, %17 in 1 : vector<4x71xf32>, vector<4x441xf32> -> vector<4x512xf32>
    %c2 = arith.constant 2 : index
    %c0_8 = arith.constant 0 : index
    %19 = vector.load %arg6[%c2, %c0_8] : memref<27x512xf32, #tpu.memory_space<vmem>>, vector<1x512xf32>
    %20 = vector.broadcast %19 : vector<1x512xf32> to vector<4x512xf32>
    %21 = arith.mulf %18, %20 : vector<4x512xf32>
    %c8 = arith.constant 8 : index
    %c0_9 = arith.constant 0 : index
    %22 = vector.load %arg8[%c8, %c0_9] : memref<108x512xf32, #tpu.memory_space<vmem>>, vector<4x512xf32>
    tpu.vector_store %arg8[%c8, %c0_9], %21 {strides = array<i32>} : memref<108x512xf32, #tpu.memory_space<vmem>>, vector<4x512xf32>,
    %23 = vector.extract_strided_slice %1 {offsets = [0, 447], sizes = [4, 65], strides = [1, 1]} : vector<4x512xf32> to vector<4x65xf32>
    %24 = vector.extract_strided_slice %1 {offsets = [0, 0], sizes = [4, 447], strides = [1, 1]} : vector<4x512xf32> to vector<4x447xf32>
    %25 = tpu.concatenate %23, %24 in 1 : vector<4x65xf32>, vector<4x447xf32> -> vector<4x512xf32>
    %c3 = arith.constant 3 : index
    %c0_10 = arith.constant 0 : index
    %26 = vector.load %arg6[%c3, %c0_10] : memref<27x512xf32, #tpu.memory_space<vmem>>, vector<1x512xf32>
    %27 = vector.broadcast %26 : vector<1x512xf32> to vector<4x512xf32>
    %28 = arith.mulf %25, %27 : vector<4x512xf32>
    %c12 = arith.constant 12 : index
    %c0_11 = arith.constant 0 : index
    %29 = vector.load %arg8[%c12, %c0_11] : memref<108x512xf32, #tpu.memory_space<vmem>>, vector<4x512xf32>
    tpu.vector_store %arg8[%c12, %c0_11], %28 {strides = array<i32>} : memref<108x512xf32, #tpu.memory_space<vmem>>, vector<4x512xf32>,
    %30 = vector.extract_strided_slice %1 {offsets = [0, 448], sizes = [4, 64], strides = [1, 1]} : vector<4x512xf32> to vector<4x64xf32>
    %31 = vector.extract_strided_slice %1 {offsets = [0, 0], sizes = [4, 448], strides = [1, 1]} : vector<4x512xf32> to vector<4x448xf32>
    %32 = tpu.concatenate %30, %31 in 1 : vector<4x64xf32>, vector<4x448xf32> -> vector<4x512xf32>
    %c4_12 = arith.constant 4 : index
    %c0_13 = arith.constant 0 : index
    %33 = vector.load %arg6[%c4_12, %c0_13] : memref<27x512xf32, #tpu.memory_space<vmem>>, vector<1x512xf32>
    %34 = vector.broadcast %33 : vector<1x512xf32> to vector<4x512xf32>
    %35 = arith.mulf %32, %34 : vector<4x512xf32>
    %c16 = arith.constant 16 : index
    %c0_14 = arith.constant 0 : index
    %36 = vector.load %arg8[%c16, %c0_14] : memref<108x512xf32, #tpu.memory_space<vmem>>, vector<4x512xf32>
    tpu.vector_store %arg8[%c16, %c0_14], %35 {strides = array<i32>} : memref<108x512xf32, #tpu.memory_space<vmem>>, vector<4x512xf32>,
    %37 = vector.extract_strided_slice %1 {offsets = [0, 449], sizes = [4, 63], strides = [1, 1]} : vector<4x512xf32> to vector<4x63xf32>
    %38 = vector.extract_strided_slice %1 {offsets = [0, 0], sizes = [4, 449], strides = [1, 1]} : vector<4x512xf32> to vector<4x449xf32>
    %39 = tpu.concatenate %37, %38 in 1 : vector<4x63xf32>, vector<4x449xf32> -> vector<4x512xf32>
    %c5 = arith.constant 5 : index
    %c0_15 = arith.constant 0 : index
    %40 = vector.load %arg6[%c5, %c0_15] : memref<27x512xf32, #tpu.memory_space<vmem>>, vector<1x512xf32>
    %41 = vector.broadcast %40 : vector<1x512xf32> to vector<4x512xf32>
    %42 = arith.mulf %39, %41 : vector<4x512xf32>
    %c20 = arith.constant 20 : index
    %c0_16 = arith.constant 0 : index
    %43 = vector.load %arg8[%c20, %c0_16] : memref<108x512xf32, #tpu.memory_space<vmem>>, vector<4x512xf32>
    tpu.vector_store %arg8[%c20, %c0_16], %42 {strides = array<i32>} : memref<108x512xf32, #tpu.memory_space<vmem>>, vector<4x512xf32>,
    %44 = vector.extract_strided_slice %1 {offsets = [0, 455], sizes = [4, 57], strides = [1, 1]} : vector<4x512xf32> to vector<4x57xf32>
    %45 = vector.extract_strided_slice %1 {offsets = [0, 0], sizes = [4, 455], strides = [1, 1]} : vector<4x512xf32> to vector<4x455xf32>
    %46 = tpu.concatenate %44, %45 in 1 : vector<4x57xf32>, vector<4x455xf32> -> vector<4x512xf32>
    %c6 = arith.constant 6 : index
    %c0_17 = arith.constant 0 : index
    %47 = vector.load %arg6[%c6, %c0_17] : memref<27x512xf32, #tpu.memory_space<vmem>>, vector<1x512xf32>
    %48 = vector.broadcast %47 : vector<1x512xf32> to vector<4x512xf32>
    %49 = arith.mulf %46, %48 : vector<4x512xf32>
    %c24 = arith.constant 24 : index
    %c0_18 = arith.constant 0 : index
    %50 = vector.load %arg8[%c24, %c0_18] : memref<108x512xf32, #tpu.memory_space<vmem>>, vector<4x512xf32>
    tpu.vector_store %arg8[%c24, %c0_18], %49 {strides = array<i32>} : memref<108x512xf32, #tpu.memory_space<vmem>>, vector<4x512xf32>,
    %51 = vector.extract_strided_slice %1 {offsets = [0, 456], sizes = [4, 56], strides = [1, 1]} : vector<4x512xf32> to vector<4x56xf32>
    %52 = vector.extract_strided_slice %1 {offsets = [0, 0], sizes = [4, 456], strides = [1, 1]} : vector<4x512xf32> to vector<4x456xf32>
    %53 = tpu.concatenate %51, %52 in 1 : vector<4x56xf32>, vector<4x456xf32> -> vector<4x512xf32>
    %c7 = arith.constant 7 : index
    %c0_19 = arith.constant 0 : index
    %54 = vector.load %arg6[%c7, %c0_19] : memref<27x512xf32, #tpu.memory_space<vmem>>, vector<1x512xf32>
    %55 = vector.broadcast %54 : vector<1x512xf32> to vector<4x512xf32>
    %56 = arith.mulf %53, %55 : vector<4x512xf32>
    %c28 = arith.constant 28 : index
    %c0_20 = arith.constant 0 : index
    %57 = vector.load %arg8[%c28, %c0_20] : memref<108x512xf32, #tpu.memory_space<vmem>>, vector<4x512xf32>
    tpu.vector_store %arg8[%c28, %c0_20], %56 {strides = array<i32>} : memref<108x512xf32, #tpu.memory_space<vmem>>, vector<4x512xf32>,
    %58 = vector.extract_strided_slice %1 {offsets = [0, 457], sizes = [4, 55], strides = [1, 1]} : vector<4x512xf32> to vector<4x55xf32>
    %59 = vector.extract_strided_slice %1 {offsets = [0, 0], sizes = [4, 457], strides = [1, 1]} : vector<4x512xf32> to vector<4x457xf32>
    %60 = tpu.concatenate %58, %59 in 1 : vector<4x55xf32>, vector<4x457xf32> -> vector<4x512xf32>
    %c8_21 = arith.constant 8 : index
    %c0_22 = arith.constant 0 : index
    %61 = vector.load %arg6[%c8_21, %c0_22] : memref<27x512xf32, #tpu.memory_space<vmem>>, vector<1x512xf32>
    %62 = vector.broadcast %61 : vector<1x512xf32> to vector<4x512xf32>
    %63 = arith.mulf %60, %62 : vector<4x512xf32>
    %c32 = arith.constant 32 : index
    %c0_23 = arith.constant 0 : index
    %64 = vector.load %arg8[%c32, %c0_23] : memref<108x512xf32, #tpu.memory_space<vmem>>, vector<4x512xf32>
    tpu.vector_store %arg8[%c32, %c0_23], %63 {strides = array<i32>} : memref<108x512xf32, #tpu.memory_space<vmem>>, vector<4x512xf32>,
    %65 = vector.extract_strided_slice %1 {offsets = [0, 503], sizes = [4, 9], strides = [1, 1]} : vector<4x512xf32> to vector<4x9xf32>
    %66 = vector.extract_strided_slice %1 {offsets = [0, 0], sizes = [4, 503], strides = [1, 1]} : vector<4x512xf32> to vector<4x503xf32>
    %67 = tpu.concatenate %65, %66 in 1 : vector<4x9xf32>, vector<4x503xf32> -> vector<4x512xf32>
    %c9 = arith.constant 9 : index
    %c0_24 = arith.constant 0 : index
    %68 = vector.load %arg6[%c9, %c0_24] : memref<27x512xf32, #tpu.memory_space<vmem>>, vector<1x512xf32>
    %69 = vector.broadcast %68 : vector<1x512xf32> to vector<4x512xf32>
    %70 = arith.mulf %67, %69 : vector<4x512xf32>
    %c36 = arith.constant 36 : index
    %c0_25 = arith.constant 0 : index
    %71 = vector.load %arg8[%c36, %c0_25] : memref<108x512xf32, #tpu.memory_space<vmem>>, vector<4x512xf32>
    tpu.vector_store %arg8[%c36, %c0_25], %70 {strides = array<i32>} : memref<108x512xf32, #tpu.memory_space<vmem>>, vector<4x512xf32>,
    %72 = vector.extract_strided_slice %1 {offsets = [0, 504], sizes = [4, 8], strides = [1, 1]} : vector<4x512xf32> to vector<4x8xf32>
    %73 = vector.extract_strided_slice %1 {offsets = [0, 0], sizes = [4, 504], strides = [1, 1]} : vector<4x512xf32> to vector<4x504xf32>
    %74 = tpu.concatenate %72, %73 in 1 : vector<4x8xf32>, vector<4x504xf32> -> vector<4x512xf32>
    %c10 = arith.constant 10 : index
    %c0_26 = arith.constant 0 : index
    %75 = vector.load %arg6[%c10, %c0_26] : memref<27x512xf32, #tpu.memory_space<vmem>>, vector<1x512xf32>
    %76 = vector.broadcast %75 : vector<1x512xf32> to vector<4x512xf32>
    %77 = arith.mulf %74, %76 : vector<4x512xf32>
    %c40 = arith.constant 40 : index
    %c0_27 = arith.constant 0 : index
    %78 = vector.load %arg8[%c40, %c0_27] : memref<108x512xf32, #tpu.memory_space<vmem>>, vector<4x512xf32>
    tpu.vector_store %arg8[%c40, %c0_27], %77 {strides = array<i32>} : memref<108x512xf32, #tpu.memory_space<vmem>>, vector<4x512xf32>,
    %79 = vector.extract_strided_slice %1 {offsets = [0, 505], sizes = [4, 7], strides = [1, 1]} : vector<4x512xf32> to vector<4x7xf32>
    %80 = vector.extract_strided_slice %1 {offsets = [0, 0], sizes = [4, 505], strides = [1, 1]} : vector<4x512xf32> to vector<4x505xf32>
    %81 = tpu.concatenate %79, %80 in 1 : vector<4x7xf32>, vector<4x505xf32> -> vector<4x512xf32>
    %c11 = arith.constant 11 : index
    %c0_28 = arith.constant 0 : index
    %82 = vector.load %arg6[%c11, %c0_28] : memref<27x512xf32, #tpu.memory_space<vmem>>, vector<1x512xf32>
    %83 = vector.broadcast %82 : vector<1x512xf32> to vector<4x512xf32>
    %84 = arith.mulf %81, %83 : vector<4x512xf32>
    %c44 = arith.constant 44 : index
    %c0_29 = arith.constant 0 : index
    %85 = vector.load %arg8[%c44, %c0_29] : memref<108x512xf32, #tpu.memory_space<vmem>>, vector<4x512xf32>
    tpu.vector_store %arg8[%c44, %c0_29], %84 {strides = array<i32>} : memref<108x512xf32, #tpu.memory_space<vmem>>, vector<4x512xf32>,
    %86 = vector.extract_strided_slice %1 {offsets = [0, 511], sizes = [4, 1], strides = [1, 1]} : vector<4x512xf32> to vector<4x1xf32>
    %87 = vector.extract_strided_slice %1 {offsets = [0, 0], sizes = [4, 511], strides = [1, 1]} : vector<4x512xf32> to vector<4x511xf32>
    %88 = tpu.concatenate %86, %87 in 1 : vector<4x1xf32>, vector<4x511xf32> -> vector<4x512xf32>
    %c12_30 = arith.constant 12 : index
    %c0_31 = arith.constant 0 : index
    %89 = vector.load %arg6[%c12_30, %c0_31] : memref<27x512xf32, #tpu.memory_space<vmem>>, vector<1x512xf32>
    %90 = vector.broadcast %89 : vector<1x512xf32> to vector<4x512xf32>
    %91 = arith.mulf %88, %90 : vector<4x512xf32>
    %c48 = arith.constant 48 : index
    %c0_32 = arith.constant 0 : index
    %92 = vector.load %arg8[%c48, %c0_32] : memref<108x512xf32, #tpu.memory_space<vmem>>, vector<4x512xf32>
    tpu.vector_store %arg8[%c48, %c0_32], %91 {strides = array<i32>} : memref<108x512xf32, #tpu.memory_space<vmem>>, vector<4x512xf32>,
    %c13 = arith.constant 13 : index
    %c0_33 = arith.constant 0 : index
    %93 = vector.load %arg6[%c13, %c0_33] : memref<27x512xf32, #tpu.memory_space<vmem>>, vector<1x512xf32>
    %94 = vector.broadcast %93 : vector<1x512xf32> to vector<4x512xf32>
    %95 = arith.mulf %1, %94 : vector<4x512xf32>
    %c52 = arith.constant 52 : index
    %c0_34 = arith.constant 0 : index
    %96 = vector.load %arg8[%c52, %c0_34] : memref<108x512xf32, #tpu.memory_space<vmem>>, vector<4x512xf32>
    tpu.vector_store %arg8[%c52, %c0_34], %95 {strides = array<i32>} : memref<108x512xf32, #tpu.memory_space<vmem>>, vector<4x512xf32>,
    %97 = vector.extract_strided_slice %1 {offsets = [0, 1], sizes = [4, 511], strides = [1, 1]} : vector<4x512xf32> to vector<4x511xf32>
    %98 = vector.extract_strided_slice %1 {offsets = [0, 0], sizes = [4, 1], strides = [1, 1]} : vector<4x512xf32> to vector<4x1xf32>
    %99 = tpu.concatenate %97, %98 in 1 : vector<4x511xf32>, vector<4x1xf32> -> vector<4x512xf32>
    %c14 = arith.constant 14 : index
    %c0_35 = arith.constant 0 : index
    %100 = vector.load %arg6[%c14, %c0_35] : memref<27x512xf32, #tpu.memory_space<vmem>>, vector<1x512xf32>
    %101 = vector.broadcast %100 : vector<1x512xf32> to vector<4x512xf32>
    %102 = arith.mulf %99, %101 : vector<4x512xf32>
    %c56 = arith.constant 56 : index
    %c0_36 = arith.constant 0 : index
    %103 = vector.load %arg8[%c56, %c0_36] : memref<108x512xf32, #tpu.memory_space<vmem>>, vector<4x512xf32>
    tpu.vector_store %arg8[%c56, %c0_36], %102 {strides = array<i32>} : memref<108x512xf32, #tpu.memory_space<vmem>>, vector<4x512xf32>,
    %104 = vector.extract_strided_slice %1 {offsets = [0, 7], sizes = [4, 505], strides = [1, 1]} : vector<4x512xf32> to vector<4x505xf32>
    %105 = vector.extract_strided_slice %1 {offsets = [0, 0], sizes = [4, 7], strides = [1, 1]} : vector<4x512xf32> to vector<4x7xf32>
    %106 = tpu.concatenate %104, %105 in 1 : vector<4x505xf32>, vector<4x7xf32> -> vector<4x512xf32>
    %c15 = arith.constant 15 : index
    %c0_37 = arith.constant 0 : index
    %107 = vector.load %arg6[%c15, %c0_37] : memref<27x512xf32, #tpu.memory_space<vmem>>, vector<1x512xf32>
    %108 = vector.broadcast %107 : vector<1x512xf32> to vector<4x512xf32>
    %109 = arith.mulf %106, %108 : vector<4x512xf32>
    %c60 = arith.constant 60 : index
    %c0_38 = arith.constant 0 : index
    %110 = vector.load %arg8[%c60, %c0_38] : memref<108x512xf32, #tpu.memory_space<vmem>>, vector<4x512xf32>
    tpu.vector_store %arg8[%c60, %c0_38], %109 {strides = array<i32>} : memref<108x512xf32, #tpu.memory_space<vmem>>, vector<4x512xf32>,
    %111 = vector.extract_strided_slice %1 {offsets = [0, 8], sizes = [4, 504], strides = [1, 1]} : vector<4x512xf32> to vector<4x504xf32>
    %112 = vector.extract_strided_slice %1 {offsets = [0, 0], sizes = [4, 8], strides = [1, 1]} : vector<4x512xf32> to vector<4x8xf32>
    %113 = tpu.concatenate %111, %112 in 1 : vector<4x504xf32>, vector<4x8xf32> -> vector<4x512xf32>
    %c16_39 = arith.constant 16 : index
    %c0_40 = arith.constant 0 : index
    %114 = vector.load %arg6[%c16_39, %c0_40] : memref<27x512xf32, #tpu.memory_space<vmem>>, vector<1x512xf32>
    %115 = vector.broadcast %114 : vector<1x512xf32> to vector<4x512xf32>
    %116 = arith.mulf %113, %115 : vector<4x512xf32>
    %c64 = arith.constant 64 : index
    %c0_41 = arith.constant 0 : index
    %117 = vector.load %arg8[%c64, %c0_41] : memref<108x512xf32, #tpu.memory_space<vmem>>, vector<4x512xf32>
    tpu.vector_store %arg8[%c64, %c0_41], %116 {strides = array<i32>} : memref<108x512xf32, #tpu.memory_space<vmem>>, vector<4x512xf32>,
    %118 = vector.extract_strided_slice %1 {offsets = [0, 9], sizes = [4, 503], strides = [1, 1]} : vector<4x512xf32> to vector<4x503xf32>
    %119 = vector.extract_strided_slice %1 {offsets = [0, 0], sizes = [4, 9], strides = [1, 1]} : vector<4x512xf32> to vector<4x9xf32>
    %120 = tpu.concatenate %118, %119 in 1 : vector<4x503xf32>, vector<4x9xf32> -> vector<4x512xf32>
    %c17 = arith.constant 17 : index
    %c0_42 = arith.constant 0 : index
    %121 = vector.load %arg6[%c17, %c0_42] : memref<27x512xf32, #tpu.memory_space<vmem>>, vector<1x512xf32>
    %122 = vector.broadcast %121 : vector<1x512xf32> to vector<4x512xf32>
    %123 = arith.mulf %120, %122 : vector<4x512xf32>
    %c68 = arith.constant 68 : index
    %c0_43 = arith.constant 0 : index
    %124 = vector.load %arg8[%c68, %c0_43] : memref<108x512xf32, #tpu.memory_space<vmem>>, vector<4x512xf32>
    tpu.vector_store %arg8[%c68, %c0_43], %123 {strides = array<i32>} : memref<108x512xf32, #tpu.memory_space<vmem>>, vector<4x512xf32>,
    %125 = vector.extract_strided_slice %1 {offsets = [0, 55], sizes = [4, 457], strides = [1, 1]} : vector<4x512xf32> to vector<4x457xf32>
    %126 = vector.extract_strided_slice %1 {offsets = [0, 0], sizes = [4, 55], strides = [1, 1]} : vector<4x512xf32> to vector<4x55xf32>
    %127 = tpu.concatenate %125, %126 in 1 : vector<4x457xf32>, vector<4x55xf32> -> vector<4x512xf32>
    %c18 = arith.constant 18 : index
    %c0_44 = arith.constant 0 : index
    %128 = vector.load %arg6[%c18, %c0_44] : memref<27x512xf32, #tpu.memory_space<vmem>>, vector<1x512xf32>
    %129 = vector.broadcast %128 : vector<1x512xf32> to vector<4x512xf32>
    %130 = arith.mulf %127, %129 : vector<4x512xf32>
    %c72 = arith.constant 72 : index
    %c0_45 = arith.constant 0 : index
    %131 = vector.load %arg8[%c72, %c0_45] : memref<108x512xf32, #tpu.memory_space<vmem>>, vector<4x512xf32>
    tpu.vector_store %arg8[%c72, %c0_45], %130 {strides = array<i32>} : memref<108x512xf32, #tpu.memory_space<vmem>>, vector<4x512xf32>,
    %132 = vector.extract_strided_slice %1 {offsets = [0, 56], sizes = [4, 456], strides = [1, 1]} : vector<4x512xf32> to vector<4x456xf32>
    %133 = vector.extract_strided_slice %1 {offsets = [0, 0], sizes = [4, 56], strides = [1, 1]} : vector<4x512xf32> to vector<4x56xf32>
    %134 = tpu.concatenate %132, %133 in 1 : vector<4x456xf32>, vector<4x56xf32> -> vector<4x512xf32>
    %c19 = arith.constant 19 : index
    %c0_46 = arith.constant 0 : index
    %135 = vector.load %arg6[%c19, %c0_46] : memref<27x512xf32, #tpu.memory_space<vmem>>, vector<1x512xf32>
    %136 = vector.broadcast %135 : vector<1x512xf32> to vector<4x512xf32>
    %137 = arith.mulf %134, %136 : vector<4x512xf32>
    %c76 = arith.constant 76 : index
    %c0_47 = arith.constant 0 : index
    %138 = vector.load %arg8[%c76, %c0_47] : memref<108x512xf32, #tpu.memory_space<vmem>>, vector<4x512xf32>
    tpu.vector_store %arg8[%c76, %c0_47], %137 {strides = array<i32>} : memref<108x512xf32, #tpu.memory_space<vmem>>, vector<4x512xf32>,
    %139 = vector.extract_strided_slice %1 {offsets = [0, 57], sizes = [4, 455], strides = [1, 1]} : vector<4x512xf32> to vector<4x455xf32>
    %140 = vector.extract_strided_slice %1 {offsets = [0, 0], sizes = [4, 57], strides = [1, 1]} : vector<4x512xf32> to vector<4x57xf32>
    %141 = tpu.concatenate %139, %140 in 1 : vector<4x455xf32>, vector<4x57xf32> -> vector<4x512xf32>
    %c20_48 = arith.constant 20 : index
    %c0_49 = arith.constant 0 : index
    %142 = vector.load %arg6[%c20_48, %c0_49] : memref<27x512xf32, #tpu.memory_space<vmem>>, vector<1x512xf32>
    %143 = vector.broadcast %142 : vector<1x512xf32> to vector<4x512xf32>
    %144 = arith.mulf %141, %143 : vector<4x512xf32>
    %c80 = arith.constant 80 : index
    %c0_50 = arith.constant 0 : index
    %145 = vector.load %arg8[%c80, %c0_50] : memref<108x512xf32, #tpu.memory_space<vmem>>, vector<4x512xf32>
    tpu.vector_store %arg8[%c80, %c0_50], %144 {strides = array<i32>} : memref<108x512xf32, #tpu.memory_space<vmem>>, vector<4x512xf32>,
    %146 = vector.extract_strided_slice %1 {offsets = [0, 63], sizes = [4, 449], strides = [1, 1]} : vector<4x512xf32> to vector<4x449xf32>
    %147 = vector.extract_strided_slice %1 {offsets = [0, 0], sizes = [4, 63], strides = [1, 1]} : vector<4x512xf32> to vector<4x63xf32>
    %148 = tpu.concatenate %146, %147 in 1 : vector<4x449xf32>, vector<4x63xf32> -> vector<4x512xf32>
    %c21 = arith.constant 21 : index
    %c0_51 = arith.constant 0 : index
    %149 = vector.load %arg6[%c21, %c0_51] : memref<27x512xf32, #tpu.memory_space<vmem>>, vector<1x512xf32>
    %150 = vector.broadcast %149 : vector<1x512xf32> to vector<4x512xf32>
    %151 = arith.mulf %148, %150 : vector<4x512xf32>
    %c84 = arith.constant 84 : index
    %c0_52 = arith.constant 0 : index
    %152 = vector.load %arg8[%c84, %c0_52] : memref<108x512xf32, #tpu.memory_space<vmem>>, vector<4x512xf32>
    tpu.vector_store %arg8[%c84, %c0_52], %151 {strides = array<i32>} : memref<108x512xf32, #tpu.memory_space<vmem>>, vector<4x512xf32>,
    %153 = vector.extract_strided_slice %1 {offsets = [0, 64], sizes = [4, 448], strides = [1, 1]} : vector<4x512xf32> to vector<4x448xf32>
    %154 = vector.extract_strided_slice %1 {offsets = [0, 0], sizes = [4, 64], strides = [1, 1]} : vector<4x512xf32> to vector<4x64xf32>
    %155 = tpu.concatenate %153, %154 in 1 : vector<4x448xf32>, vector<4x64xf32> -> vector<4x512xf32>
    %c22 = arith.constant 22 : index
    %c0_53 = arith.constant 0 : index
    %156 = vector.load %arg6[%c22, %c0_53] : memref<27x512xf32, #tpu.memory_space<vmem>>, vector<1x512xf32>
    %157 = vector.broadcast %156 : vector<1x512xf32> to vector<4x512xf32>
    %158 = arith.mulf %155, %157 : vector<4x512xf32>
    %c88 = arith.constant 88 : index
    %c0_54 = arith.constant 0 : index
    %159 = vector.load %arg8[%c88, %c0_54] : memref<108x512xf32, #tpu.memory_space<vmem>>, vector<4x512xf32>
    tpu.vector_store %arg8[%c88, %c0_54], %158 {strides = array<i32>} : memref<108x512xf32, #tpu.memory_space<vmem>>, vector<4x512xf32>,
    %160 = vector.extract_strided_slice %1 {offsets = [0, 65], sizes = [4, 447], strides = [1, 1]} : vector<4x512xf32> to vector<4x447xf32>
    %161 = vector.extract_strided_slice %1 {offsets = [0, 0], sizes = [4, 65], strides = [1, 1]} : vector<4x512xf32> to vector<4x65xf32>
    %162 = tpu.concatenate %160, %161 in 1 : vector<4x447xf32>, vector<4x65xf32> -> vector<4x512xf32>
    %c23 = arith.constant 23 : index
    %c0_55 = arith.constant 0 : index
    %163 = vector.load %arg6[%c23, %c0_55] : memref<27x512xf32, #tpu.memory_space<vmem>>, vector<1x512xf32>
    %164 = vector.broadcast %163 : vector<1x512xf32> to vector<4x512xf32>
    %165 = arith.mulf %162, %164 : vector<4x512xf32>
    %c92 = arith.constant 92 : index
    %c0_56 = arith.constant 0 : index
    %166 = vector.load %arg8[%c92, %c0_56] : memref<108x512xf32, #tpu.memory_space<vmem>>, vector<4x512xf32>
    tpu.vector_store %arg8[%c92, %c0_56], %165 {strides = array<i32>} : memref<108x512xf32, #tpu.memory_space<vmem>>, vector<4x512xf32>,
    %167 = vector.extract_strided_slice %1 {offsets = [0, 71], sizes = [4, 441], strides = [1, 1]} : vector<4x512xf32> to vector<4x441xf32>
    %168 = vector.extract_strided_slice %1 {offsets = [0, 0], sizes = [4, 71], strides = [1, 1]} : vector<4x512xf32> to vector<4x71xf32>
    %169 = tpu.concatenate %167, %168 in 1 : vector<4x441xf32>, vector<4x71xf32> -> vector<4x512xf32>
    %c24_57 = arith.constant 24 : index
    %c0_58 = arith.constant 0 : index
    %170 = vector.load %arg6[%c24_57, %c0_58] : memref<27x512xf32, #tpu.memory_space<vmem>>, vector<1x512xf32>
    %171 = vector.broadcast %170 : vector<1x512xf32> to vector<4x512xf32>
    %172 = arith.mulf %169, %171 : vector<4x512xf32>
    %c96 = arith.constant 96 : index
    %c0_59 = arith.constant 0 : index
    %173 = vector.load %arg8[%c96, %c0_59] : memref<108x512xf32, #tpu.memory_space<vmem>>, vector<4x512xf32>
    tpu.vector_store %arg8[%c96, %c0_59], %172 {strides = array<i32>} : memref<108x512xf32, #tpu.memory_space<vmem>>, vector<4x512xf32>,
    %174 = vector.extract_strided_slice %1 {offsets = [0, 72], sizes = [4, 440], strides = [1, 1]} : vector<4x512xf32> to vector<4x440xf32>
    %175 = vector.extract_strided_slice %1 {offsets = [0, 0], sizes = [4, 72], strides = [1, 1]} : vector<4x512xf32> to vector<4x72xf32>
    %176 = tpu.concatenate %174, %175 in 1 : vector<4x440xf32>, vector<4x72xf32> -> vector<4x512xf32>
    %c25 = arith.constant 25 : index
    %c0_60 = arith.constant 0 : index
    %177 = vector.load %arg6[%c25, %c0_60] : memref<27x512xf32, #tpu.memory_space<vmem>>, vector<1x512xf32>
    %178 = vector.broadcast %177 : vector<1x512xf32> to vector<4x512xf32>
    %179 = arith.mulf %176, %178 : vector<4x512xf32>
    %c100 = arith.constant 100 : index
    %c0_61 = arith.constant 0 : index
    %180 = vector.load %arg8[%c100, %c0_61] : memref<108x512xf32, #tpu.memory_space<vmem>>, vector<4x512xf32>
    tpu.vector_store %arg8[%c100, %c0_61], %179 {strides = array<i32>} : memref<108x512xf32, #tpu.memory_space<vmem>>, vector<4x512xf32>,
    %181 = vector.extract_strided_slice %1 {offsets = [0, 73], sizes = [4, 439], strides = [1, 1]} : vector<4x512xf32> to vector<4x439xf32>
    %182 = vector.extract_strided_slice %1 {offsets = [0, 0], sizes = [4, 73], strides = [1, 1]} : vector<4x512xf32> to vector<4x73xf32>
    %183 = tpu.concatenate %181, %182 in 1 : vector<4x439xf32>, vector<4x73xf32> -> vector<4x512xf32>
    %c26 = arith.constant 26 : index
    %c0_62 = arith.constant 0 : index
    %184 = vector.load %arg6[%c26, %c0_62] : memref<27x512xf32, #tpu.memory_space<vmem>>, vector<1x512xf32>
    %185 = vector.broadcast %184 : vector<1x512xf32> to vector<4x512xf32>
    %186 = arith.mulf %183, %185 : vector<4x512xf32>
    %c104 = arith.constant 104 : index
    %c0_63 = arith.constant 0 : index
    %187 = vector.load %arg8[%c104, %c0_63] : memref<108x512xf32, #tpu.memory_space<vmem>>, vector<4x512xf32>
    tpu.vector_store %arg8[%c104, %c0_63], %186 {strides = array<i32>} : memref<108x512xf32, #tpu.memory_space<vmem>>, vector<4x512xf32>,
    %c0_64 = arith.constant 0 : index
    %c0_65 = arith.constant 0 : index
    %188 = vector.load %arg2[%c0_64, %c0_65] : memref<4x108xf32, #tpu.memory_space<vmem>>, vector<4x108xf32>
    %c0_66 = arith.constant 0 : index
    %c0_67 = arith.constant 0 : index
    %189 = vector.load %arg8[%c0_66, %c0_67] : memref<108x512xf32, #tpu.memory_space<vmem>>, vector<108x512xf32>
    %cst = arith.constant dense<0.000000e+00> : vector<4x512xf32>
    %190 = tpu.matmul %188, %189, %cst {dimension_numbers = #tpu.dot_dimension_numbers<[1], [0], [0], [1], [0, 0, 1, 1], [], []>} : vector<4x108xf32>, vector<108x512xf32>, vector<4x512xf32> -> vector<4x512xf32>
    %c0_68 = arith.constant 0 : index
    %c0_69 = arith.constant 0 : index
    %191 = vector.load %arg3[%c0_68, %c0_69] : memref<4x1xf32, #tpu.memory_space<vmem>>, vector<4x1xf32>
    %192 = vector.broadcast %191 : vector<4x1xf32> to vector<4x512xf32>
    %193 = arith.addf %190, %192 : vector<4x512xf32>
    %cst_70 = arith.constant dense<0.000000e+00> : vector<4xf32>
    %194 = vector.multi_reduction <add>, %193, %cst_70 [1] : vector<4x512xf32> to vector<4xf32>
    %195 = vector.shape_cast %194 : vector<4xf32> to vector<4x1xf32>
    %cst_71 = arith.constant 5.120000e+02 : f32
    %196 = vector.broadcast %cst_71 : f32 to vector<4x1xf32>
    %197 = arith.divf %195, %196 : vector<4x1xf32>
    %198 = vector.broadcast %197 : vector<4x1xf32> to vector<4x512xf32>
    %199 = arith.subf %193, %198 : vector<4x512xf32>
    %200 = arith.mulf %199, %199 : vector<4x512xf32>
    %cst_72 = arith.constant dense<0.000000e+00> : vector<4xf32>
    %201 = vector.multi_reduction <add>, %200, %cst_72 [1] : vector<4x512xf32> to vector<4xf32>
    %202 = vector.shape_cast %201 : vector<4xf32> to vector<4x1xf32>
    %cst_73 = arith.constant 5.120000e+02 : f32
    %203 = vector.broadcast %cst_73 : f32 to vector<4x1xf32>
    %204 = arith.divf %202, %203 : vector<4x1xf32>
    %205 = vector.broadcast %197 : vector<4x1xf32> to vector<4x512xf32>
    %206 = arith.subf %193, %205 : vector<4x512xf32>
    %cst_74 = arith.constant 9.99999974E-6 : f32
    %207 = vector.broadcast %cst_74 : f32 to vector<4x1xf32>
    %208 = arith.addf %204, %207 : vector<4x1xf32>
    %209 = math.rsqrt %208 : vector<4x1xf32>
    %210 = vector.broadcast %209 : vector<4x1xf32> to vector<4x512xf32>
    %211 = arith.mulf %206, %210 : vector<4x512xf32>
    %cst_75 = arith.constant 0.000000e+00 : f32
    %212 = vector.broadcast %cst_75 : f32 to vector<4x512xf32>
    %213 = arith.cmpf oge, %211, %212 : vector<4x512xf32>
    %cst_76 = arith.constant 2.000000e-01 : f32
    %214 = vector.broadcast %cst_76 : f32 to vector<4x512xf32>
    %215 = arith.mulf %214, %211 : vector<4x512xf32>
    %216 = arith.select %213, %211, %215 : vector<4x512xi1>, vector<4x512xf32>
    %217 = vector.extract_strided_slice %216 {offsets = [0, 439], sizes = [4, 73], strides = [1, 1]} : vector<4x512xf32> to vector<4x73xf32>
    %218 = vector.extract_strided_slice %216 {offsets = [0, 0], sizes = [4, 439], strides = [1, 1]} : vector<4x512xf32> to vector<4x439xf32>
    %219 = tpu.concatenate %217, %218 in 1 : vector<4x73xf32>, vector<4x439xf32> -> vector<4x512xf32>
    %c0_77 = arith.constant 0 : index
    %c0_78 = arith.constant 0 : index
    %220 = vector.load %arg6[%c0_77, %c0_78] : memref<27x512xf32, #tpu.memory_space<vmem>>, vector<1x512xf32>
    %221 = vector.broadcast %220 : vector<1x512xf32> to vector<4x512xf32>
    %222 = arith.mulf %219, %221 : vector<4x512xf32>
    %c0_79 = arith.constant 0 : index
    %c0_80 = arith.constant 0 : index
    %223 = vector.load %arg9[%c0_79, %c0_80] : memref<108x512xf32, #tpu.memory_space<vmem>>, vector<4x512xf32>
    tpu.vector_store %arg9[%c0_79, %c0_80], %222 {strides = array<i32>} : memref<108x512xf32, #tpu.memory_space<vmem>>, vector<4x512xf32>,
    %224 = vector.extract_strided_slice %216 {offsets = [0, 440], sizes = [4, 72], strides = [1, 1]} : vector<4x512xf32> to vector<4x72xf32>
    %225 = vector.extract_strided_slice %216 {offsets = [0, 0], sizes = [4, 440], strides = [1, 1]} : vector<4x512xf32> to vector<4x440xf32>
    %226 = tpu.concatenate %224, %225 in 1 : vector<4x72xf32>, vector<4x440xf32> -> vector<4x512xf32>
    %c1_81 = arith.constant 1 : index
    %c0_82 = arith.constant 0 : index
    %227 = vector.load %arg6[%c1_81, %c0_82] : memref<27x512xf32, #tpu.memory_space<vmem>>, vector<1x512xf32>
    %228 = vector.broadcast %227 : vector<1x512xf32> to vector<4x512xf32>
    %229 = arith.mulf %226, %228 : vector<4x512xf32>
    %c4_83 = arith.constant 4 : index
    %c0_84 = arith.constant 0 : index
    %230 = vector.load %arg9[%c4_83, %c0_84] : memref<108x512xf32, #tpu.memory_space<vmem>>, vector<4x512xf32>
    tpu.vector_store %arg9[%c4_83, %c0_84], %229 {strides = array<i32>} : memref<108x512xf32, #tpu.memory_space<vmem>>, vector<4x512xf32>,
    %231 = vector.extract_strided_slice %216 {offsets = [0, 441], sizes = [4, 71], strides = [1, 1]} : vector<4x512xf32> to vector<4x71xf32>
    %232 = vector.extract_strided_slice %216 {offsets = [0, 0], sizes = [4, 441], strides = [1, 1]} : vector<4x512xf32> to vector<4x441xf32>
    %233 = tpu.concatenate %231, %232 in 1 : vector<4x71xf32>, vector<4x441xf32> -> vector<4x512xf32>
    %c2_85 = arith.constant 2 : index
    %c0_86 = arith.constant 0 : index
    %234 = vector.load %arg6[%c2_85, %c0_86] : memref<27x512xf32, #tpu.memory_space<vmem>>, vector<1x512xf32>
    %235 = vector.broadcast %234 : vector<1x512xf32> to vector<4x512xf32>
    %236 = arith.mulf %233, %235 : vector<4x512xf32>
    %c8_87 = arith.constant 8 : index
    %c0_88 = arith.constant 0 : index
    %237 = vector.load %arg9[%c8_87, %c0_88] : memref<108x512xf32, #tpu.memory_space<vmem>>, vector<4x512xf32>
    tpu.vector_store %arg9[%c8_87, %c0_88], %236 {strides = array<i32>} : memref<108x512xf32, #tpu.memory_space<vmem>>, vector<4x512xf32>,
    %238 = vector.extract_strided_slice %216 {offsets = [0, 447], sizes = [4, 65], strides = [1, 1]} : vector<4x512xf32> to vector<4x65xf32>
    %239 = vector.extract_strided_slice %216 {offsets = [0, 0], sizes = [4, 447], strides = [1, 1]} : vector<4x512xf32> to vector<4x447xf32>
    %240 = tpu.concatenate %238, %239 in 1 : vector<4x65xf32>, vector<4x447xf32> -> vector<4x512xf32>
    %c3_89 = arith.constant 3 : index
    %c0_90 = arith.constant 0 : index
    %241 = vector.load %arg6[%c3_89, %c0_90] : memref<27x512xf32, #tpu.memory_space<vmem>>, vector<1x512xf32>
    %242 = vector.broadcast %241 : vector<1x512xf32> to vector<4x512xf32>
    %243 = arith.mulf %240, %242 : vector<4x512xf32>
    %c12_91 = arith.constant 12 : index
    %c0_92 = arith.constant 0 : index
    %244 = vector.load %arg9[%c12_91, %c0_92] : memref<108x512xf32, #tpu.memory_space<vmem>>, vector<4x512xf32>
    tpu.vector_store %arg9[%c12_91, %c0_92], %243 {strides = array<i32>} : memref<108x512xf32, #tpu.memory_space<vmem>>, vector<4x512xf32>,
    %245 = vector.extract_strided_slice %216 {offsets = [0, 448], sizes = [4, 64], strides = [1, 1]} : vector<4x512xf32> to vector<4x64xf32>
    %246 = vector.extract_strided_slice %216 {offsets = [0, 0], sizes = [4, 448], strides = [1, 1]} : vector<4x512xf32> to vector<4x448xf32>
    %247 = tpu.concatenate %245, %246 in 1 : vector<4x64xf32>, vector<4x448xf32> -> vector<4x512xf32>
    %c4_93 = arith.constant 4 : index
    %c0_94 = arith.constant 0 : index
    %248 = vector.load %arg6[%c4_93, %c0_94] : memref<27x512xf32, #tpu.memory_space<vmem>>, vector<1x512xf32>
    %249 = vector.broadcast %248 : vector<1x512xf32> to vector<4x512xf32>
    %250 = arith.mulf %247, %249 : vector<4x512xf32>
    %c16_95 = arith.constant 16 : index
    %c0_96 = arith.constant 0 : index
    %251 = vector.load %arg9[%c16_95, %c0_96] : memref<108x512xf32, #tpu.memory_space<vmem>>, vector<4x512xf32>
    tpu.vector_store %arg9[%c16_95, %c0_96], %250 {strides = array<i32>} : memref<108x512xf32, #tpu.memory_space<vmem>>, vector<4x512xf32>,
    %252 = vector.extract_strided_slice %216 {offsets = [0, 449], sizes = [4, 63], strides = [1, 1]} : vector<4x512xf32> to vector<4x63xf32>
    %253 = vector.extract_strided_slice %216 {offsets = [0, 0], sizes = [4, 449], strides = [1, 1]} : vector<4x512xf32> to vector<4x449xf32>
    %254 = tpu.concatenate %252, %253 in 1 : vector<4x63xf32>, vector<4x449xf32> -> vector<4x512xf32>
    %c5_97 = arith.constant 5 : index
    %c0_98 = arith.constant 0 : index
    %255 = vector.load %arg6[%c5_97, %c0_98] : memref<27x512xf32, #tpu.memory_space<vmem>>, vector<1x512xf32>
    %256 = vector.broadcast %255 : vector<1x512xf32> to vector<4x512xf32>
    %257 = arith.mulf %254, %256 : vector<4x512xf32>
    %c20_99 = arith.constant 20 : index
    %c0_100 = arith.constant 0 : index
    %258 = vector.load %arg9[%c20_99, %c0_100] : memref<108x512xf32, #tpu.memory_space<vmem>>, vector<4x512xf32>
    tpu.vector_store %arg9[%c20_99, %c0_100], %257 {strides = array<i32>} : memref<108x512xf32, #tpu.memory_space<vmem>>, vector<4x512xf32>,
    %259 = vector.extract_strided_slice %216 {offsets = [0, 455], sizes = [4, 57], strides = [1, 1]} : vector<4x512xf32> to vector<4x57xf32>
    %260 = vector.extract_strided_slice %216 {offsets = [0, 0], sizes = [4, 455], strides = [1, 1]} : vector<4x512xf32> to vector<4x455xf32>
    %261 = tpu.concatenate %259, %260 in 1 : vector<4x57xf32>, vector<4x455xf32> -> vector<4x512xf32>
    %c6_101 = arith.constant 6 : index
    %c0_102 = arith.constant 0 : index
    %262 = vector.load %arg6[%c6_101, %c0_102] : memref<27x512xf32, #tpu.memory_space<vmem>>, vector<1x512xf32>
    %263 = vector.broadcast %262 : vector<1x512xf32> to vector<4x512xf32>
    %264 = arith.mulf %261, %263 : vector<4x512xf32>
    %c24_103 = arith.constant 24 : index
    %c0_104 = arith.constant 0 : index
    %265 = vector.load %arg9[%c24_103, %c0_104] : memref<108x512xf32, #tpu.memory_space<vmem>>, vector<4x512xf32>
    tpu.vector_store %arg9[%c24_103, %c0_104], %264 {strides = array<i32>} : memref<108x512xf32, #tpu.memory_space<vmem>>, vector<4x512xf32>,
    %266 = vector.extract_strided_slice %216 {offsets = [0, 456], sizes = [4, 56], strides = [1, 1]} : vector<4x512xf32> to vector<4x56xf32>
    %267 = vector.extract_strided_slice %216 {offsets = [0, 0], sizes = [4, 456], strides = [1, 1]} : vector<4x512xf32> to vector<4x456xf32>
    %268 = tpu.concatenate %266, %267 in 1 : vector<4x56xf32>, vector<4x456xf32> -> vector<4x512xf32>
    %c7_105 = arith.constant 7 : index
    %c0_106 = arith.constant 0 : index
    %269 = vector.load %arg6[%c7_105, %c0_106] : memref<27x512xf32, #tpu.memory_space<vmem>>, vector<1x512xf32>
    %270 = vector.broadcast %269 : vector<1x512xf32> to vector<4x512xf32>
    %271 = arith.mulf %268, %270 : vector<4x512xf32>
    %c28_107 = arith.constant 28 : index
    %c0_108 = arith.constant 0 : index
    %272 = vector.load %arg9[%c28_107, %c0_108] : memref<108x512xf32, #tpu.memory_space<vmem>>, vector<4x512xf32>
    tpu.vector_store %arg9[%c28_107, %c0_108], %271 {strides = array<i32>} : memref<108x512xf32, #tpu.memory_space<vmem>>, vector<4x512xf32>,
    %273 = vector.extract_strided_slice %216 {offsets = [0, 457], sizes = [4, 55], strides = [1, 1]} : vector<4x512xf32> to vector<4x55xf32>
    %274 = vector.extract_strided_slice %216 {offsets = [0, 0], sizes = [4, 457], strides = [1, 1]} : vector<4x512xf32> to vector<4x457xf32>
    %275 = tpu.concatenate %273, %274 in 1 : vector<4x55xf32>, vector<4x457xf32> -> vector<4x512xf32>
    %c8_109 = arith.constant 8 : index
    %c0_110 = arith.constant 0 : index
    %276 = vector.load %arg6[%c8_109, %c0_110] : memref<27x512xf32, #tpu.memory_space<vmem>>, vector<1x512xf32>
    %277 = vector.broadcast %276 : vector<1x512xf32> to vector<4x512xf32>
    %278 = arith.mulf %275, %277 : vector<4x512xf32>
    %c32_111 = arith.constant 32 : index
    %c0_112 = arith.constant 0 : index
    %279 = vector.load %arg9[%c32_111, %c0_112] : memref<108x512xf32, #tpu.memory_space<vmem>>, vector<4x512xf32>
    tpu.vector_store %arg9[%c32_111, %c0_112], %278 {strides = array<i32>} : memref<108x512xf32, #tpu.memory_space<vmem>>, vector<4x512xf32>,
    %280 = vector.extract_strided_slice %216 {offsets = [0, 503], sizes = [4, 9], strides = [1, 1]} : vector<4x512xf32> to vector<4x9xf32>
    %281 = vector.extract_strided_slice %216 {offsets = [0, 0], sizes = [4, 503], strides = [1, 1]} : vector<4x512xf32> to vector<4x503xf32>
    %282 = tpu.concatenate %280, %281 in 1 : vector<4x9xf32>, vector<4x503xf32> -> vector<4x512xf32>
    %c9_113 = arith.constant 9 : index
    %c0_114 = arith.constant 0 : index
    %283 = vector.load %arg6[%c9_113, %c0_114] : memref<27x512xf32, #tpu.memory_space<vmem>>, vector<1x512xf32>
    %284 = vector.broadcast %283 : vector<1x512xf32> to vector<4x512xf32>
    %285 = arith.mulf %282, %284 : vector<4x512xf32>
    %c36_115 = arith.constant 36 : index
    %c0_116 = arith.constant 0 : index
    %286 = vector.load %arg9[%c36_115, %c0_116] : memref<108x512xf32, #tpu.memory_space<vmem>>, vector<4x512xf32>
    tpu.vector_store %arg9[%c36_115, %c0_116], %285 {strides = array<i32>} : memref<108x512xf32, #tpu.memory_space<vmem>>, vector<4x512xf32>,
    %287 = vector.extract_strided_slice %216 {offsets = [0, 504], sizes = [4, 8], strides = [1, 1]} : vector<4x512xf32> to vector<4x8xf32>
    %288 = vector.extract_strided_slice %216 {offsets = [0, 0], sizes = [4, 504], strides = [1, 1]} : vector<4x512xf32> to vector<4x504xf32>
    %289 = tpu.concatenate %287, %288 in 1 : vector<4x8xf32>, vector<4x504xf32> -> vector<4x512xf32>
    %c10_117 = arith.constant 10 : index
    %c0_118 = arith.constant 0 : index
    %290 = vector.load %arg6[%c10_117, %c0_118] : memref<27x512xf32, #tpu.memory_space<vmem>>, vector<1x512xf32>
    %291 = vector.broadcast %290 : vector<1x512xf32> to vector<4x512xf32>
    %292 = arith.mulf %289, %291 : vector<4x512xf32>
    %c40_119 = arith.constant 40 : index
    %c0_120 = arith.constant 0 : index
    %293 = vector.load %arg9[%c40_119, %c0_120] : memref<108x512xf32, #tpu.memory_space<vmem>>, vector<4x512xf32>
    tpu.vector_store %arg9[%c40_119, %c0_120], %292 {strides = array<i32>} : memref<108x512xf32, #tpu.memory_space<vmem>>, vector<4x512xf32>,
    %294 = vector.extract_strided_slice %216 {offsets = [0, 505], sizes = [4, 7], strides = [1, 1]} : vector<4x512xf32> to vector<4x7xf32>
    %295 = vector.extract_strided_slice %216 {offsets = [0, 0], sizes = [4, 505], strides = [1, 1]} : vector<4x512xf32> to vector<4x505xf32>
    %296 = tpu.concatenate %294, %295 in 1 : vector<4x7xf32>, vector<4x505xf32> -> vector<4x512xf32>
    %c11_121 = arith.constant 11 : index
    %c0_122 = arith.constant 0 : index
    %297 = vector.load %arg6[%c11_121, %c0_122] : memref<27x512xf32, #tpu.memory_space<vmem>>, vector<1x512xf32>
    %298 = vector.broadcast %297 : vector<1x512xf32> to vector<4x512xf32>
    %299 = arith.mulf %296, %298 : vector<4x512xf32>
    %c44_123 = arith.constant 44 : index
    %c0_124 = arith.constant 0 : index
    %300 = vector.load %arg9[%c44_123, %c0_124] : memref<108x512xf32, #tpu.memory_space<vmem>>, vector<4x512xf32>
    tpu.vector_store %arg9[%c44_123, %c0_124], %299 {strides = array<i32>} : memref<108x512xf32, #tpu.memory_space<vmem>>, vector<4x512xf32>,
    %301 = vector.extract_strided_slice %216 {offsets = [0, 511], sizes = [4, 1], strides = [1, 1]} : vector<4x512xf32> to vector<4x1xf32>
    %302 = vector.extract_strided_slice %216 {offsets = [0, 0], sizes = [4, 511], strides = [1, 1]} : vector<4x512xf32> to vector<4x511xf32>
    %303 = tpu.concatenate %301, %302 in 1 : vector<4x1xf32>, vector<4x511xf32> -> vector<4x512xf32>
    %c12_125 = arith.constant 12 : index
    %c0_126 = arith.constant 0 : index
    %304 = vector.load %arg6[%c12_125, %c0_126] : memref<27x512xf32, #tpu.memory_space<vmem>>, vector<1x512xf32>
    %305 = vector.broadcast %304 : vector<1x512xf32> to vector<4x512xf32>
    %306 = arith.mulf %303, %305 : vector<4x512xf32>
    %c48_127 = arith.constant 48 : index
    %c0_128 = arith.constant 0 : index
    %307 = vector.load %arg9[%c48_127, %c0_128] : memref<108x512xf32, #tpu.memory_space<vmem>>, vector<4x512xf32>
    tpu.vector_store %arg9[%c48_127, %c0_128], %306 {strides = array<i32>} : memref<108x512xf32, #tpu.memory_space<vmem>>, vector<4x512xf32>,
    %c13_129 = arith.constant 13 : index
    %c0_130 = arith.constant 0 : index
    %308 = vector.load %arg6[%c13_129, %c0_130] : memref<27x512xf32, #tpu.memory_space<vmem>>, vector<1x512xf32>
    %309 = vector.broadcast %308 : vector<1x512xf32> to vector<4x512xf32>
    %310 = arith.mulf %216, %309 : vector<4x512xf32>
    %c52_131 = arith.constant 52 : index
    %c0_132 = arith.constant 0 : index
    %311 = vector.load %arg9[%c52_131, %c0_132] : memref<108x512xf32, #tpu.memory_space<vmem>>, vector<4x512xf32>
    tpu.vector_store %arg9[%c52_131, %c0_132], %310 {strides = array<i32>} : memref<108x512xf32, #tpu.memory_space<vmem>>, vector<4x512xf32>,
    %312 = vector.extract_strided_slice %216 {offsets = [0, 1], sizes = [4, 511], strides = [1, 1]} : vector<4x512xf32> to vector<4x511xf32>
    %313 = vector.extract_strided_slice %216 {offsets = [0, 0], sizes = [4, 1], strides = [1, 1]} : vector<4x512xf32> to vector<4x1xf32>
    %314 = tpu.concatenate %312, %313 in 1 : vector<4x511xf32>, vector<4x1xf32> -> vector<4x512xf32>
    %c14_133 = arith.constant 14 : index
    %c0_134 = arith.constant 0 : index
    %315 = vector.load %arg6[%c14_133, %c0_134] : memref<27x512xf32, #tpu.memory_space<vmem>>, vector<1x512xf32>
    %316 = vector.broadcast %315 : vector<1x512xf32> to vector<4x512xf32>
    %317 = arith.mulf %314, %316 : vector<4x512xf32>
    %c56_135 = arith.constant 56 : index
    %c0_136 = arith.constant 0 : index
    %318 = vector.load %arg9[%c56_135, %c0_136] : memref<108x512xf32, #tpu.memory_space<vmem>>, vector<4x512xf32>
    tpu.vector_store %arg9[%c56_135, %c0_136], %317 {strides = array<i32>} : memref<108x512xf32, #tpu.memory_space<vmem>>, vector<4x512xf32>,
    %319 = vector.extract_strided_slice %216 {offsets = [0, 7], sizes = [4, 505], strides = [1, 1]} : vector<4x512xf32> to vector<4x505xf32>
    %320 = vector.extract_strided_slice %216 {offsets = [0, 0], sizes = [4, 7], strides = [1, 1]} : vector<4x512xf32> to vector<4x7xf32>
    %321 = tpu.concatenate %319, %320 in 1 : vector<4x505xf32>, vector<4x7xf32> -> vector<4x512xf32>
    %c15_137 = arith.constant 15 : index
    %c0_138 = arith.constant 0 : index
    %322 = vector.load %arg6[%c15_137, %c0_138] : memref<27x512xf32, #tpu.memory_space<vmem>>, vector<1x512xf32>
    %323 = vector.broadcast %322 : vector<1x512xf32> to vector<4x512xf32>
    %324 = arith.mulf %321, %323 : vector<4x512xf32>
    %c60_139 = arith.constant 60 : index
    %c0_140 = arith.constant 0 : index
    %325 = vector.load %arg9[%c60_139, %c0_140] : memref<108x512xf32, #tpu.memory_space<vmem>>, vector<4x512xf32>
    tpu.vector_store %arg9[%c60_139, %c0_140], %324 {strides = array<i32>} : memref<108x512xf32, #tpu.memory_space<vmem>>, vector<4x512xf32>,
    %326 = vector.extract_strided_slice %216 {offsets = [0, 8], sizes = [4, 504], strides = [1, 1]} : vector<4x512xf32> to vector<4x504xf32>
    %327 = vector.extract_strided_slice %216 {offsets = [0, 0], sizes = [4, 8], strides = [1, 1]} : vector<4x512xf32> to vector<4x8xf32>
    %328 = tpu.concatenate %326, %327 in 1 : vector<4x504xf32>, vector<4x8xf32> -> vector<4x512xf32>
    %c16_141 = arith.constant 16 : index
    %c0_142 = arith.constant 0 : index
    %329 = vector.load %arg6[%c16_141, %c0_142] : memref<27x512xf32, #tpu.memory_space<vmem>>, vector<1x512xf32>
    %330 = vector.broadcast %329 : vector<1x512xf32> to vector<4x512xf32>
    %331 = arith.mulf %328, %330 : vector<4x512xf32>
    %c64_143 = arith.constant 64 : index
    %c0_144 = arith.constant 0 : index
    %332 = vector.load %arg9[%c64_143, %c0_144] : memref<108x512xf32, #tpu.memory_space<vmem>>, vector<4x512xf32>
    tpu.vector_store %arg9[%c64_143, %c0_144], %331 {strides = array<i32>} : memref<108x512xf32, #tpu.memory_space<vmem>>, vector<4x512xf32>,
    %333 = vector.extract_strided_slice %216 {offsets = [0, 9], sizes = [4, 503], strides = [1, 1]} : vector<4x512xf32> to vector<4x503xf32>
    %334 = vector.extract_strided_slice %216 {offsets = [0, 0], sizes = [4, 9], strides = [1, 1]} : vector<4x512xf32> to vector<4x9xf32>
    %335 = tpu.concatenate %333, %334 in 1 : vector<4x503xf32>, vector<4x9xf32> -> vector<4x512xf32>
    %c17_145 = arith.constant 17 : index
    %c0_146 = arith.constant 0 : index
    %336 = vector.load %arg6[%c17_145, %c0_146] : memref<27x512xf32, #tpu.memory_space<vmem>>, vector<1x512xf32>
    %337 = vector.broadcast %336 : vector<1x512xf32> to vector<4x512xf32>
    %338 = arith.mulf %335, %337 : vector<4x512xf32>
    %c68_147 = arith.constant 68 : index
    %c0_148 = arith.constant 0 : index
    %339 = vector.load %arg9[%c68_147, %c0_148] : memref<108x512xf32, #tpu.memory_space<vmem>>, vector<4x512xf32>
    tpu.vector_store %arg9[%c68_147, %c0_148], %338 {strides = array<i32>} : memref<108x512xf32, #tpu.memory_space<vmem>>, vector<4x512xf32>,
    %340 = vector.extract_strided_slice %216 {offsets = [0, 55], sizes = [4, 457], strides = [1, 1]} : vector<4x512xf32> to vector<4x457xf32>
    %341 = vector.extract_strided_slice %216 {offsets = [0, 0], sizes = [4, 55], strides = [1, 1]} : vector<4x512xf32> to vector<4x55xf32>
    %342 = tpu.concatenate %340, %341 in 1 : vector<4x457xf32>, vector<4x55xf32> -> vector<4x512xf32>
    %c18_149 = arith.constant 18 : index
    %c0_150 = arith.constant 0 : index
    %343 = vector.load %arg6[%c18_149, %c0_150] : memref<27x512xf32, #tpu.memory_space<vmem>>, vector<1x512xf32>
    %344 = vector.broadcast %343 : vector<1x512xf32> to vector<4x512xf32>
    %345 = arith.mulf %342, %344 : vector<4x512xf32>
    %c72_151 = arith.constant 72 : index
    %c0_152 = arith.constant 0 : index
    %346 = vector.load %arg9[%c72_151, %c0_152] : memref<108x512xf32, #tpu.memory_space<vmem>>, vector<4x512xf32>
    tpu.vector_store %arg9[%c72_151, %c0_152], %345 {strides = array<i32>} : memref<108x512xf32, #tpu.memory_space<vmem>>, vector<4x512xf32>,
    %347 = vector.extract_strided_slice %216 {offsets = [0, 56], sizes = [4, 456], strides = [1, 1]} : vector<4x512xf32> to vector<4x456xf32>
    %348 = vector.extract_strided_slice %216 {offsets = [0, 0], sizes = [4, 56], strides = [1, 1]} : vector<4x512xf32> to vector<4x56xf32>
    %349 = tpu.concatenate %347, %348 in 1 : vector<4x456xf32>, vector<4x56xf32> -> vector<4x512xf32>
    %c19_153 = arith.constant 19 : index
    %c0_154 = arith.constant 0 : index
    %350 = vector.load %arg6[%c19_153, %c0_154] : memref<27x512xf32, #tpu.memory_space<vmem>>, vector<1x512xf32>
    %351 = vector.broadcast %350 : vector<1x512xf32> to vector<4x512xf32>
    %352 = arith.mulf %349, %351 : vector<4x512xf32>
    %c76_155 = arith.constant 76 : index
    %c0_156 = arith.constant 0 : index
    %353 = vector.load %arg9[%c76_155, %c0_156] : memref<108x512xf32, #tpu.memory_space<vmem>>, vector<4x512xf32>
    tpu.vector_store %arg9[%c76_155, %c0_156], %352 {strides = array<i32>} : memref<108x512xf32, #tpu.memory_space<vmem>>, vector<4x512xf32>,
    %354 = vector.extract_strided_slice %216 {offsets = [0, 57], sizes = [4, 455], strides = [1, 1]} : vector<4x512xf32> to vector<4x455xf32>
    %355 = vector.extract_strided_slice %216 {offsets = [0, 0], sizes = [4, 57], strides = [1, 1]} : vector<4x512xf32> to vector<4x57xf32>
    %356 = tpu.concatenate %354, %355 in 1 : vector<4x455xf32>, vector<4x57xf32> -> vector<4x512xf32>
    %c20_157 = arith.constant 20 : index
    %c0_158 = arith.constant 0 : index
    %357 = vector.load %arg6[%c20_157, %c0_158] : memref<27x512xf32, #tpu.memory_space<vmem>>, vector<1x512xf32>
    %358 = vector.broadcast %357 : vector<1x512xf32> to vector<4x512xf32>
    %359 = arith.mulf %356, %358 : vector<4x512xf32>
    %c80_159 = arith.constant 80 : index
    %c0_160 = arith.constant 0 : index
    %360 = vector.load %arg9[%c80_159, %c0_160] : memref<108x512xf32, #tpu.memory_space<vmem>>, vector<4x512xf32>
    tpu.vector_store %arg9[%c80_159, %c0_160], %359 {strides = array<i32>} : memref<108x512xf32, #tpu.memory_space<vmem>>, vector<4x512xf32>,
    %361 = vector.extract_strided_slice %216 {offsets = [0, 63], sizes = [4, 449], strides = [1, 1]} : vector<4x512xf32> to vector<4x449xf32>
    %362 = vector.extract_strided_slice %216 {offsets = [0, 0], sizes = [4, 63], strides = [1, 1]} : vector<4x512xf32> to vector<4x63xf32>
    %363 = tpu.concatenate %361, %362 in 1 : vector<4x449xf32>, vector<4x63xf32> -> vector<4x512xf32>
    %c21_161 = arith.constant 21 : index
    %c0_162 = arith.constant 0 : index
    %364 = vector.load %arg6[%c21_161, %c0_162] : memref<27x512xf32, #tpu.memory_space<vmem>>, vector<1x512xf32>
    %365 = vector.broadcast %364 : vector<1x512xf32> to vector<4x512xf32>
    %366 = arith.mulf %363, %365 : vector<4x512xf32>
    %c84_163 = arith.constant 84 : index
    %c0_164 = arith.constant 0 : index
    %367 = vector.load %arg9[%c84_163, %c0_164] : memref<108x512xf32, #tpu.memory_space<vmem>>, vector<4x512xf32>
    tpu.vector_store %arg9[%c84_163, %c0_164], %366 {strides = array<i32>} : memref<108x512xf32, #tpu.memory_space<vmem>>, vector<4x512xf32>,
    %368 = vector.extract_strided_slice %216 {offsets = [0, 64], sizes = [4, 448], strides = [1, 1]} : vector<4x512xf32> to vector<4x448xf32>
    %369 = vector.extract_strided_slice %216 {offsets = [0, 0], sizes = [4, 64], strides = [1, 1]} : vector<4x512xf32> to vector<4x64xf32>
    %370 = tpu.concatenate %368, %369 in 1 : vector<4x448xf32>, vector<4x64xf32> -> vector<4x512xf32>
    %c22_165 = arith.constant 22 : index
    %c0_166 = arith.constant 0 : index
    %371 = vector.load %arg6[%c22_165, %c0_166] : memref<27x512xf32, #tpu.memory_space<vmem>>, vector<1x512xf32>
    %372 = vector.broadcast %371 : vector<1x512xf32> to vector<4x512xf32>
    %373 = arith.mulf %370, %372 : vector<4x512xf32>
    %c88_167 = arith.constant 88 : index
    %c0_168 = arith.constant 0 : index
    %374 = vector.load %arg9[%c88_167, %c0_168] : memref<108x512xf32, #tpu.memory_space<vmem>>, vector<4x512xf32>
    tpu.vector_store %arg9[%c88_167, %c0_168], %373 {strides = array<i32>} : memref<108x512xf32, #tpu.memory_space<vmem>>, vector<4x512xf32>,
    %375 = vector.extract_strided_slice %216 {offsets = [0, 65], sizes = [4, 447], strides = [1, 1]} : vector<4x512xf32> to vector<4x447xf32>
    %376 = vector.extract_strided_slice %216 {offsets = [0, 0], sizes = [4, 65], strides = [1, 1]} : vector<4x512xf32> to vector<4x65xf32>
    %377 = tpu.concatenate %375, %376 in 1 : vector<4x447xf32>, vector<4x65xf32> -> vector<4x512xf32>
    %c23_169 = arith.constant 23 : index
    %c0_170 = arith.constant 0 : index
    %378 = vector.load %arg6[%c23_169, %c0_170] : memref<27x512xf32, #tpu.memory_space<vmem>>, vector<1x512xf32>
    %379 = vector.broadcast %378 : vector<1x512xf32> to vector<4x512xf32>
    %380 = arith.mulf %377, %379 : vector<4x512xf32>
    %c92_171 = arith.constant 92 : index
    %c0_172 = arith.constant 0 : index
    %381 = vector.load %arg9[%c92_171, %c0_172] : memref<108x512xf32, #tpu.memory_space<vmem>>, vector<4x512xf32>
    tpu.vector_store %arg9[%c92_171, %c0_172], %380 {strides = array<i32>} : memref<108x512xf32, #tpu.memory_space<vmem>>, vector<4x512xf32>,
    %382 = vector.extract_strided_slice %216 {offsets = [0, 71], sizes = [4, 441], strides = [1, 1]} : vector<4x512xf32> to vector<4x441xf32>
    %383 = vector.extract_strided_slice %216 {offsets = [0, 0], sizes = [4, 71], strides = [1, 1]} : vector<4x512xf32> to vector<4x71xf32>
    %384 = tpu.concatenate %382, %383 in 1 : vector<4x441xf32>, vector<4x71xf32> -> vector<4x512xf32>
    %c24_173 = arith.constant 24 : index
    %c0_174 = arith.constant 0 : index
    %385 = vector.load %arg6[%c24_173, %c0_174] : memref<27x512xf32, #tpu.memory_space<vmem>>, vector<1x512xf32>
    %386 = vector.broadcast %385 : vector<1x512xf32> to vector<4x512xf32>
    %387 = arith.mulf %384, %386 : vector<4x512xf32>
    %c96_175 = arith.constant 96 : index
    %c0_176 = arith.constant 0 : index
    %388 = vector.load %arg9[%c96_175, %c0_176] : memref<108x512xf32, #tpu.memory_space<vmem>>, vector<4x512xf32>
    tpu.vector_store %arg9[%c96_175, %c0_176], %387 {strides = array<i32>} : memref<108x512xf32, #tpu.memory_space<vmem>>, vector<4x512xf32>,
    %389 = vector.extract_strided_slice %216 {offsets = [0, 72], sizes = [4, 440], strides = [1, 1]} : vector<4x512xf32> to vector<4x440xf32>
    %390 = vector.extract_strided_slice %216 {offsets = [0, 0], sizes = [4, 72], strides = [1, 1]} : vector<4x512xf32> to vector<4x72xf32>
    %391 = tpu.concatenate %389, %390 in 1 : vector<4x440xf32>, vector<4x72xf32> -> vector<4x512xf32>
    %c25_177 = arith.constant 25 : index
    %c0_178 = arith.constant 0 : index
    %392 = vector.load %arg6[%c25_177, %c0_178] : memref<27x512xf32, #tpu.memory_space<vmem>>, vector<1x512xf32>
    %393 = vector.broadcast %392 : vector<1x512xf32> to vector<4x512xf32>
    %394 = arith.mulf %391, %393 : vector<4x512xf32>
    %c100_179 = arith.constant 100 : index
    %c0_180 = arith.constant 0 : index
    %395 = vector.load %arg9[%c100_179, %c0_180] : memref<108x512xf32, #tpu.memory_space<vmem>>, vector<4x512xf32>
    tpu.vector_store %arg9[%c100_179, %c0_180], %394 {strides = array<i32>} : memref<108x512xf32, #tpu.memory_space<vmem>>, vector<4x512xf32>,
    %396 = vector.extract_strided_slice %216 {offsets = [0, 73], sizes = [4, 439], strides = [1, 1]} : vector<4x512xf32> to vector<4x439xf32>
    %397 = vector.extract_strided_slice %216 {offsets = [0, 0], sizes = [4, 73], strides = [1, 1]} : vector<4x512xf32> to vector<4x73xf32>
    %398 = tpu.concatenate %396, %397 in 1 : vector<4x439xf32>, vector<4x73xf32> -> vector<4x512xf32>
    %c26_181 = arith.constant 26 : index
    %c0_182 = arith.constant 0 : index
    %399 = vector.load %arg6[%c26_181, %c0_182] : memref<27x512xf32, #tpu.memory_space<vmem>>, vector<1x512xf32>
    %400 = vector.broadcast %399 : vector<1x512xf32> to vector<4x512xf32>
    %401 = arith.mulf %398, %400 : vector<4x512xf32>
    %c104_183 = arith.constant 104 : index
    %c0_184 = arith.constant 0 : index
    %402 = vector.load %arg9[%c104_183, %c0_184] : memref<108x512xf32, #tpu.memory_space<vmem>>, vector<4x512xf32>
    tpu.vector_store %arg9[%c104_183, %c0_184], %401 {strides = array<i32>} : memref<108x512xf32, #tpu.memory_space<vmem>>, vector<4x512xf32>,
    %c0_185 = arith.constant 0 : index
    %c0_186 = arith.constant 0 : index
    %403 = vector.load %arg4[%c0_185, %c0_186] : memref<4x108xf32, #tpu.memory_space<vmem>>, vector<4x108xf32>
    %c0_187 = arith.constant 0 : index
    %c0_188 = arith.constant 0 : index
    %404 = vector.load %arg9[%c0_187, %c0_188] : memref<108x512xf32, #tpu.memory_space<vmem>>, vector<108x512xf32>
    %cst_189 = arith.constant dense<0.000000e+00> : vector<4x512xf32>
    %405 = tpu.matmul %403, %404, %cst_189 {dimension_numbers = #tpu.dot_dimension_numbers<[1], [0], [0], [1], [0, 0, 1, 1], [], []>} : vector<4x108xf32>, vector<108x512xf32>, vector<4x512xf32> -> vector<4x512xf32>
    %c0_190 = arith.constant 0 : index
    %c0_191 = arith.constant 0 : index
    %406 = vector.load %arg5[%c0_190, %c0_191] : memref<4x1xf32, #tpu.memory_space<vmem>>, vector<4x1xf32>
    %407 = vector.broadcast %406 : vector<4x1xf32> to vector<4x512xf32>
    %408 = arith.addf %405, %407 : vector<4x512xf32>
    %cst_192 = arith.constant dense<0.000000e+00> : vector<4xf32>
    %409 = vector.multi_reduction <add>, %408, %cst_192 [1] : vector<4x512xf32> to vector<4xf32>
    %410 = vector.shape_cast %409 : vector<4xf32> to vector<4x1xf32>
    %cst_193 = arith.constant 5.120000e+02 : f32
    %411 = vector.broadcast %cst_193 : f32 to vector<4x1xf32>
    %412 = arith.divf %410, %411 : vector<4x1xf32>
    %413 = vector.broadcast %412 : vector<4x1xf32> to vector<4x512xf32>
    %414 = arith.subf %408, %413 : vector<4x512xf32>
    %415 = arith.mulf %414, %414 : vector<4x512xf32>
    %cst_194 = arith.constant dense<0.000000e+00> : vector<4xf32>
    %416 = vector.multi_reduction <add>, %415, %cst_194 [1] : vector<4x512xf32> to vector<4xf32>
    %417 = vector.shape_cast %416 : vector<4xf32> to vector<4x1xf32>
    %cst_195 = arith.constant 5.120000e+02 : f32
    %418 = vector.broadcast %cst_195 : f32 to vector<4x1xf32>
    %419 = arith.divf %417, %418 : vector<4x1xf32>
    %420 = vector.broadcast %412 : vector<4x1xf32> to vector<4x512xf32>
    %421 = arith.subf %408, %420 : vector<4x512xf32>
    %cst_196 = arith.constant 9.99999974E-6 : f32
    %422 = vector.broadcast %cst_196 : f32 to vector<4x1xf32>
    %423 = arith.addf %419, %422 : vector<4x1xf32>
    %424 = math.rsqrt %423 : vector<4x1xf32>
    %425 = vector.broadcast %424 : vector<4x1xf32> to vector<4x512xf32>
    %426 = arith.mulf %421, %425 : vector<4x512xf32>
    %cst_197 = arith.constant 0.000000e+00 : f32
    %427 = vector.broadcast %cst_197 : f32 to vector<4x512xf32>
    %428 = arith.cmpf oge, %426, %427 : vector<4x512xf32>
    %cst_198 = arith.constant 2.000000e-01 : f32
    %429 = vector.broadcast %cst_198 : f32 to vector<4x512xf32>
    %430 = arith.mulf %429, %426 : vector<4x512xf32>
    %431 = arith.select %428, %426, %430 : vector<4x512xi1>, vector<4x512xf32>
    %c0_199 = arith.constant 0 : index
    %c0_200 = arith.constant 0 : index
    %c0_201 = arith.constant 0 : index
    %432 = vector.load %arg7[%c0_199, %c0_200, %c0_201] : memref<1x4x512xf32, #tpu.memory_space<vmem>>, vector<1x4x512xf32>
    %433 = vector.shape_cast %432 : vector<1x4x512xf32> to vector<4x512xf32>
    %434 = vector.shape_cast %431 : vector<4x512xf32> to vector<1x4x512xf32>
    tpu.vector_store %arg7[%c0_199, %c0_200, %c0_201], %434 {strides = array<i32>} : memref<1x4x512xf32, #tpu.memory_space<vmem>>, vector<1x4x512xf32>,
    return
  }
  func.func @transform_0(%arg0: i32) -> (i32, i32, i32) {
    %c0_i32 = arith.constant 0 : i32
    %c0_i32_0 = arith.constant 0 : i32
    %c0_i32_1 = arith.constant 0 : i32
    return %arg0, %c0_i32, %c0_i32_0 : i32, i32, i32
  }
  func.func @transform_1(%arg0: i32) -> (i32, i32) {
    %c0_i32 = arith.constant 0 : i32
    %c0_i32_0 = arith.constant 0 : i32
    %c0_i32_1 = arith.constant 0 : i32
    return %c0_i32, %c0_i32_0 : i32, i32
  }
  func.func @transform_2(%arg0: i32) -> (i32, i32) {
    %c0_i32 = arith.constant 0 : i32
    %c0_i32_0 = arith.constant 0 : i32
    %c0_i32_1 = arith.constant 0 : i32
    return %c0_i32, %c0_i32_0 : i32, i32
  }
  func.func @transform_3(%arg0: i32) -> (i32, i32) {
    %c0_i32 = arith.constant 0 : i32
    %c0_i32_0 = arith.constant 0 : i32
    %c0_i32_1 = arith.constant 0 : i32
    return %c0_i32, %c0_i32_0 : i32, i32
  }
  func.func @transform_4(%arg0: i32) -> (i32, i32) {
    %c0_i32 = arith.constant 0 : i32
    %c0_i32_0 = arith.constant 0 : i32
    %c0_i32_1 = arith.constant 0 : i32
    return %c0_i32, %c0_i32_0 : i32, i32
  }
  func.func @transform_5(%arg0: i32) -> (i32, i32) {
    %c0_i32 = arith.constant 0 : i32
    %c0_i32_0 = arith.constant 0 : i32
    %c0_i32_1 = arith.constant 0 : i32
    return %c0_i32, %c0_i32_0 : i32, i32
  }
  func.func @transform_6(%arg0: i32) -> (i32, i32, i32) {
    %c0_i32 = arith.constant 0 : i32
    %c0_i32_0 = arith.constant 0 : i32
    %c0_i32_1 = arith.constant 0 : i32
    return %arg0, %c0_i32, %c0_i32_0 : i32, i32, i32
  }
}

</mosaic_0001>

<llo_original>
// kernel: res_block_instance_forward.1
$region0: #{res_block_instance_forward.1}
  #allocation0 [shape = 'u32[]', space=smem, size = 0x4, offset = 0x4, fixed_abs, tag = 'smem constant byte address 0x4 - core index']
  #allocation1 [shape = 'u32[72,128]{1,0:T(1,128)}', space=vmem, size = 0x9000, scoped, tag = 'internal scratch']
  #allocation2 [shape = 'f32[108,512]{1,0:T(8,128)}', space=vmem, size = 0x38000, scoped, tag = 'scratch operand']
  #allocation3 [shape = 'f32[108,512]{1,0:T(8,128)}', space=vmem, size = 0x38000, scoped, tag = 'scratch operand']
  %s0 = inlined_call_operand.vmem [shape: f32[2,4,512], index: 0, kind: input, shape index: {}]
  %s1 = inlined_call_operand.vmem [shape: f32[4,108], index: 1, kind: input, shape index: {}]
  %s2 = inlined_call_operand.vmem [shape: f32[4,1], index: 2, kind: input, shape index: {}]
  %s3 = inlined_call_operand.vmem [shape: f32[4,108], index: 3, kind: input, shape index: {}]
  %s4 = inlined_call_operand.vmem [shape: f32[4,1], index: 4, kind: input, shape index: {}]
  %s5 = inlined_call_operand.vmem [shape: f32[27,512], index: 5, kind: input, shape index: {}]
  %s6 = inlined_call_operand.vmem [shape: f32[2,4,512], index: 6, kind: output, shape index: {}]
  %s7 = sld [smem:[#allocation0]]
  $region57: #{res_block_instance_forward.1} parent=0
    _
  %s9 = ssub.s32 1, %s7
  %s10 = scalar_select 0, %s9, %s7
  loop: start=0, step=1, limit=4
  $region2: #{res_block_instance_forward.1} parent=0 // loop_pre_header
    _
  $region3: #{res_block_instance_forward.1} parent=0 // loop_header
    %s12 = sphi 0, %s16
    %p13 = scmp.ge.s32.totalorder %s12, 4
    %s22 = sphi 0, %s24
    %s25 = sphi 0, %s22
    %s26 = sphi 0, %s25
    %s42 = sphi 0, %s26
    %s46 = sphi 0, %s46
    %s48 = sphi 0, %s46
    %s49 = sphi 0, %s48
    %s63 = sphi 0, %s49
    %s67 = sphi 0, %s67
    %s69 = sphi 0, %s67
    %s70 = sphi 0, %s69
    %s84 = sphi 0, %s70
    %s88 = sphi 0, %s88
    %s90 = sphi 0, %s88
    %s91 = sphi 0, %s90
    %s105 = sphi 0, %s91
    %s109 = sphi 0, %s109
    %s111 = sphi 0, %s109
    %s112 = sphi 0, %s111
    %s126 = sphi 0, %s112
    %s130 = sphi 0, %s130
    %s132 = sphi 0, %s130
    %s133 = sphi 0, %s132
    %s147 = sphi 0, %s133
    %s153 = sphi 0, %s155
    %s156 = sphi 0, %s153
    %s157 = sphi 0, %s156
    %s173 = sphi 0, %s157
  $region4: #{res_block_instance_forward.1} parent=0 // loop_header_branch
    %15 = sbr.rel (%p13) target = $region8
  $region5: #{res_block_instance_forward.1} parent=0 // loop_body
    %s17 = ssub.s32 %s12, 1
    %s18 = ssub.s32 %s12, 2
    %s19 = sadd.s32 %s12, 1
    %s20 = ssub.s32 %s12, %s19
    %p21 = scmp.eq.s32.totalorder %s20, 0
    %s23 = sadd.s32 %s22, 1
    %s24 = scalar_select %p21, %s22, %s23
    %p27 = pneg %p21
    %p28 = scmp.eq.s32.totalorder %s12, 1
    %p29 = por %p27, %p28
    %p30 = scmp.ne.s32.totalorder %s22, %s25
    %p31 = scmp.eq.s32.totalorder %s12, 0
    %p32 = por %p30, %p31
    %p33 = scmp.ne.s32.totalorder %s22, %s25
    %p34 = scmp.eq.s32.totalorder %s17, 1
    %p35 = por %p33, %p34
    %p36 = scmp.ne.s32.totalorder %s25, %s26
    %p37 = scmp.eq.s32.totalorder %s17, 0
    %p38 = por %p36, %p37
    %p39 = scmp.ne.s32.totalorder %s25, %s26
    %p40 = scmp.eq.s32.totalorder %s18, 1
    %p41 = por %p39, %p40
    %p43 = scmp.ne.s32.totalorder %s26, %s42
    %p44 = scmp.eq.s32.totalorder %s18, 0
    %p45 = por %p43, %p44
    %s47 = sadd.s32 %s46, 1
    %p50 = scmp.eq.s32.totalorder %s12, 1
    %p51 = scmp.ne.s32.totalorder %s46, %s48
    %p52 = scmp.eq.s32.totalorder %s12, 0
    %p53 = por %p51, %p52
    %p54 = scmp.ne.s32.totalorder %s46, %s48
    %p55 = scmp.eq.s32.totalorder %s17, 1
    %p56 = por %p54, %p55
    %p57 = scmp.ne.s32.totalorder %s48, %s49
    %p58 = scmp.eq.s32.totalorder %s17, 0
    %p59 = por %p57, %p58
    %p60 = scmp.ne.s32.totalorder %s48, %s49
    %p61 = scmp.eq.s32.totalorder %s18, 1
    %p62 = por %p60, %p61
    %p64 = scmp.ne.s32.totalorder %s49, %s63
    %p65 = scmp.eq.s32.totalorder %s18, 0
    %p66 = por %p64, %p65
    %s68 = sadd.s32 %s67, 1
    %p71 = scmp.eq.s32.totalorder %s12, 1
    %p72 = scmp.ne.s32.totalorder %s67, %s69
    %p73 = scmp.eq.s32.totalorder %s12, 0
    %p74 = por %p72, %p73
    %p75 = scmp.ne.s32.totalorder %s67, %s69
    %p76 = scmp.eq.s32.totalorder %s17, 1
    %p77 = por %p75, %p76
    %p78 = scmp.ne.s32.totalorder %s69, %s70
    %p79 = scmp.eq.s32.totalorder %s17, 0
    %p80 = por %p78, %p79
    %p81 = scmp.ne.s32.totalorder %s69, %s70
    %p82 = scmp.eq.s32.totalorder %s18, 1
    %p83 = por %p81, %p82
    %p85 = scmp.ne.s32.totalorder %s70, %s84
    %p86 = scmp.eq.s32.totalorder %s18, 0
    %p87 = por %p85, %p86
    %s89 = sadd.s32 %s88, 1
    %p92 = scmp.eq.s32.totalorder %s12, 1
    %p93 = scmp.ne.s32.totalorder %s88, %s90
    %p94 = scmp.eq.s32.totalorder %s12, 0
    %p95 = por %p93, %p94
    %p96 = scmp.ne.s32.totalorder %s88, %s90
    %p97 = scmp.eq.s32.totalorder %s17, 1
    %p98 = por %p96, %p97
    %p99 = scmp.ne.s32.totalorder %s90, %s91
    %p100 = scmp.eq.s32.totalorder %s17, 0
    %p101 = por %p99, %p100
    %p102 = scmp.ne.s32.totalorder %s90, %s91
    %p103 = scmp.eq.s32.totalorder %s18, 1
    %p104 = por %p102, %p103
    %p106 = scmp.ne.s32.totalorder %s91, %s105
    %p107 = scmp.eq.s32.totalorder %s18, 0
    %p108 = por %p106, %p107
    %s110 = sadd.s32 %s109, 1
    %p113 = scmp.eq.s32.totalorder %s12, 1
    %p114 = scmp.ne.s32.totalorder %s109, %s111
    %p115 = scmp.eq.s32.totalorder %s12, 0
    %p116 = por %p114, %p115
    %p117 = scmp.ne.s32.totalorder %s109, %s111
    %p118 = scmp.eq.s32.totalorder %s17, 1
    %p119 = por %p117, %p118
    %p120 = scmp.ne.s32.totalorder %s111, %s112
    %p121 = scmp.eq.s32.totalorder %s17, 0
    %p122 = por %p120, %p121
    %p123 = scmp.ne.s32.totalorder %s111, %s112
    %p124 = scmp.eq.s32.totalorder %s18, 1
    %p125 = por %p123, %p124
    %p127 = scmp.ne.s32.totalorder %s112, %s126
    %p128 = scmp.eq.s32.totalorder %s18, 0
    %p129 = por %p127, %p128
    %s131 = sadd.s32 %s130, 1
    %p134 = scmp.eq.s32.totalorder %s12, 1
    %p135 = scmp.ne.s32.totalorder %s130, %s132
    %p136 = scmp.eq.s32.totalorder %s12, 0
    %p137 = por %p135, %p136
    %p138 = scmp.ne.s32.totalorder %s130, %s132
    %p139 = scmp.eq.s32.totalorder %s17, 1
    %p140 = por %p138, %p139
    %p141 = scmp.ne.s32.totalorder %s132, %s133
    %p142 = scmp.eq.s32.totalorder %s17, 0
    %p143 = por %p141, %p142
    %p144 = scmp.ne.s32.totalorder %s132, %s133
    %p145 = scmp.eq.s32.totalorder %s18, 1
    %p146 = por %p144, %p145
    %p148 = scmp.ne.s32.totalorder %s133, %s147
    %p149 = scmp.eq.s32.totalorder %s18, 0
    %p150 = por %p148, %p149
    %s151 = ssub.s32 %s12, %s19
    %p152 = scmp.eq.s32.totalorder %s151, 0
    %s154 = sadd.s32 %s153, 1
    %s155 = scalar_select %p152, %s153, %s154
    %p158 = pneg %p152
    %p159 = scmp.eq.s32.totalorder %s12, 1
    %p160 = por %p158, %p159
    %p161 = scmp.ne.s32.totalorder %s153, %s156
    %p162 = scmp.eq.s32.totalorder %s12, 0
    %p163 = por %p161, %p162
    %p164 = scmp.ne.s32.totalorder %s153, %s156
    %p165 = scmp.eq.s32.totalorder %s17, 1
    %p166 = por %p164, %p165
    %p167 = scmp.ne.s32.totalorder %s156, %s157
    %p168 = scmp.eq.s32.totalorder %s17, 0
    %p169 = por %p167, %p168
    %p170 = scmp.ne.s32.totalorder %s156, %s157
    %p171 = scmp.eq.s32.totalorder %s18, 1
    %p172 = por %p170, %p171
    %p174 = scmp.ne.s32.totalorder %s157, %s173
    %p175 = scmp.eq.s32.totalorder %s18, 0
    %p176 = por %p174, %p175
    %p177 = scmp.le.s32.totalorder 1, %s12
    %p178 = scmp.lt.s32.totalorder %s12, 3
    %p179 = pnand %p177, %p178
    %p180 = pneg %p179
    // Predicated region
    $region9: #{res_block_instance_forward.1} parent=5 // pred_check
      _
    $region10: #{res_block_instance_forward.1} parent=5 // pred_check_branch
      %182 = sbr.rel (%p179) target = $region12
    $region11: #{res_block_instance_forward.1} parent=5 // pred_region
      %s183 = ssub.s32 %s12, 1
      // Predicated region
      $region13: #{res_block_instance_forward.1} parent=11 // pred_check
        %p184 = pneg %p59
      $region14: #{res_block_instance_forward.1} parent=11 // pred_check_branch
        %186 = sbr.rel (%p184) target = $region16
      $region15: #{res_block_instance_forward.1} parent=11 // pred_region
        _
      $region16: #{res_block_instance_forward.1} parent=11 // pred_fallthru
        _
      // Predicated region
      $region17: #{res_block_instance_forward.1} parent=11 // pred_check
        %p187 = pneg %p80
      $region18: #{res_block_instance_forward.1} parent=11 // pred_check_branch
        %189 = sbr.rel (%p187) target = $region20
      $region19: #{res_block_instance_forward.1} parent=11 // pred_region
        _
      $region20: #{res_block_instance_forward.1} parent=11 // pred_fallthru
        _
      // Predicated region
      $region21: #{res_block_instance_forward.1} parent=11 // pred_check
        %p190 = pneg %p101
      $region22: #{res_block_instance_forward.1} parent=11 // pred_check_branch
        %192 = sbr.rel (%p190) target = $region24
      $region23: #{res_block_instance_forward.1} parent=11 // pred_region
        _
      $region24: #{res_block_instance_forward.1} parent=11 // pred_fallthru
        _
      // Predicated region
      $region25: #{res_block_instance_forward.1} parent=11 // pred_check
        %p193 = pneg %p122
      $region26: #{res_block_instance_forward.1} parent=11 // pred_check_branch
        %195 = sbr.rel (%p193) target = $region28
      $region27: #{res_block_instance_forward.1} parent=11 // pred_region
        _
      $region28: #{res_block_instance_forward.1} parent=11 // pred_fallthru
        _
      // Predicated region
      $region29: #{res_block_instance_forward.1} parent=11 // pred_check
        %p196 = pneg %p143
      $region30: #{res_block_instance_forward.1} parent=11 // pred_check_branch
        %198 = sbr.rel (%p196) target = $region32
      $region31: #{res_block_instance_forward.1} parent=11 // pred_region
        _
      $region32: #{res_block_instance_forward.1} parent=11 // pred_fallthru
        _
    $region12: #{res_block_instance_forward.1} parent=5 // pred_fallthru
      _
    %p199 = scmp.lt.s32.totalorder %s12, 2
    // Predicated region
    $region33: #{res_block_instance_forward.1} parent=5 // pred_check
      %p200 = pneg %p199
    $region34: #{res_block_instance_forward.1} parent=5 // pred_check_branch
      %202 = sbr.rel (%p200) target = $region36
    $region35: #{res_block_instance_forward.1} parent=5 // pred_region
      // Predicated region
      $region37: #{res_block_instance_forward.1} parent=35 // pred_check
        %p203 = pneg %p32
      $region38: #{res_block_instance_forward.1} parent=35 // pred_check_branch
        %205 = sbr.rel (%p203) target = $region40
      $region39: #{res_block_instance_forward.1} parent=35 // pred_region
        %p206 = scmp.lt.s32.totalorder %s12, 1
        %s207 = scalar_select %p206, %s12, 1
        %s208 = smul.addr %s207, 4
        %s209 = smul.addr %s208, 4
        %s210 = scalar_lea.vmem %s0, %s209
      $region40: #{res_block_instance_forward.1} parent=35 // pred_fallthru
        _
    $region36: #{res_block_instance_forward.1} parent=5 // pred_fallthru
      _
    %p211 = scmp.le.s32.totalorder 1, %s12
    %p212 = scmp.lt.s32.totalorder %s12, 3
    %p213 = pnand %p211, %p212
    %p214 = pneg %p213
    // Predicated region
    $region41: #{res_block_instance_forward.1} parent=5 // pred_check
      _
    $region42: #{res_block_instance_forward.1} parent=5 // pred_check_branch
      %216 = sbr.rel (%p213) target = $region44
    $region43: #{res_block_instance_forward.1} parent=5 // pred_region
      %s217 = ssub.s32 %s12, 1
      %p218 = scmp.lt.s32.totalorder %s17, 1
      %s219 = scalar_select %p218, %s17, 1
      %s220 = smul.addr %s219, 4
      %s221 = smul.addr %s220, 4
      %s222 = scalar_lea.vmem %s0, %s221
      %p223 = pneg %p38
      %p224 = pneg %p35
      %p225 = pneg %p59
      %p226 = pneg %p56
      %p227 = pneg %p80
      %p228 = pneg %p77
      %p229 = pneg %p101
      %p230 = pneg %p98
      %p231 = pneg %p122
      %p232 = pneg %p119
      %p233 = pneg %p143
      %p234 = pneg %p140
      %p235 = pneg %p169
      %p236 = pneg %p166
      %p237 = scmp.lt.s32.totalorder %s17, 1
      %s238 = scalar_select %p237, %s17, 1
      %s239 = smul.addr %s238, 4
      %s240 = smul.addr %s239, 4
      %s241 = scalar_lea.vmem %s6, %s240
      %p242 = scmp.lt.s32.totalorder %s17, 1
      %s243 = scalar_select %p242, %s17, 1
      %s244 = smul.addr %s243, 4
      %s245 = smul.addr %s244, 4
      %s246 = scalar_lea.vmem %s0, %s245
      %p247 = scmp.lt.s32.totalorder %s17, 1
      %s248 = scalar_select %p247, %s17, 1
      %s249 = smul.addr %s248, 4
      %s250 = smul.addr %s249, 4
      %s251 = scalar_lea.vmem %s6, %s250
      %v252 = vld [vmem:[%s246] sm:$0xff]
      %v253 = vld [vmem:[%s246 + $0x8] sm:$0xff]
      %255 = vst [vmem:[#allocation1] ss:$2 sm:$0xff] %v253
      %v256 = vld.sshfl [vmem:[#allocation1 + $0x8] sm:$0xff pattern:$0x75316420]
      %257 = vrot.lane.b32.xlu0 %v256, 73
      %v258 = vpop.permute.xlu0 %257
      %261 = vst [vmem:[#allocation1] ss:$2 sm:$0xff] %v252
      %s262 = scalar_lea.vmem [#allocation1], 16
      %263 = vst [vmem:[%s262] ss:$2 sm:$0xff] %v253
      %v264 = vld.sshfl [vmem:[#allocation1] sm:$0xff pattern:$0x75316420]
      %v265 = vld.sshfl [vmem:[#allocation1 + $0x8] sm:$0xff pattern:$0x75316420]
      %v266 = vld.sshfl [vmem:[#allocation1 + $0x10] sm:$0xff pattern:$0x75316420]
      %v267 = vld.sshfl [vmem:[#allocation1 + $0x18] sm:$0xff pattern:$0x75316420]
      %268 = vrot.lane.b32.xlu0 %v264, 73
      %v269 = vpop.permute.xlu0 %268
      %270 = vrot.lane.b32.xlu0 %v265, 73
      %v271 = vpop.permute.xlu0 %270
      %272 = vrot.lane.b32.xlu0 %v266, 73
      %v273 = vpop.permute.xlu0 %272
      %274 = vrot.lane.b32.xlu0 %v267, 73
      %v275 = vpop.permute.xlu0 %274
      %vm276 = vcmask 596992
      %v277 = vsel %vm276, %v269, %v271
      %v278 = vsel %vm276, %v271, %v273
      %v279 = vsel %vm276, %v273, %v275
      %v284 = vsel %vm276, %v258, %v269
      %v285 = vld [vmem:[%s5] ss:$8 sm:$0xf]
      %v287 = vperm.slane %v285, 0
      %v288 = vperm.slane %v285, 1
      %v289 = vperm.slane %v285, 2
      %v290 = vperm.slane %v285, 3
      %v295 = vmul.f32 %v284, %v287
      %v296 = vmul.f32 %v277, %v288
      %v297 = vmul.f32 %v278, %v289
      %v298 = vmul.f32 %v279, %v290
      %299 = vst [vmem:[#allocation2] sm:$0xf] %v295
      %300 = vst [vmem:[#allocation2 + $0x8] sm:$0xf] %v296
      %301 = vst [vmem:[#allocation2 + $0x10] sm:$0xf] %v297
      %302 = vst [vmem:[#allocation2 + $0x18] sm:$0xf] %v298
      %303 = vst [vmem:[#allocation1] ss:$2 sm:$0xff] %v253
      %v304 = vld.sshfl [vmem:[#allocation1 + $0x8] sm:$0xff pattern:$0x75316420]
      %305 = vrot.lane.b32.xlu0 %v304, 72
      %v306 = vpop.permute.xlu0 %305
      %308 = vst [vmem:[#allocation1] ss:$2 sm:$0xff] %v252
      %s309 = scalar_lea.vmem [#allocation1], 16
      %310 = vst [vmem:[%s309] ss:$2 sm:$0xff] %v253
      %v311 = vld.sshfl [vmem:[#allocation1] sm:$0xff pattern:$0x75316420]
      %v312 = vld.sshfl [vmem:[#allocation1 + $0x8] sm:$0xff pattern:$0x75316420]
      %v313 = vld.sshfl [vmem:[#allocation1 + $0x10] sm:$0xff pattern:$0x75316420]
      %v314 = vld.sshfl [vmem:[#allocation1 + $0x18] sm:$0xff pattern:$0x75316420]
      %315 = vrot.lane.b32.xlu0 %v311, 72
      %v316 = vpop.permute.xlu0 %315
      %317 = vrot.lane.b32.xlu0 %v312, 72
      %v318 = vpop.permute.xlu0 %317
      %319 = vrot.lane.b32.xlu0 %v313, 72
      %v320 = vpop.permute.xlu0 %319
      %321 = vrot.lane.b32.xlu0 %v314, 72
      %v322 = vpop.permute.xlu0 %321
      %vm323 = vcmask 588800
      %v324 = vsel %vm323, %v316, %v318
      %v325 = vsel %vm323, %v318, %v320
      %v326 = vsel %vm323, %v320, %v322
      %v331 = vsel %vm323, %v306, %v316
      %s332 = scalar_lea.vmem %s5, 1
      %v333 = vld [vmem:[%s332] ss:$8 sm:$0xf]
      %v335 = vperm.slane %v333, 0
      %v336 = vperm.slane %v333, 1
      %v337 = vperm.slane %v333, 2
      %v338 = vperm.slane %v333, 3
      %v343 = vmul.f32 %v331, %v335
      %v344 = vmul.f32 %v324, %v336
      %v345 = vmul.f32 %v325, %v337
      %v346 = vmul.f32 %v326, %v338
      %v351 = vrot.slane %v343, 4
      %v352 = vrot.slane %v344, 4
      %v353 = vrot.slane %v345, 4
      %v354 = vrot.slane %v346, 4
      %359 = vst [vmem:[#allocation2] sm:$0xf0] %v351
      %360 = vst [vmem:[#allocation2 + $0x8] sm:$0xf0] %v352
      %361 = vst [vmem:[#allocation2 + $0x10] sm:$0xf0] %v353
      %362 = vst [vmem:[#allocation2 + $0x18] sm:$0xf0] %v354
      %363 = vst [vmem:[#allocation1] ss:$2 sm:$0xff] %v253
      %v364 = vld.sshfl [vmem:[#allocation1 + $0x8] sm:$0xff pattern:$0x75316420]
      %365 = vrot.lane.b32.xlu0 %v364, 71
      %v366 = vpop.permute.xlu0 %365
      %368 = vst [vmem:[#allocation1] ss:$2 sm:$0xff] %v252
      %s369 = scalar_lea.vmem [#allocation1], 16
      %370 = vst [vmem:[%s369] ss:$2 sm:$0xff] %v253
      %v371 = vld.sshfl [vmem:[#allocation1] sm:$0xff pattern:$0x75316420]
      %v372 = vld.sshfl [vmem:[#allocation1 + $0x8] sm:$0xff pattern:$0x75316420]
      %v373 = vld.sshfl [vmem:[#allocation1 + $0x10] sm:$0xff pattern:$0x75316420]
      %v374 = vld.sshfl [vmem:[#allocation1 + $0x18] sm:$0xff pattern:$0x75316420]
      %375 = vrot.lane.b32.xlu0 %v371, 71
      %v376 = vpop.permute.xlu0 %375
      %377 = vrot.lane.b32.xlu0 %v372, 71
      %v378 = vpop.permute.xlu0 %377
      %379 = vrot.lane.b32.xlu0 %v373, 71
      %v380 = vpop.permute.xlu0 %379
      %381 = vrot.lane.b32.xlu0 %v374, 71
      %v382 = vpop.permute.xlu0 %381
      %vm383 = vcmask 580608
      %v384 = vsel %vm383, %v376, %v378
      %v385 = vsel %vm383, %v378, %v380
      %v386 = vsel %vm383, %v380, %v382
      %v391 = vsel %vm383, %v366, %v376
      %s392 = scalar_lea.vmem %s5, 2
      %v393 = vld [vmem:[%s392] ss:$8 sm:$0xf]
      %v395 = vperm.slane %v393, 0
      %v396 = vperm.slane %v393, 1
      %v397 = vperm.slane %v393, 2
      %v398 = vperm.slane %v393, 3
      %v403 = vmul.f32 %v391, %v395
      %v404 = vmul.f32 %v384, %v396
      %v405 = vmul.f32 %v385, %v397
      %v406 = vmul.f32 %v386, %v398
      %407 = vst [vmem:[#allocation2 + $0x20] sm:$0xf] %v403
      %408 = vst [vmem:[#allocation2 + $0x28] sm:$0xf] %v404
      %409 = vst [vmem:[#allocation2 + $0x30] sm:$0xf] %v405
      %410 = vst [vmem:[#allocation2 + $0x38] sm:$0xf] %v406
      %411 = vst [vmem:[#allocation1] ss:$2 sm:$0xff] %v253
      %v412 = vld.sshfl [vmem:[#allocation1 + $0x8] sm:$0xff pattern:$0x75316420]
      %413 = vrot.lane.b32.xlu0 %v412, 65
      %v414 = vpop.permute.xlu0 %413
      %416 = vst [vmem:[#allocation1] ss:$2 sm:$0xff] %v252
      %s417 = scalar_lea.vmem [#allocation1], 16
      %418 = vst [vmem:[%s417] ss:$2 sm:$0xff] %v253
      %v419 = vld.sshfl [vmem:[#allocation1] sm:$0xff pattern:$0x75316420]
      %v420 = vld.sshfl [vmem:[#allocation1 + $0x8] sm:$0xff pattern:$0x75316420]
      %v421 = vld.sshfl [vmem:[#allocation1 + $0x10] sm:$0xff pattern:$0x75316420]
      %v422 = vld.sshfl [vmem:[#allocation1 + $0x18] sm:$0xff pattern:$0x75316420]
      %423 = vrot.lane.b32.xlu0 %v419, 65
      %v424 = vpop.permute.xlu0 %423
      %425 = vrot.lane.b32.xlu0 %v420, 65
      %v426 = vpop.permute.xlu0 %425
      %427 = vrot.lane.b32.xlu0 %v421, 65
      %v428 = vpop.permute.xlu0 %427
      %429 = vrot.lane.b32.xlu0 %v422, 65
      %v430 = vpop.permute.xlu0 %429
      %vm431 = vcmask 531456
      %v432 = vsel %vm431, %v424, %v426
      %v433 = vsel %vm431, %v426, %v428
      %v434 = vsel %vm431, %v428, %v430
      %v439 = vsel %vm431, %v414, %v424
      %s440 = scalar_lea.vmem %s5, 3
      %v441 = vld [vmem:[%s440] ss:$8 sm:$0xf]
      %v443 = vperm.slane %v441, 0
      %v444 = vperm.slane %v441, 1
      %v445 = vperm.slane %v441, 2
      %v446 = vperm.slane %v441, 3
      %v451 = vmul.f32 %v439, %v443
      %v452 = vmul.f32 %v432, %v444
      %v453 = vmul.f32 %v433, %v445
      %v454 = vmul.f32 %v434, %v446
      %v459 = vrot.slane %v451, 4
      %v460 = vrot.slane %v452, 4
      %v461 = vrot.slane %v453, 4
      %v462 = vrot.slane %v454, 4
      %467 = vst [vmem:[#allocation2 + $0x20] sm:$0xf0] %v459
      %468 = vst [vmem:[#allocation2 + $0x28] sm:$0xf0] %v460
      %469 = vst [vmem:[#allocation2 + $0x30] sm:$0xf0] %v461
      %470 = vst [vmem:[#allocation2 + $0x38] sm:$0xf0] %v462
      %471 = vst [vmem:[#allocation1] ss:$2 sm:$0xff] %v253
      %v472 = vld.sshfl [vmem:[#allocation1 + $0x8] sm:$0xff pattern:$0x75316420]
      %473 = vrot.lane.b32.xlu0 %v472, 64
      %v474 = vpop.permute.xlu0 %473
      %476 = vst [vmem:[#allocation1] ss:$2 sm:$0xff] %v252
      %s477 = scalar_lea.vmem [#allocation1], 16
      %478 = vst [vmem:[%s477] ss:$2 sm:$0xff] %v253
      %v479 = vld.sshfl [vmem:[#allocation1] sm:$0xff pattern:$0x75316420]
      %v480 = vld.sshfl [vmem:[#allocation1 + $0x8] sm:$0xff pattern:$0x75316420]
      %v481 = vld.sshfl [vmem:[#allocation1 + $0x10] sm:$0xff pattern:$0x75316420]
      %v482 = vld.sshfl [vmem:[#allocation1 + $0x18] sm:$0xff pattern:$0x75316420]
      %483 = vrot.lane.b32.xlu0 %v479, 64
      %v484 = vpop.permute.xlu0 %483
      %485 = vrot.lane.b32.xlu0 %v480, 64
      %v486 = vpop.permute.xlu0 %485
      %487 = vrot.lane.b32.xlu0 %v481, 64
      %v488 = vpop.permute.xlu0 %487
      %489 = vrot.lane.b32.xlu0 %v482, 64
      %v490 = vpop.permute.xlu0 %489
      %vm491 = vcmask 523264
      %v492 = vsel %vm491, %v484, %v486
      %v493 = vsel %vm491, %v486, %v488
      %v494 = vsel %vm491, %v488, %v490
      %v499 = vsel %vm491, %v474, %v484
      %s500 = scalar_lea.vmem %s5, 4
      %v501 = vld [vmem:[%s500] ss:$8 sm:$0xf]
      %v503 = vperm.slane %v501, 0
      %v504 = vperm.slane %v501, 1
      %v505 = vperm.slane %v501, 2
      %v506 = vperm.slane %v501, 3
      %v511 = vmul.f32 %v499, %v503
      %v512 = vmul.f32 %v492, %v504
      %v513 = vmul.f32 %v493, %v505
      %v514 = vmul.f32 %v494, %v506
      %515 = vst [vmem:[#allocation2 + $0x40] sm:$0xf] %v511
      %516 = vst [vmem:[#allocation2 + $0x48] sm:$0xf] %v512
      %517 = vst [vmem:[#allocation2 + $0x50] sm:$0xf] %v513
      %518 = vst [vmem:[#allocation2 + $0x58] sm:$0xf] %v514
      %519 = vst [vmem:[#allocation1] ss:$2 sm:$0xff] %v253
      %v520 = vld.sshfl [vmem:[#allocation1 + $0x8] sm:$0xff pattern:$0x75316420]
      %521 = vrot.lane.b32.xlu0 %v520, 63
      %v522 = vpop.permute.xlu0 %521
      %524 = vst [vmem:[#allocation1] ss:$2 sm:$0xff] %v252
      %s525 = scalar_lea.vmem [#allocation1], 16
      %526 = vst [vmem:[%s525] ss:$2 sm:$0xff] %v253
      %v527 = vld.sshfl [vmem:[#allocation1] sm:$0xff pattern:$0x75316420]
      %v528 = vld.sshfl [vmem:[#allocation1 + $0x8] sm:$0xff pattern:$0x75316420]
      %v529 = vld.sshfl [vmem:[#allocation1 + $0x10] sm:$0xff pattern:$0x75316420]
      %v530 = vld.sshfl [vmem:[#allocation1 + $0x18] sm:$0xff pattern:$0x75316420]
      %531 = vrot.lane.b32.xlu0 %v527, 63
      %v532 = vpop.permute.xlu0 %531
      %533 = vrot.lane.b32.xlu0 %v528, 63
      %v534 = vpop.permute.xlu0 %533
      %535 = vrot.lane.b32.xlu0 %v529, 63
      %v536 = vpop.permute.xlu0 %535
      %537 = vrot.lane.b32.xlu0 %v530, 63
      %v538 = vpop.permute.xlu0 %537
      %vm539 = vcmask 515072
      %v540 = vsel %vm539, %v532, %v534
      %v541 = vsel %vm539, %v534, %v536
      %v542 = vsel %vm539, %v536, %v538
      %v547 = vsel %vm539, %v522, %v532
      %s548 = scalar_lea.vmem %s5, 5
      %v549 = vld [vmem:[%s548] ss:$8 sm:$0xf]
      %v551 = vperm.slane %v549, 0
      %v552 = vperm.slane %v549, 1
      %v553 = vperm.slane %v549, 2
      %v554 = vperm.slane %v549, 3
      %v559 = vmul.f32 %v547, %v551
      %v560 = vmul.f32 %v540, %v552
      %v561 = vmul.f32 %v541, %v553
      %v562 = vmul.f32 %v542, %v554
      %v567 = vrot.slane %v559, 4
      %v568 = vrot.slane %v560, 4
      %v569 = vrot.slane %v561, 4
      %v570 = vrot.slane %v562, 4
      %575 = vst [vmem:[#allocation2 + $0x40] sm:$0xf0] %v567
      %576 = vst [vmem:[#allocation2 + $0x48] sm:$0xf0] %v568
      %577 = vst [vmem:[#allocation2 + $0x50] sm:$0xf0] %v569
      %578 = vst [vmem:[#allocation2 + $0x58] sm:$0xf0] %v570
      %579 = vst [vmem:[#allocation1] ss:$2 sm:$0xff] %v253
      %v580 = vld.sshfl [vmem:[#allocation1 + $0x8] sm:$0xff pattern:$0x75316420]
      %581 = vrot.lane.b32.xlu0 %v580, 57
      %v582 = vpop.permute.xlu0 %581
      %584 = vst [vmem:[#allocation1] ss:$2 sm:$0xff] %v252
      %s585 = scalar_lea.vmem [#allocation1], 16
      %586 = vst [vmem:[%s585] ss:$2 sm:$0xff] %v253
      %v587 = vld.sshfl [vmem:[#allocation1] sm:$0xff pattern:$0x75316420]
      %v588 = vld.sshfl [vmem:[#allocation1 + $0x8] sm:$0xff pattern:$0x75316420]
      %v589 = vld.sshfl [vmem:[#allocation1 + $0x10] sm:$0xff pattern:$0x75316420]
      %v590 = vld.sshfl [vmem:[#allocation1 + $0x18] sm:$0xff pattern:$0x75316420]
      %591 = vrot.lane.b32.xlu0 %v587, 57
      %v592 = vpop.permute.xlu0 %591
      %593 = vrot.lane.b32.xlu0 %v588, 57
      %v594 = vpop.permute.xlu0 %593
      %595 = vrot.lane.b32.xlu0 %v589, 57
      %v596 = vpop.permute.xlu0 %595
      %597 = vrot.lane.b32.xlu0 %v590, 57
      %v598 = vpop.permute.xlu0 %597
      %vm599 = vcmask 465920
      %v600 = vsel %vm599, %v592, %v594
      %v601 = vsel %vm599, %v594, %v596
      %v602 = vsel %vm599, %v596, %v598
      %v607 = vsel %vm599, %v582, %v592
      %s608 = scalar_lea.vmem %s5, 6
      %v609 = vld [vmem:[%s608] ss:$8 sm:$0xf]
      %v611 = vperm.slane %v609, 0
      %v612 = vperm.slane %v609, 1
      %v613 = vperm.slane %v609, 2
      %v614 = vperm.slane %v609, 3
      %v619 = vmul.f32 %v607, %v611
      %v620 = vmul.f32 %v600, %v612
      %v621 = vmul.f32 %v601, %v613
      %v622 = vmul.f32 %v602, %v614
      %623 = vst [vmem:[#allocation2 + $0x60] sm:$0xf] %v619
      %624 = vst [vmem:[#allocation2 + $0x68] sm:$0xf] %v620
      %625 = vst [vmem:[#allocation2 + $0x70] sm:$0xf] %v621
      %626 = vst [vmem:[#allocation2 + $0x78] sm:$0xf] %v622
      %627 = vst [vmem:[#allocation1] ss:$2 sm:$0xff] %v253
      %v628 = vld.sshfl [vmem:[#allocation1 + $0x8] sm:$0xff pattern:$0x75316420]
      %629 = vrot.lane.b32.xlu0 %v628, 56
      %v630 = vpop.permute.xlu0 %629
      %632 = vst [vmem:[#allocation1] ss:$2 sm:$0xff] %v252
      %s633 = scalar_lea.vmem [#allocation1], 16
      %634 = vst [vmem:[%s633] ss:$2 sm:$0xff] %v253
      %v635 = vld.sshfl [vmem:[#allocation1] sm:$0xff pattern:$0x75316420]
      %v636 = vld.sshfl [vmem:[#allocation1 + $0x8] sm:$0xff pattern:$0x75316420]
      %v637 = vld.sshfl [vmem:[#allocation1 + $0x10] sm:$0xff pattern:$0x75316420]
      %v638 = vld.sshfl [vmem:[#allocation1 + $0x18] sm:$0xff pattern:$0x75316420]
      %639 = vrot.lane.b32.xlu0 %v635, 56
      %v640 = vpop.permute.xlu0 %639
      %641 = vrot.lane.b32.xlu0 %v636, 56
      %v642 = vpop.permute.xlu0 %641
      %643 = vrot.lane.b32.xlu0 %v637, 56
      %v644 = vpop.permute.xlu0 %643
      %645 = vrot.lane.b32.xlu0 %v638, 56
      %v646 = vpop.permute.xlu0 %645
      %vm647 = vcmask 457728
      %v648 = vsel %vm647, %v640, %v642
      %v649 = vsel %vm647, %v642, %v644
      %v650 = vsel %vm647, %v644, %v646
      %v655 = vsel %vm647, %v630, %v640
      %s656 = scalar_lea.vmem %s5, 7
      %v657 = vld [vmem:[%s656] ss:$8 sm:$0xf]
      %v659 = vperm.slane %v657, 0
      %v660 = vperm.slane %v657, 1
      %v661 = vperm.slane %v657, 2
      %v662 = vperm.slane %v657, 3
      %v667 = vmul.f32 %v655, %v659
      %v668 = vmul.f32 %v648, %v660
      %v669 = vmul.f32 %v649, %v661
      %v670 = vmul.f32 %v650, %v662
      %v675 = vrot.slane %v667, 4
      %v676 = vrot.slane %v668, 4
      %v677 = vrot.slane %v669, 4
      %v678 = vrot.slane %v670, 4
      %683 = vst [vmem:[#allocation2 + $0x60] sm:$0xf0] %v675
      %684 = vst [vmem:[#allocation2 + $0x68] sm:$0xf0] %v676
      %685 = vst [vmem:[#allocation2 + $0x70] sm:$0xf0] %v677
      %686 = vst [vmem:[#allocation2 + $0x78] sm:$0xf0] %v678
      %687 = vst [vmem:[#allocation1] ss:$2 sm:$0xff] %v253
      %v688 = vld.sshfl [vmem:[#allocation1 + $0x8] sm:$0xff pattern:$0x75316420]
      %689 = vrot.lane.b32.xlu0 %v688, 55
      %v690 = vpop.permute.xlu0 %689
      %692 = vst [vmem:[#allocation1] ss:$2 sm:$0xff] %v252
      %s693 = scalar_lea.vmem [#allocation1], 16
      %694 = vst [vmem:[%s693] ss:$2 sm:$0xff] %v253
      %v695 = vld.sshfl [vmem:[#allocation1] sm:$0xff pattern:$0x75316420]
      %v696 = vld.sshfl [vmem:[#allocation1 + $0x8] sm:$0xff pattern:$0x75316420]
      %v697 = vld.sshfl [vmem:[#allocation1 + $0x10] sm:$0xff pattern:$0x75316420]
      %v698 = vld.sshfl [vmem:[#allocation1 + $0x18] sm:$0xff pattern:$0x75316420]
      %699 = vrot.lane.b32.xlu0 %v695, 55
      %v700 = vpop.permute.xlu0 %699
      %701 = vrot.lane.b32.xlu0 %v696, 55
      %v702 = vpop.permute.xlu0 %701
      %703 = vrot.lane.b32.xlu0 %v697, 55
      %v704 = vpop.permute.xlu0 %703
      %705 = vrot.lane.b32.xlu0 %v698, 55
      %v706 = vpop.permute.xlu0 %705
      %vm707 = vcmask 449536
      %v708 = vsel %vm707, %v700, %v702
      %v709 = vsel %vm707, %v702, %v704
      %v710 = vsel %vm707, %v704, %v706
      %v715 = vsel %vm707, %v690, %v700
      %s716 = scalar_lea.vmem %s5, 32
      %v717 = vld [vmem:[%s716] ss:$8 sm:$0xf]
      %v719 = vperm.slane %v717, 0
      %v720 = vperm.slane %v717, 1
      %v721 = vperm.slane %v717, 2
      %v722 = vperm.slane %v717, 3
      %v727 = vmul.f32 %v715, %v719
      %v728 = vmul.f32 %v708, %v720
      %v729 = vmul.f32 %v709, %v721
      %v730 = vmul.f32 %v710, %v722
      %731 = vst [vmem:[#allocation2 + $0x80] sm:$0xf] %v727
      %732 = vst [vmem:[#allocation2 + $0x88] sm:$0xf] %v728
      %733 = vst [vmem:[#allocation2 + $0x90] sm:$0xf] %v729
      %734 = vst [vmem:[#allocation2 + $0x98] sm:$0xf] %v730
      %735 = vst [vmem:[#allocation1] ss:$2 sm:$0xff] %v253
      %v736 = vld.sshfl [vmem:[#allocation1 + $0x8] sm:$0xff pattern:$0x75316420]
      %737 = vrot.lane.b32.xlu0 %v736, 9
      %v738 = vpop.permute.xlu0 %737
      %740 = vst [vmem:[#allocation1] ss:$2 sm:$0xff] %v252
      %s741 = scalar_lea.vmem [#allocation1], 16
      %742 = vst [vmem:[%s741] ss:$2 sm:$0xff] %v253
      %v743 = vld.sshfl [vmem:[#allocation1] sm:$0xff pattern:$0x75316420]
      %v744 = vld.sshfl [vmem:[#allocation1 + $0x8] sm:$0xff pattern:$0x75316420]
      %v745 = vld.sshfl [vmem:[#allocation1 + $0x10] sm:$0xff pattern:$0x75316420]
      %v746 = vld.sshfl [vmem:[#allocation1 + $0x18] sm:$0xff pattern:$0x75316420]
      %747 = vrot.lane.b32.xlu0 %v743, 9
      %v748 = vpop.permute.xlu0 %747
      %749 = vrot.lane.b32.xlu0 %v744, 9
      %v750 = vpop.permute.xlu0 %749
      %751 = vrot.lane.b32.xlu0 %v745, 9
      %v752 = vpop.permute.xlu0 %751
      %753 = vrot.lane.b32.xlu0 %v746, 9
      %v754 = vpop.permute.xlu0 %753
      %vm755 = vcmask 72704
      %v756 = vsel %vm755, %v748, %v750
      %v757 = vsel %vm755, %v750, %v752
      %v758 = vsel %vm755, %v752, %v754
      %v763 = vsel %vm755, %v738, %v748
      %s764 = scalar_lea.vmem %s5, 33
      %v765 = vld [vmem:[%s764] ss:$8 sm:$0xf]
      %v767 = vperm.slane %v765, 0
      %v768 = vperm.slane %v765, 1
      %v769 = vperm.slane %v765, 2
      %v770 = vperm.slane %v765, 3
      %v775 = vmul.f32 %v763, %v767
      %v776 = vmul.f32 %v756, %v768
      %v777 = vmul.f32 %v757, %v769
      %v778 = vmul.f32 %v758, %v770
      %v783 = vrot.slane %v775, 4
      %v784 = vrot.slane %v776, 4
      %v785 = vrot.slane %v777, 4
      %v786 = vrot.slane %v778, 4
      %791 = vst [vmem:[#allocation2 + $0x80] sm:$0xf0] %v783
      %792 = vst [vmem:[#allocation2 + $0x88] sm:$0xf0] %v784
      %793 = vst [vmem:[#allocation2 + $0x90] sm:$0xf0] %v785
      %794 = vst [vmem:[#allocation2 + $0x98] sm:$0xf0] %v786
      %795 = vst [vmem:[#allocation1] ss:$2 sm:$0xff] %v253
      %v796 = vld.sshfl [vmem:[#allocation1 + $0x8] sm:$0xff pattern:$0x75316420]
      %797 = vrot.lane.b32.xlu0 %v796, 8
      %v798 = vpop.permute.xlu0 %797
      %800 = vst [vmem:[#allocation1] ss:$2 sm:$0xff] %v252
      %s801 = scalar_lea.vmem [#allocation1], 16
      %802 = vst [vmem:[%s801] ss:$2 sm:$0xff] %v253
      %v803 = vld.sshfl [vmem:[#allocation1] sm:$0xff pattern:$0x75316420]
      %v804 = vld.sshfl [vmem:[#allocation1 + $0x8] sm:$0xff pattern:$0x75316420]
      %v805 = vld.sshfl [vmem:[#allocation1 + $0x10] sm:$0xff pattern:$0x75316420]
      %v806 = vld.sshfl [vmem:[#allocation1 + $0x18] sm:$0xff pattern:$0x75316420]
      %807 = vrot.lane.b32.xlu0 %v803, 8
      %v808 = vpop.permute.xlu0 %807
      %809 = vrot.lane.b32.xlu0 %v804, 8
      %v810 = vpop.permute.xlu0 %809
      %811 = vrot.lane.b32.xlu0 %v805, 8
      %v812 = vpop.permute.xlu0 %811
      %813 = vrot.lane.b32.xlu0 %v806, 8
      %v814 = vpop.permute.xlu0 %813
      %vm815 = vcmask 64512
      %v816 = vsel %vm815, %v808, %v810
      %v817 = vsel %vm815, %v810, %v812
      %v818 = vsel %vm815, %v812, %v814
      %v823 = vsel %vm815, %v798, %v808
      %s824 = scalar_lea.vmem %s5, 34
      %v825 = vld [vmem:[%s824] ss:$8 sm:$0xf]
      %v827 = vperm.slane %v825, 0
      %v828 = vperm.slane %v825, 1
      %v829 = vperm.slane %v825, 2
      %v830 = vperm.slane %v825, 3
      %v835 = vmul.f32 %v823, %v827
      %v836 = vmul.f32 %v816, %v828
      %v837 = vmul.f32 %v817, %v829
      %v838 = vmul.f32 %v818, %v830
      %839 = vst [vmem:[#allocation2 + $0xa0] sm:$0xf] %v835
      %840 = vst [vmem:[#allocation2 + $0xa8] sm:$0xf] %v836
      %841 = vst [vmem:[#allocation2 + $0xb0] sm:$0xf] %v837
      %842 = vst [vmem:[#allocation2 + $0xb8] sm:$0xf] %v838
      %843 = vst [vmem:[#allocation1] ss:$2 sm:$0xff] %v253
      %v844 = vld.sshfl [vmem:[#allocation1 + $0x8] sm:$0xff pattern:$0x75316420]
      %845 = vrot.lane.b32.xlu0 %v844, 7
      %v846 = vpop.permute.xlu0 %845
      %848 = vst [vmem:[#allocation1] ss:$2 sm:$0xff] %v252
      %s849 = scalar_lea.vmem [#allocation1], 16
      %850 = vst [vmem:[%s849] ss:$2 sm:$0xff] %v253
      %v851 = vld.sshfl [vmem:[#allocation1] sm:$0xff pattern:$0x75316420]
      %v852 = vld.sshfl [vmem:[#allocation1 + $0x8] sm:$0xff pattern:$0x75316420]
      %v853 = vld.sshfl [vmem:[#allocation1 + $0x10] sm:$0xff pattern:$0x75316420]
      %v854 = vld.sshfl [vmem:[#allocation1 + $0x18] sm:$0xff pattern:$0x75316420]
      %855 = vrot.lane.b32.xlu0 %v851, 7
      %v856 = vpop.permute.xlu0 %855
      %857 = vrot.lane.b32.xlu0 %v852, 7
      %v858 = vpop.permute.xlu0 %857
      %859 = vrot.lane.b32.xlu0 %v853, 7
      %v860 = vpop.permute.xlu0 %859
      %861 = vrot.lane.b32.xlu0 %v854, 7
      %v862 = vpop.permute.xlu0 %861
      %vm863 = vcmask 56320
      %v864 = vsel %vm863, %v856, %v858
      %v865 = vsel %vm863, %v858, %v860
      %v866 = vsel %vm863, %v860, %v862
      %v871 = vsel %vm863, %v846, %v856
      %s872 = scalar_lea.vmem %s5, 35
      %v873 = vld [vmem:[%s872] ss:$8 sm:$0xf]
      %v875 = vperm.slane %v873, 0
      %v876 = vperm.slane %v873, 1
      %v877 = vperm.slane %v873, 2
      %v878 = vperm.slane %v873, 3
      %v883 = vmul.f32 %v871, %v875
      %v884 = vmul.f32 %v864, %v876
      %v885 = vmul.f32 %v865, %v877
      %v886 = vmul.f32 %v866, %v878
      %v891 = vrot.slane %v883, 4
      %v892 = vrot.slane %v884, 4
      %v893 = vrot.slane %v885, 4
      %v894 = vrot.slane %v886, 4
      %899 = vst [vmem:[#allocation2 + $0xa0] sm:$0xf0] %v891
      %900 = vst [vmem:[#allocation2 + $0xa8] sm:$0xf0] %v892
      %901 = vst [vmem:[#allocation2 + $0xb0] sm:$0xf0] %v893
      %902 = vst [vmem:[#allocation2 + $0xb8] sm:$0xf0] %v894
      %903 = vst [vmem:[#allocation1] ss:$2 sm:$0xff] %v253
      %v904 = vld.sshfl [vmem:[#allocation1 + $0x8] sm:$0xff pattern:$0x75316420]
      %905 = vrot.lane.b32.xlu0 %v904, 1
      %v906 = vpop.permute.xlu0 %905
      %908 = vst [vmem:[#allocation1] ss:$2 sm:$0xff] %v252
      %s909 = scalar_lea.vmem [#allocation1], 16
      %910 = vst [vmem:[%s909] ss:$2 sm:$0xff] %v253
      %v911 = vld.sshfl [vmem:[#allocation1] sm:$0xff pattern:$0x75316420]
      %v912 = vld.sshfl [vmem:[#allocation1 + $0x8] sm:$0xff pattern:$0x75316420]
      %v913 = vld.sshfl [vmem:[#allocation1 + $0x10] sm:$0xff pattern:$0x75316420]
      %v914 = vld.sshfl [vmem:[#allocation1 + $0x18] sm:$0xff pattern:$0x75316420]
      %915 = vrot.lane.b32.xlu0 %v911, 1
      %v916 = vpop.permute.xlu0 %915
      %917 = vrot.lane.b32.xlu0 %v912, 1
      %v918 = vpop.permute.xlu0 %917
      %919 = vrot.lane.b32.xlu0 %v913, 1
      %v920 = vpop.permute.xlu0 %919
      %921 = vrot.lane.b32.xlu0 %v914, 1
      %v922 = vpop.permute.xlu0 %921
      %vm923 = vcmask 7168
      %v924 = vsel %vm923, %v916, %v918
      %v925 = vsel %vm923, %v918, %v920
      %v926 = vsel %vm923, %v920, %v922
      %v931 = vsel %vm923, %v906, %v916
      %s932 = scalar_lea.vmem %s5, 36
      %v933 = vld [vmem:[%s932] ss:$8 sm:$0xf]
      %v935 = vperm.slane %v933, 0
      %v936 = vperm.slane %v933, 1
      %v937 = vperm.slane %v933, 2
      %v938 = vperm.slane %v933, 3
      %v943 = vmul.f32 %v931, %v935
      %v944 = vmul.f32 %v924, %v936
      %v945 = vmul.f32 %v925, %v937
      %v946 = vmul.f32 %v926, %v938
      %947 = vst [vmem:[#allocation2 + $0xc0] sm:$0xf] %v943
      %948 = vst [vmem:[#allocation2 + $0xc8] sm:$0xf] %v944
      %949 = vst [vmem:[#allocation2 + $0xd0] sm:$0xf] %v945
      %950 = vst [vmem:[#allocation2 + $0xd8] sm:$0xf] %v946
      %s951 = scalar_lea.vmem %s5, 37
      %v952 = vld [vmem:[%s951] ss:$8 sm:$0xf]
      %v954 = vperm.slane %v952, 0
      %v955 = vperm.slane %v952, 1
      %v956 = vperm.slane %v952, 2
      %v957 = vperm.slane %v952, 3
      %v958 = vrot.slane %v955, 4
      %v959 = vrot.slane %v957, 4
      %vm960 = vcmask 1043456
      %v961 = vsel %vm960, %v954, %v958
      %v962 = vsel %vm960, %v956, %v959
      %v965 = vmul.f32 %v252, %v961
      %v966 = vmul.f32 %v253, %v962
      %s969 = scalar_lea.vmem [#allocation1], 1
      %970 = vst [vmem:[%s969] ss:$2 sm:$0xff] %v965
      %s971 = scalar_lea.vmem [#allocation1], 17
      %972 = vst [vmem:[%s971] ss:$2 sm:$0xff] %v966
      %v973 = vld.sshfl [vmem:[#allocation1] sm:$0xff pattern:$0x75316420]
      %v974 = vld.sshfl [vmem:[#allocation1 + $0x8] sm:$0xff pattern:$0x75316420]
      %v975 = vld.sshfl [vmem:[#allocation1 + $0x10] sm:$0xff pattern:$0x75316420]
      %v976 = vld.sshfl [vmem:[#allocation1 + $0x18] sm:$0xff pattern:$0x75316420]
      %981 = vst [vmem:[#allocation2 + $0xc0] sm:$0xf0] %v973
      %982 = vst [vmem:[#allocation2 + $0xc8] sm:$0xf0] %v974
      %983 = vst [vmem:[#allocation2 + $0xd0] sm:$0xf0] %v975
      %984 = vst [vmem:[#allocation2 + $0xd8] sm:$0xf0] %v976
      %985 = vst [vmem:[#allocation1] ss:$2 sm:$0xff] %v252
      %s986 = scalar_lea.vmem [#allocation1], 16
      %987 = vst [vmem:[%s986] ss:$2 sm:$0xff] %v253
      %v988 = vld.sshfl [vmem:[#allocation1] sm:$0xff pattern:$0x75316420]
      %v989 = vld.sshfl [vmem:[#allocation1 + $0x8] sm:$0xff pattern:$0x75316420]
      %v990 = vld.sshfl [vmem:[#allocation1 + $0x10] sm:$0xff pattern:$0x75316420]
      %v991 = vld.sshfl [vmem:[#allocation1 + $0x18] sm:$0xff pattern:$0x75316420]
      %992 = vrot.lane.b32.xlu0 %v988, 127
      %v993 = vpop.permute.xlu0 %992
      %994 = vrot.lane.b32.xlu0 %v989, 127
      %v995 = vpop.permute.xlu0 %994
      %996 = vrot.lane.b32.xlu0 %v990, 127
      %v997 = vpop.permute.xlu0 %996
      %998 = vrot.lane.b32.xlu0 %v991, 127
      %v999 = vpop.permute.xlu0 %998
      %vm1000 = vcmask 1039360
      %v1001 = vsel %vm1000, %v993, %v995
      %v1002 = vsel %vm1000, %v995, %v997
      %v1003 = vsel %vm1000, %v997, %v999
      %1008 = vst [vmem:[#allocation1] ss:$2 sm:$0xff] %v252
      %v1009 = vld.sshfl [vmem:[#allocation1] sm:$0xff pattern:$0x75316420]
      %1010 = vrot.lane.b32.xlu0 %v1009, 127
      %v1011 = vpop.permute.xlu0 %1010
      %v1013 = vsel %vm1000, %v999, %v1011
      %s1014 = scalar_lea.vmem %s5, 38
      %v1015 = vld [vmem:[%s1014] ss:$8 sm:$0xf]
      %v1017 = vperm.slane %v1015, 0
      %v1018 = vperm.slane %v1015, 1
      %v1019 = vperm.slane %v1015, 2
      %v1020 = vperm.slane %v1015, 3
      %v1025 = vmul.f32 %v1001, %v1017
      %v1026 = vmul.f32 %v1002, %v1018
      %v1027 = vmul.f32 %v1003, %v1019
      %v1028 = vmul.f32 %v1013, %v1020
      %1029 = vst [vmem:[#allocation2 + $0xe0] sm:$0xf] %v1025
      %1030 = vst [vmem:[#allocation2 + $0xe8] sm:$0xf] %v1026
      %1031 = vst [vmem:[#allocation2 + $0xf0] sm:$0xf] %v1027
      %1032 = vst [vmem:[#allocation2 + $0xf8] sm:$0xf] %v1028
      %1033 = vst [vmem:[#allocation1] ss:$2 sm:$0xff] %v252
      %s1034 = scalar_lea.vmem [#allocation1], 16
      %1035 = vst [vmem:[%s1034] ss:$2 sm:$0xff] %v253
      %v1036 = vld.sshfl [vmem:[#allocation1] sm:$0xff pattern:$0x75316420]
      %v1037 = vld.sshfl [vmem:[#allocation1 + $0x8] sm:$0xff pattern:$0x75316420]
      %v1038 = vld.sshfl [vmem:[#allocation1 + $0x10] sm:$0xff pattern:$0x75316420]
      %v1039 = vld.sshfl [vmem:[#allocation1 + $0x18] sm:$0xff pattern:$0x75316420]
      %1040 = vrot.lane.b32.xlu0 %v1036, 121
      %v1041 = vpop.permute.xlu0 %1040
      %1042 = vrot.lane.b32.xlu0 %v1037, 121
      %v1043 = vpop.permute.xlu0 %1042
      %1044 = vrot.lane.b32.xlu0 %v1038, 121
      %v1045 = vpop.permute.xlu0 %1044
      %1046 = vrot.lane.b32.xlu0 %v1039, 121
      %v1047 = vpop.permute.xlu0 %1046
      %vm1048 = vcmask 990208
      %v1049 = vsel %vm1048, %v1041, %v1043
      %v1050 = vsel %vm1048, %v1043, %v1045
      %v1051 = vsel %vm1048, %v1045, %v1047
      %1056 = vst [vmem:[#allocation1] ss:$2 sm:$0xff] %v252
      %v1057 = vld.sshfl [vmem:[#allocation1] sm:$0xff pattern:$0x75316420]
      %1058 = vrot.lane.b32.xlu0 %v1057, 121
      %v1059 = vpop.permute.xlu0 %1058
      %v1061 = vsel %vm1048, %v1047, %v1059
      %s1062 = scalar_lea.vmem %s5, 39
      %v1063 = vld [vmem:[%s1062] ss:$8 sm:$0xf]
      %v1065 = vperm.slane %v1063, 0
      %v1066 = vperm.slane %v1063, 1
      %v1067 = vperm.slane %v1063, 2
      %v1068 = vperm.slane %v1063, 3
      %v1073 = vmul.f32 %v1049, %v1065
      %v1074 = vmul.f32 %v1050, %v1066
      %v1075 = vmul.f32 %v1051, %v1067
      %v1076 = vmul.f32 %v1061, %v1068
      %v1081 = vrot.slane %v1073, 4
      %v1082 = vrot.slane %v1074, 4
      %v1083 = vrot.slane %v1075, 4
      %v1084 = vrot.slane %v1076, 4
      %1089 = vst [vmem:[#allocation2 + $0xe0] sm:$0xf0] %v1081
      %1090 = vst [vmem:[#allocation2 + $0xe8] sm:$0xf0] %v1082
      %1091 = vst [vmem:[#allocation2 + $0xf0] sm:$0xf0] %v1083
      %1092 = vst [vmem:[#allocation2 + $0xf8] sm:$0xf0] %v1084
      %1093 = vst [vmem:[#allocation1] ss:$2 sm:$0xff] %v252
      %s1094 = scalar_lea.vmem [#allocation1], 16
      %1095 = vst [vmem:[%s1094] ss:$2 sm:$0xff] %v253
      %v1096 = vld.sshfl [vmem:[#allocation1] sm:$0xff pattern:$0x75316420]
      %v1097 = vld.sshfl [vmem:[#allocation1 + $0x8] sm:$0xff pattern:$0x75316420]
      %v1098 = vld.sshfl [vmem:[#allocation1 + $0x10] sm:$0xff pattern:$0x75316420]
      %v1099 = vld.sshfl [vmem:[#allocation1 + $0x18] sm:$0xff pattern:$0x75316420]
      %1100 = vrot.lane.b32.xlu0 %v1096, 120
      %v1101 = vpop.permute.xlu0 %1100
      %1102 = vrot.lane.b32.xlu0 %v1097, 120
      %v1103 = vpop.permute.xlu0 %1102
      %1104 = vrot.lane.b32.xlu0 %v1098, 120
      %v1105 = vpop.permute.xlu0 %1104
      %1106 = vrot.lane.b32.xlu0 %v1099, 120
      %v1107 = vpop.permute.xlu0 %1106
      %vm1108 = vcmask 982016
      %v1109 = vsel %vm1108, %v1101, %v1103
      %v1110 = vsel %vm1108, %v1103, %v1105
      %v1111 = vsel %vm1108, %v1105, %v1107
      %1116 = vst [vmem:[#allocation1] ss:$2 sm:$0xff] %v252
      %v1117 = vld.sshfl [vmem:[#allocation1] sm:$0xff pattern:$0x75316420]
      %1118 = vrot.lane.b32.xlu0 %v1117, 120
      %v1119 = vpop.permute.xlu0 %1118
      %v1121 = vsel %vm1108, %v1107, %v1119
      %s1122 = scalar_lea.vmem %s5, 64
      %v1123 = vld [vmem:[%s1122] ss:$8 sm:$0xf]
      %v1125 = vperm.slane %v1123, 0
      %v1126 = vperm.slane %v1123, 1
      %v1127 = vperm.slane %v1123, 2
      %v1128 = vperm.slane %v1123, 3
      %v1133 = vmul.f32 %v1109, %v1125
      %v1134 = vmul.f32 %v1110, %v1126
      %v1135 = vmul.f32 %v1111, %v1127
      %v1136 = vmul.f32 %v1121, %v1128
      %1137 = vst [vmem:[#allocation2 + $0x100] sm:$0xf] %v1133
      %1138 = vst [vmem:[#allocation2 + $0x108] sm:$0xf] %v1134
      %1139 = vst [vmem:[#allocation2 + $0x110] sm:$0xf] %v1135
      %1140 = vst [vmem:[#allocation2 + $0x118] sm:$0xf] %v1136
      %1141 = vst [vmem:[#allocation1] ss:$2 sm:$0xff] %v252
      %s1142 = scalar_lea.vmem [#allocation1], 16
      %1143 = vst [vmem:[%s1142] ss:$2 sm:$0xff] %v253
      %v1144 = vld.sshfl [vmem:[#allocation1] sm:$0xff pattern:$0x75316420]
      %v1145 = vld.sshfl [vmem:[#allocation1 + $0x8] sm:$0xff pattern:$0x75316420]
      %v1146 = vld.sshfl [vmem:[#allocation1 + $0x10] sm:$0xff pattern:$0x75316420]
      %v1147 = vld.sshfl [vmem:[#allocation1 + $0x18] sm:$0xff pattern:$0x75316420]
      %1148 = vrot.lane.b32.xlu0 %v1144, 119
      %v1149 = vpop.permute.xlu0 %1148
      %1150 = vrot.lane.b32.xlu0 %v1145, 119
      %v1151 = vpop.permute.xlu0 %1150
      %1152 = vrot.lane.b32.xlu0 %v1146, 119
      %v1153 = vpop.permute.xlu0 %1152
      %1154 = vrot.lane.b32.xlu0 %v1147, 119
      %v1155 = vpop.permute.xlu0 %1154
      %vm1156 = vcmask 973824
      %v1157 = vsel %vm1156, %v1149, %v1151
      %v1158 = vsel %vm1156, %v1151, %v1153
      %v1159 = vsel %vm1156, %v1153, %v1155
      %1164 = vst [vmem:[#allocation1] ss:$2 sm:$0xff] %v252
      %v1165 = vld.sshfl [vmem:[#allocation1] sm:$0xff pattern:$0x75316420]
      %1166 = vrot.lane.b32.xlu0 %v1165, 119
      %v1167 = vpop.permute.xlu0 %1166
      %v1169 = vsel %vm1156, %v1155, %v1167
      %s1170 = scalar_lea.vmem %s5, 65
      %v1171 = vld [vmem:[%s1170] ss:$8 sm:$0xf]
      %v1173 = vperm.slane %v1171, 0
      %v1174 = vperm.slane %v1171, 1
      %v1175 = vperm.slane %v1171, 2
      %v1176 = vperm.slane %v1171, 3
      %v1181 = vmul.f32 %v1157, %v1173
      %v1182 = vmul.f32 %v1158, %v1174
      %v1183 = vmul.f32 %v1159, %v1175
      %v1184 = vmul.f32 %v1169, %v1176
      %v1189 = vrot.slane %v1181, 4
      %v1190 = vrot.slane %v1182, 4
      %v1191 = vrot.slane %v1183, 4
      %v1192 = vrot.slane %v1184, 4
      %1197 = vst [vmem:[#allocation2 + $0x100] sm:$0xf0] %v1189
      %1198 = vst [vmem:[#allocation2 + $0x108] sm:$0xf0] %v1190
      %1199 = vst [vmem:[#allocation2 + $0x110] sm:$0xf0] %v1191
      %1200 = vst [vmem:[#allocation2 + $0x118] sm:$0xf0] %v1192
      %1201 = vst [vmem:[#allocation1] ss:$2 sm:$0xff] %v252
      %s1202 = scalar_lea.vmem [#allocation1], 16
      %1203 = vst [vmem:[%s1202] ss:$2 sm:$0xff] %v253
      %v1204 = vld.sshfl [vmem:[#allocation1] sm:$0xff pattern:$0x75316420]
      %v1205 = vld.sshfl [vmem:[#allocation1 + $0x8] sm:$0xff pattern:$0x75316420]
      %v1206 = vld.sshfl [vmem:[#allocation1 + $0x10] sm:$0xff pattern:$0x75316420]
      %v1207 = vld.sshfl [vmem:[#allocation1 + $0x18] sm:$0xff pattern:$0x75316420]
      %1208 = vrot.lane.b32.xlu0 %v1204, 73
      %v1209 = vpop.permute.xlu0 %1208
      %1210 = vrot.lane.b32.xlu0 %v1205, 73
      %v1211 = vpop.permute.xlu0 %1210
      %1212 = vrot.lane.b32.xlu0 %v1206, 73
      %v1213 = vpop.permute.xlu0 %1212
      %1214 = vrot.lane.b32.xlu0 %v1207, 73
      %v1215 = vpop.permute.xlu0 %1214
      %v1216 = vsel %vm276, %v1209, %v1211
      %v1217 = vsel %vm276, %v1211, %v1213
      %v1218 = vsel %vm276, %v1213, %v1215
      %1223 = vst [vmem:[#allocation1] ss:$2 sm:$0xff] %v252
      %v1224 = vld.sshfl [vmem:[#allocation1] sm:$0xff pattern:$0x75316420]
      %1225 = vrot.lane.b32.xlu0 %v1224, 73
      %v1226 = vpop.permute.xlu0 %1225
      %v1228 = vsel %vm276, %v1215, %v1226
      %s1229 = scalar_lea.vmem %s5, 66
      %v1230 = vld [vmem:[%s1229] ss:$8 sm:$0xf]
      %v1232 = vperm.slane %v1230, 0
      %v1233 = vperm.slane %v1230, 1
      %v1234 = vperm.slane %v1230, 2
      %v1235 = vperm.slane %v1230, 3
      %v1240 = vmul.f32 %v1216, %v1232
      %v1241 = vmul.f32 %v1217, %v1233
      %v1242 = vmul.f32 %v1218, %v1234
      %v1243 = vmul.f32 %v1228, %v1235
      %1244 = vst [vmem:[#allocation2 + $0x120] sm:$0xf] %v1240
      %1245 = vst [vmem:[#allocation2 + $0x128] sm:$0xf] %v1241
      %1246 = vst [vmem:[#allocation2 + $0x130] sm:$0xf] %v1242
      %1247 = vst [vmem:[#allocation2 + $0x138] sm:$0xf] %v1243
      %1248 = vst [vmem:[#allocation1] ss:$2 sm:$0xff] %v252
      %s1249 = scalar_lea.vmem [#allocation1], 16
      %1250 = vst [vmem:[%s1249] ss:$2 sm:$0xff] %v253
      %v1251 = vld.sshfl [vmem:[#allocation1] sm:$0xff pattern:$0x75316420]
      %v1252 = vld.sshfl [vmem:[#allocation1 + $0x8] sm:$0xff pattern:$0x75316420]
      %v1253 = vld.sshfl [vmem:[#allocation1 + $0x10] sm:$0xff pattern:$0x75316420]
      %v1254 = vld.sshfl [vmem:[#allocation1 + $0x18] sm:$0xff pattern:$0x75316420]
      %1255 = vrot.lane.b32.xlu0 %v1251, 72
      %v1256 = vpop.permute.xlu0 %1255
      %1257 = vrot.lane.b32.xlu0 %v1252, 72
      %v1258 = vpop.permute.xlu0 %1257
      %1259 = vrot.lane.b32.xlu0 %v1253, 72
      %v1260 = vpop.permute.xlu0 %1259
      %1261 = vrot.lane.b32.xlu0 %v1254, 72
      %v1262 = vpop.permute.xlu0 %1261
      %v1263 = vsel %vm323, %v1256, %v1258
      %v1264 = vsel %vm323, %v1258, %v1260
      %v1265 = vsel %vm323, %v1260, %v1262
      %1270 = vst [vmem:[#allocation1] ss:$2 sm:$0xff] %v252
      %v1271 = vld.sshfl [vmem:[#allocation1] sm:$0xff pattern:$0x75316420]
      %1272 = vrot.lane.b32.xlu0 %v1271, 72
      %v1273 = vpop.permute.xlu0 %1272
      %v1275 = vsel %vm323, %v1262, %v1273
      %s1276 = scalar_lea.vmem %s5, 67
      %v1277 = vld [vmem:[%s1276] ss:$8 sm:$0xf]
      %v1279 = vperm.slane %v1277, 0
      %v1280 = vperm.slane %v1277, 1
      %v1281 = vperm.slane %v1277, 2
      %v1282 = vperm.slane %v1277, 3
      %v1287 = vmul.f32 %v1263, %v1279
      %v1288 = vmul.f32 %v1264, %v1280
      %v1289 = vmul.f32 %v1265, %v1281
      %v1290 = vmul.f32 %v1275, %v1282
      %v1295 = vrot.slane %v1287, 4
      %v1296 = vrot.slane %v1288, 4
      %v1297 = vrot.slane %v1289, 4
      %v1298 = vrot.slane %v1290, 4
      %1303 = vst [vmem:[#allocation2 + $0x120] sm:$0xf0] %v1295
      %1304 = vst [vmem:[#allocation2 + $0x128] sm:$0xf0] %v1296
      %1305 = vst [vmem:[#allocation2 + $0x130] sm:$0xf0] %v1297
      %1306 = vst [vmem:[#allocation2 + $0x138] sm:$0xf0] %v1298
      %1307 = vst [vmem:[#allocation1] ss:$2 sm:$0xff] %v252
      %s1308 = scalar_lea.vmem [#allocation1], 16
      %1309 = vst [vmem:[%s1308] ss:$2 sm:$0xff] %v253
      %v1310 = vld.sshfl [vmem:[#allocation1] sm:$0xff pattern:$0x75316420]
      %v1311 = vld.sshfl [vmem:[#allocation1 + $0x8] sm:$0xff pattern:$0x75316420]
      %v1312 = vld.sshfl [vmem:[#allocation1 + $0x10] sm:$0xff pattern:$0x75316420]
      %v1313 = vld.sshfl [vmem:[#allocation1 + $0x18] sm:$0xff pattern:$0x75316420]
      %1314 = vrot.lane.b32.xlu0 %v1310, 71
      %v1315 = vpop.permute.xlu0 %1314
      %1316 = vrot.lane.b32.xlu0 %v1311, 71
      %v1317 = vpop.permute.xlu0 %1316
      %1318 = vrot.lane.b32.xlu0 %v1312, 71
      %v1319 = vpop.permute.xlu0 %1318
      %1320 = vrot.lane.b32.xlu0 %v1313, 71
      %v1321 = vpop.permute.xlu0 %1320
      %v1322 = vsel %vm383, %v1315, %v1317
      %v1323 = vsel %vm383, %v1317, %v1319
      %v1324 = vsel %vm383, %v1319, %v1321
      %1329 = vst [vmem:[#allocation1] ss:$2 sm:$0xff] %v252
      %v1330 = vld.sshfl [vmem:[#allocation1] sm:$0xff pattern:$0x75316420]
      %1331 = vrot.lane.b32.xlu0 %v1330, 71
      %v1332 = vpop.permute.xlu0 %1331
      %v1334 = vsel %vm383, %v1321, %v1332
      %s1335 = scalar_lea.vmem %s5, 68
      %v1336 = vld [vmem:[%s1335] ss:$8 sm:$0xf]
      %v1338 = vperm.slane %v1336, 0
      %v1339 = vperm.slane %v1336, 1
      %v1340 = vperm.slane %v1336, 2
      %v1341 = vperm.slane %v1336, 3
      %v1346 = vmul.f32 %v1322, %v1338
      %v1347 = vmul.f32 %v1323, %v1339
      %v1348 = vmul.f32 %v1324, %v1340
      %v1349 = vmul.f32 %v1334, %v1341
      %1350 = vst [vmem:[#allocation2 + $0x140] sm:$0xf] %v1346
      %1351 = vst [vmem:[#allocation2 + $0x148] sm:$0xf] %v1347
      %1352 = vst [vmem:[#allocation2 + $0x150] sm:$0xf] %v1348
      %1353 = vst [vmem:[#allocation2 + $0x158] sm:$0xf] %v1349
      %1354 = vst [vmem:[#allocation1] ss:$2 sm:$0xff] %v252
      %s1355 = scalar_lea.vmem [#allocation1], 16
      %1356 = vst [vmem:[%s1355] ss:$2 sm:$0xff] %v253
      %v1357 = vld.sshfl [vmem:[#allocation1] sm:$0xff pattern:$0x75316420]
      %v1358 = vld.sshfl [vmem:[#allocation1 + $0x8] sm:$0xff pattern:$0x75316420]
      %v1359 = vld.sshfl [vmem:[#allocation1 + $0x10] sm:$0xff pattern:$0x75316420]
      %v1360 = vld.sshfl [vmem:[#allocation1 + $0x18] sm:$0xff pattern:$0x75316420]
      %1361 = vrot.lane.b32.xlu0 %v1357, 65
      %v1362 = vpop.permute.xlu0 %1361
      %1363 = vrot.lane.b32.xlu0 %v1358, 65
      %v1364 = vpop.permute.xlu0 %1363
      %1365 = vrot.lane.b32.xlu0 %v1359, 65
      %v1366 = vpop.permute.xlu0 %1365
      %1367 = vrot.lane.b32.xlu0 %v1360, 65
      %v1368 = vpop.permute.xlu0 %1367
      %v1369 = vsel %vm431, %v1362, %v1364
      %v1370 = vsel %vm431, %v1364, %v1366
      %v1371 = vsel %vm431, %v1366, %v1368
      %1376 = vst [vmem:[#allocation1] ss:$2 sm:$0xff] %v252
      %v1377 = vld.sshfl [vmem:[#allocation1] sm:$0xff pattern:$0x75316420]
      %1378 = vrot.lane.b32.xlu0 %v1377, 65
      %v1379 = vpop.permute.xlu0 %1378
      %v1381 = vsel %vm431, %v1368, %v1379
      %s1382 = scalar_lea.vmem %s5, 69
      %v1383 = vld [vmem:[%s1382] ss:$8 sm:$0xf]
      %v1385 = vperm.slane %v1383, 0
      %v1386 = vperm.slane %v1383, 1
      %v1387 = vperm.slane %v1383, 2
      %v1388 = vperm.slane %v1383, 3
      %v1393 = vmul.f32 %v1369, %v1385
      %v1394 = vmul.f32 %v1370, %v1386
      %v1395 = vmul.f32 %v1371, %v1387
      %v1396 = vmul.f32 %v1381, %v1388
      %v1401 = vrot.slane %v1393, 4
      %v1402 = vrot.slane %v1394, 4
      %v1403 = vrot.slane %v1395, 4
      %v1404 = vrot.slane %v1396, 4
      %1409 = vst [vmem:[#allocation2 + $0x140] sm:$0xf0] %v1401
      %1410 = vst [vmem:[#allocation2 + $0x148] sm:$0xf0] %v1402
      %1411 = vst [vmem:[#allocation2 + $0x150] sm:$0xf0] %v1403
      %1412 = vst [vmem:[#allocation2 + $0x158] sm:$0xf0] %v1404
      %1413 = vst [vmem:[#allocation1] ss:$2 sm:$0xff] %v252
      %s1414 = scalar_lea.vmem [#allocation1], 16
      %1415 = vst [vmem:[%s1414] ss:$2 sm:$0xff] %v253
      %v1416 = vld.sshfl [vmem:[#allocation1] sm:$0xff pattern:$0x75316420]
      %v1417 = vld.sshfl [vmem:[#allocation1 + $0x8] sm:$0xff pattern:$0x75316420]
      %v1418 = vld.sshfl [vmem:[#allocation1 + $0x10] sm:$0xff pattern:$0x75316420]
      %v1419 = vld.sshfl [vmem:[#allocation1 + $0x18] sm:$0xff pattern:$0x75316420]
      %1420 = vrot.lane.b32.xlu0 %v1416, 64
      %v1421 = vpop.permute.xlu0 %1420
      %1422 = vrot.lane.b32.xlu0 %v1417, 64
      %v1423 = vpop.permute.xlu0 %1422
      %1424 = vrot.lane.b32.xlu0 %v1418, 64
      %v1425 = vpop.permute.xlu0 %1424
      %1426 = vrot.lane.b32.xlu0 %v1419, 64
      %v1427 = vpop.permute.xlu0 %1426
      %v1428 = vsel %vm491, %v1421, %v1423
      %v1429 = vsel %vm491, %v1423, %v1425
      %v1430 = vsel %vm491, %v1425, %v1427
      %1435 = vst [vmem:[#allocation1] ss:$2 sm:$0xff] %v252
      %v1436 = vld.sshfl [vmem:[#allocation1] sm:$0xff pattern:$0x75316420]
      %1437 = vrot.lane.b32.xlu0 %v1436, 64
      %v1438 = vpop.permute.xlu0 %1437
      %v1440 = vsel %vm491, %v1427, %v1438
      %s1441 = scalar_lea.vmem %s5, 70
      %v1442 = vld [vmem:[%s1441] ss:$8 sm:$0xf]
      %v1444 = vperm.slane %v1442, 0
      %v1445 = vperm.slane %v1442, 1
      %v1446 = vperm.slane %v1442, 2
      %v1447 = vperm.slane %v1442, 3
      %v1452 = vmul.f32 %v1428, %v1444
      %v1453 = vmul.f32 %v1429, %v1445
      %v1454 = vmul.f32 %v1430, %v1446
      %v1455 = vmul.f32 %v1440, %v1447
      %1456 = vst [vmem:[#allocation2 + $0x160] sm:$0xf] %v1452
      %1457 = vst [vmem:[#allocation2 + $0x168] sm:$0xf] %v1453
      %1458 = vst [vmem:[#allocation2 + $0x170] sm:$0xf] %v1454
      %1459 = vst [vmem:[#allocation2 + $0x178] sm:$0xf] %v1455
      %1460 = vst [vmem:[#allocation1] ss:$2 sm:$0xff] %v252
      %s1461 = scalar_lea.vmem [#allocation1], 16
      %1462 = vst [vmem:[%s1461] ss:$2 sm:$0xff] %v253
      %v1463 = vld.sshfl [vmem:[#allocation1] sm:$0xff pattern:$0x75316420]
      %v1464 = vld.sshfl [vmem:[#allocation1 + $0x8] sm:$0xff pattern:$0x75316420]
      %v1465 = vld.sshfl [vmem:[#allocation1 + $0x10] sm:$0xff pattern:$0x75316420]
      %v1466 = vld.sshfl [vmem:[#allocation1 + $0x18] sm:$0xff pattern:$0x75316420]
      %1467 = vrot.lane.b32.xlu0 %v1463, 63
      %v1468 = vpop.permute.xlu0 %1467
      %1469 = vrot.lane.b32.xlu0 %v1464, 63
      %v1470 = vpop.permute.xlu0 %1469
      %1471 = vrot.lane.b32.xlu0 %v1465, 63
      %v1472 = vpop.permute.xlu0 %1471
      %1473 = vrot.lane.b32.xlu0 %v1466, 63
      %v1474 = vpop.permute.xlu0 %1473
      %v1475 = vsel %vm539, %v1468, %v1470
      %v1476 = vsel %vm539, %v1470, %v1472
      %v1477 = vsel %vm539, %v1472, %v1474
      %1482 = vst [vmem:[#allocation1] ss:$2 sm:$0xff] %v252
      %v1483 = vld.sshfl [vmem:[#allocation1] sm:$0xff pattern:$0x75316420]
      %1484 = vrot.lane.b32.xlu0 %v1483, 63
      %v1485 = vpop.permute.xlu0 %1484
      %v1487 = vsel %vm539, %v1474, %v1485
      %s1488 = scalar_lea.vmem %s5, 71
      %v1489 = vld [vmem:[%s1488] ss:$8 sm:$0xf]
      %v1491 = vperm.slane %v1489, 0
      %v1492 = vperm.slane %v1489, 1
      %v1493 = vperm.slane %v1489, 2
      %v1494 = vperm.slane %v1489, 3
      %v1499 = vmul.f32 %v1475, %v1491
      %v1500 = vmul.f32 %v1476, %v1492
      %v1501 = vmul.f32 %v1477, %v1493
      %v1502 = vmul.f32 %v1487, %v1494
      %v1507 = vrot.slane %v1499, 4
      %v1508 = vrot.slane %v1500, 4
      %v1509 = vrot.slane %v1501, 4
      %v1510 = vrot.slane %v1502, 4
      %1515 = vst [vmem:[#allocation2 + $0x160] sm:$0xf0] %v1507
      %1516 = vst [vmem:[#allocation2 + $0x168] sm:$0xf0] %v1508
      %1517 = vst [vmem:[#allocation2 + $0x170] sm:$0xf0] %v1509
      %1518 = vst [vmem:[#allocation2 + $0x178] sm:$0xf0] %v1510
      %1519 = vst [vmem:[#allocation1] ss:$2 sm:$0xff] %v252
      %s1520 = scalar_lea.vmem [#allocation1], 16
      %1521 = vst [vmem:[%s1520] ss:$2 sm:$0xff] %v253
      %v1522 = vld.sshfl [vmem:[#allocation1] sm:$0xff pattern:$0x75316420]
      %v1523 = vld.sshfl [vmem:[#allocation1 + $0x8] sm:$0xff pattern:$0x75316420]
      %v1524 = vld.sshfl [vmem:[#allocation1 + $0x10] sm:$0xff pattern:$0x75316420]
      %v1525 = vld.sshfl [vmem:[#allocation1 + $0x18] sm:$0xff pattern:$0x75316420]
      %1526 = vrot.lane.b32.xlu0 %v1522, 57
      %v1527 = vpop.permute.xlu0 %1526
      %1528 = vrot.lane.b32.xlu0 %v1523, 57
      %v1529 = vpop.permute.xlu0 %1528
      %1530 = vrot.lane.b32.xlu0 %v1524, 57
      %v1531 = vpop.permute.xlu0 %1530
      %1532 = vrot.lane.b32.xlu0 %v1525, 57
      %v1533 = vpop.permute.xlu0 %1532
      %v1534 = vsel %vm599, %v1527, %v1529
      %v1535 = vsel %vm599, %v1529, %v1531
      %v1536 = vsel %vm599, %v1531, %v1533
      %1541 = vst [vmem:[#allocation1] ss:$2 sm:$0xff] %v252
      %v1542 = vld.sshfl [vmem:[#allocation1] sm:$0xff pattern:$0x75316420]
      %1543 = vrot.lane.b32.xlu0 %v1542, 57
      %v1544 = vpop.permute.xlu0 %1543
      %v1546 = vsel %vm599, %v1533, %v1544
      %s1547 = scalar_lea.vmem %s5, 96
      %v1548 = vld [vmem:[%s1547] ss:$8 sm:$0xf]
      %v1550 = vperm.slane %v1548, 0
      %v1551 = vperm.slane %v1548, 1
      %v1552 = vperm.slane %v1548, 2
      %v1553 = vperm.slane %v1548, 3
      %v1558 = vmul.f32 %v1534, %v1550
      %v1559 = vmul.f32 %v1535, %v1551
      %v1560 = vmul.f32 %v1536, %v1552
      %v1561 = vmul.f32 %v1546, %v1553
      %1562 = vst [vmem:[#allocation2 + $0x180] sm:$0xf] %v1558
      %1563 = vst [vmem:[#allocation2 + $0x188] sm:$0xf] %v1559
      %1564 = vst [vmem:[#allocation2 + $0x190] sm:$0xf] %v1560
      %1565 = vst [vmem:[#allocation2 + $0x198] sm:$0xf] %v1561
      %1566 = vst [vmem:[#allocation1] ss:$2 sm:$0xff] %v252
      %s1567 = scalar_lea.vmem [#allocation1], 16
      %1568 = vst [vmem:[%s1567] ss:$2 sm:$0xff] %v253
      %v1569 = vld.sshfl [vmem:[#allocation1] sm:$0xff pattern:$0x75316420]
      %v1570 = vld.sshfl [vmem:[#allocation1 + $0x8] sm:$0xff pattern:$0x75316420]
      %v1571 = vld.sshfl [vmem:[#allocation1 + $0x10] sm:$0xff pattern:$0x75316420]
      %v1572 = vld.sshfl [vmem:[#allocation1 + $0x18] sm:$0xff pattern:$0x75316420]
      %1573 = vrot.lane.b32.xlu0 %v1569, 56
      %v1574 = vpop.permute.xlu0 %1573
      %1575 = vrot.lane.b32.xlu0 %v1570, 56
      %v1576 = vpop.permute.xlu0 %1575
      %1577 = vrot.lane.b32.xlu0 %v1571, 56
      %v1578 = vpop.permute.xlu0 %1577
      %1579 = vrot.lane.b32.xlu0 %v1572, 56
      %v1580 = vpop.permute.xlu0 %1579
      %v1581 = vsel %vm647, %v1574, %v1576
      %v1582 = vsel %vm647, %v1576, %v1578
      %v1583 = vsel %vm647, %v1578, %v1580
      %1588 = vst [vmem:[#allocation1] ss:$2 sm:$0xff] %v252
      %v1589 = vld.sshfl [vmem:[#allocation1] sm:$0xff pattern:$0x75316420]
      %1590 = vrot.lane.b32.xlu0 %v1589, 56
      %v1591 = vpop.permute.xlu0 %1590
      %v1593 = vsel %vm647, %v1580, %v1591
      %s1594 = scalar_lea.vmem %s5, 97
      %v1595 = vld [vmem:[%s1594] ss:$8 sm:$0xf]
      %v1597 = vperm.slane %v1595, 0
      %v1598 = vperm.slane %v1595, 1
      %v1599 = vperm.slane %v1595, 2
      %v1600 = vperm.slane %v1595, 3
      %v1605 = vmul.f32 %v1581, %v1597
      %v1606 = vmul.f32 %v1582, %v1598
      %v1607 = vmul.f32 %v1583, %v1599
      %v1608 = vmul.f32 %v1593, %v1600
      %v1613 = vrot.slane %v1605, 4
      %v1614 = vrot.slane %v1606, 4
      %v1615 = vrot.slane %v1607, 4
      %v1616 = vrot.slane %v1608, 4
      %1621 = vst [vmem:[#allocation2 + $0x180] sm:$0xf0] %v1613
      %1622 = vst [vmem:[#allocation2 + $0x188] sm:$0xf0] %v1614
      %1623 = vst [vmem:[#allocation2 + $0x190] sm:$0xf0] %v1615
      %1624 = vst [vmem:[#allocation2 + $0x198] sm:$0xf0] %v1616
      %1625 = vst [vmem:[#allocation1] ss:$2 sm:$0xff] %v252
      %s1626 = scalar_lea.vmem [#allocation1], 16
      %1627 = vst [vmem:[%s1626] ss:$2 sm:$0xff] %v253
      %v1628 = vld.sshfl [vmem:[#allocation1] sm:$0xff pattern:$0x75316420]
      %v1629 = vld.sshfl [vmem:[#allocation1 + $0x8] sm:$0xff pattern:$0x75316420]
      %v1630 = vld.sshfl [vmem:[#allocation1 + $0x10] sm:$0xff pattern:$0x75316420]
      %v1631 = vld.sshfl [vmem:[#allocation1 + $0x18] sm:$0xff pattern:$0x75316420]
      %1632 = vrot.lane.b32.xlu0 %v1628, 55
      %v1633 = vpop.permute.xlu0 %1632
      %1634 = vrot.lane.b32.xlu0 %v1629, 55
      %v1635 = vpop.permute.xlu0 %1634
      %1636 = vrot.lane.b32.xlu0 %v1630, 55
      %v1637 = vpop.permute.xlu0 %1636
      %1638 = vrot.lane.b32.xlu0 %v1631, 55
      %v1639 = vpop.permute.xlu0 %1638
      %v1640 = vsel %vm707, %v1633, %v1635
      %v1641 = vsel %vm707, %v1635, %v1637
      %v1642 = vsel %vm707, %v1637, %v1639
      %1647 = vst [vmem:[#allocation1] ss:$2 sm:$0xff] %v252
      %v1648 = vld.sshfl [vmem:[#allocation1] sm:$0xff pattern:$0x75316420]
      %1649 = vrot.lane.b32.xlu0 %v1648, 55
      %v1650 = vpop.permute.xlu0 %1649
      %v1652 = vsel %vm707, %v1639, %v1650
      %s1653 = scalar_lea.vmem %s5, 98
      %v1654 = vld [vmem:[%s1653] ss:$8 sm:$0xf]
      %v1656 = vperm.slane %v1654, 0
      %v1657 = vperm.slane %v1654, 1
      %v1658 = vperm.slane %v1654, 2
      %v1659 = vperm.slane %v1654, 3
      %v1664 = vmul.f32 %v1640, %v1656
      %v1665 = vmul.f32 %v1641, %v1657
      %v1666 = vmul.f32 %v1642, %v1658
      %v1667 = vmul.f32 %v1652, %v1659
      %1668 = vst [vmem:[#allocation2 + $0x1a0] sm:$0xf] %v1664
      %1669 = vst [vmem:[#allocation2 + $0x1a8] sm:$0xf] %v1665
      %1670 = vst [vmem:[#allocation2 + $0x1b0] sm:$0xf] %v1666
      %1671 = vst [vmem:[#allocation2 + $0x1b8] sm:$0xf] %v1667
      %v1672 = vld [vmem:[%s1] sm:$0xf]
      %v1673 = vld [vmem:[#allocation2] sm:$0xff]
      %v1674 = vld [vmem:[#allocation2 + $0x8] sm:$0xff]
      %v1675 = vld [vmem:[#allocation2 + $0x10] sm:$0xff]
      %v1676 = vld [vmem:[#allocation2 + $0x18] sm:$0xff]
      %v1677 = vld [vmem:[#allocation2 + $0x20] sm:$0xff]
      %v1678 = vld [vmem:[#allocation2 + $0x28] sm:$0xff]
      %v1679 = vld [vmem:[#allocation2 + $0x30] sm:$0xff]
      %v1680 = vld [vmem:[#allocation2 + $0x38] sm:$0xff]
      %v1681 = vld [vmem:[#allocation2 + $0x40] sm:$0xff]
      %v1682 = vld [vmem:[#allocation2 + $0x48] sm:$0xff]
      %v1683 = vld [vmem:[#allocation2 + $0x50] sm:$0xff]
      %v1684 = vld [vmem:[#allocation2 + $0x58] sm:$0xff]
      %v1685 = vld [vmem:[#allocation2 + $0x60] sm:$0xff]
      %v1686 = vld [vmem:[#allocation2 + $0x68] sm:$0xff]
      %v1687 = vld [vmem:[#allocation2 + $0x70] sm:$0xff]
      %v1688 = vld [vmem:[#allocation2 + $0x78] sm:$0xff]
      %v1689 = vld [vmem:[#allocation2 + $0x80] sm:$0xff]
      %v1690 = vld [vmem:[#allocation2 + $0x88] sm:$0xff]
      %v1691 = vld [vmem:[#allocation2 + $0x90] sm:$0xff]
      %v1692 = vld [vmem:[#allocation2 + $0x98] sm:$0xff]
      %v1693 = vld [vmem:[#allocation2 + $0xa0] sm:$0xff]
      %v1694 = vld [vmem:[#allocation2 + $0xa8] sm:$0xff]
      %v1695 = vld [vmem:[#allocation2 + $0xb0] sm:$0xff]
      %v1696 = vld [vmem:[#allocation2 + $0xb8] sm:$0xff]
      %v1697 = vld [vmem:[#allocation2 + $0xc0] sm:$0xff]
      %v1698 = vld [vmem:[#allocation2 + $0xc8] sm:$0xff]
      %v1699 = vld [vmem:[#allocation2 + $0xd0] sm:$0xff]
      %v1700 = vld [vmem:[#allocation2 + $0xd8] sm:$0xff]
      %v1701 = vld [vmem:[#allocation2 + $0xe0] sm:$0xff]
      %v1702 = vld [vmem:[#allocation2 + $0xe8] sm:$0xff]
      %v1703 = vld [vmem:[#allocation2 + $0xf0] sm:$0xff]
      %v1704 = vld [vmem:[#allocation2 + $0xf8] sm:$0xff]
      %v1705 = vld [vmem:[#allocation2 + $0x100] sm:$0xff]
      %v1706 = vld [vmem:[#allocation2 + $0x108] sm:$0xff]
      %v1707 = vld [vmem:[#allocation2 + $0x110] sm:$0xff]
      %v1708 = vld [vmem:[#allocation2 + $0x118] sm:$0xff]
      %v1709 = vld [vmem:[#allocation2 + $0x120] sm:$0xff]
      %v1710 = vld [vmem:[#allocation2 + $0x128] sm:$0xff]
      %v1711 = vld [vmem:[#allocation2 + $0x130] sm:$0xff]
      %v1712 = vld [vmem:[#allocation2 + $0x138] sm:$0xff]
      %v1713 = vld [vmem:[#allocation2 + $0x140] sm:$0xff]
      %v1714 = vld [vmem:[#allocation2 + $0x148] sm:$0xff]
      %v1715 = vld [vmem:[#allocation2 + $0x150] sm:$0xff]
      %v1716 = vld [vmem:[#allocation2 + $0x158] sm:$0xff]
      %v1717 = vld [vmem:[#allocation2 + $0x160] sm:$0xff]
      %v1718 = vld [vmem:[#allocation2 + $0x168] sm:$0xff]
      %v1719 = vld [vmem:[#allocation2 + $0x170] sm:$0xff]
      %v1720 = vld [vmem:[#allocation2 + $0x178] sm:$0xff]
      %v1721 = vld [vmem:[#allocation2 + $0x180] sm:$0xff]
      %v1722 = vld [vmem:[#allocation2 + $0x188] sm:$0xff]
      %v1723 = vld [vmem:[#allocation2 + $0x190] sm:$0xff]
      %v1724 = vld [vmem:[#allocation2 + $0x198] sm:$0xff]
      %v1725 = vld [vmem:[#allocation2 + $0x1a0] sm:$0xf]
      %v1726 = vld [vmem:[#allocation2 + $0x1a8] sm:$0xf]
      %v1727 = vld [vmem:[#allocation2 + $0x1b0] sm:$0xf]
      %v1728 = vld [vmem:[#allocation2 + $0x1b8] sm:$0xf]
      %v1729 = vld [vmem:[%s2] sm:$0xf]
      %1731 = vset.pattern.permute.xlu0 0
      %1732 = vperm.xlu0 %1731, %v1729
      %v1733 = vpop.permute.xlu0 %1732
      %vm1735 = vcmask 883712
      %v1737 = vsel %vm1735, %v1672, 0
      %v1740 = vsel %vm960, %v1725, 0
      %v1743 = vsel %vm960, %v1726, 0
      %v1746 = vsel %vm960, %v1727, 0
      %v1749 = vsel %vm960, %v1728, 0
      %1751 = vmatpush.msra.mxu0 0.0
      %1752 = vmatpush.msra.mxu0 0.0
      %1753 = vmatpush.msra.mxu0 %v1740
      %1754 = vmatpush.msra.mxu0 %v1721
      %1755 = vmatpush.msra.mxu0 %v1717
      %1756 = vmatpush.msra.mxu0 %v1713
      %1757 = vmatpush.msra.mxu0 %v1709
      %1758 = vmatpush.msra.mxu0 %v1705
      %1759 = vmatpush.msra.mxu0 %v1701
      %1760 = vmatpush.msra.mxu0 %v1697
      %1761 = vmatpush.msra.mxu0 %v1693
      %1762 = vmatpush.msra.mxu0 %v1689
      %1763 = vmatpush.msra.mxu0 %v1685
      %1764 = vmatpush.msra.mxu0 %v1681
      %1765 = vmatpush.msra.mxu0 %v1677
      %1766 = vmatpush.msra.mxu0 %v1673
      %1767 = vmatmul.f32.gmra.mxu0 %v1737
      %v1768 = vpop.f32.mrf.mxu0
      %v1769 = vadd.f32 %v1733, %v1768
      %1770 = vdwg.mxu0
      %1771 = vmatpush.msra.mxu0 0.0
      %1772 = vmatpush.msra.mxu0 0.0
      %1773 = vmatpush.msra.mxu0 %v1743
      %1774 = vmatpush.msra.mxu0 %v1722
      %1775 = vmatpush.msra.mxu0 %v1718
      %1776 = vmatpush.msra.mxu0 %v1714
      %1777 = vmatpush.msra.mxu0 %v1710
      %1778 = vmatpush.msra.mxu0 %v1706
      %1779 = vmatpush.msra.mxu0 %v1702
      %1780 = vmatpush.msra.mxu0 %v1698
      %1781 = vmatpush.msra.mxu0 %v1694
      %1782 = vmatpush.msra.mxu0 %v1690
      %1783 = vmatpush.msra.mxu0 %v1686
      %1784 = vmatpush.msra.mxu0 %v1682
      %1785 = vmatpush.msra.mxu0 %v1678
      %1786 = vmatpush.msra.mxu0 %v1674
      %1787 = vmatmul.f32.gmra.mxu0 %v1737
      %v1788 = vpop.f32.mrf.mxu0
      %v1789 = vadd.f32 %v1733, %v1788
      %1790 = vdwg.mxu0
      %1791 = vmatpush.msra.mxu0 0.0
      %1792 = vmatpush.msra.mxu0 0.0
      %1793 = vmatpush.msra.mxu0 %v1746
      %1794 = vmatpush.msra.mxu0 %v1723
      %1795 = vmatpush.msra.mxu0 %v1719
      %1796 = vmatpush.msra.mxu0 %v1715
      %1797 = vmatpush.msra.mxu0 %v1711
      %1798 = vmatpush.msra.mxu0 %v1707
      %1799 = vmatpush.msra.mxu0 %v1703
      %1800 = vmatpush.msra.mxu0 %v1699
      %1801 = vmatpush.msra.mxu0 %v1695
      %1802 = vmatpush.msra.mxu0 %v1691
      %1803 = vmatpush.msra.mxu0 %v1687
      %1804 = vmatpush.msra.mxu0 %v1683
      %1805 = vmatpush.msra.mxu0 %v1679
      %1806 = vmatpush.msra.mxu0 %v1675
      %1807 = vmatmul.f32.gmra.mxu0 %v1737
      %v1808 = vpop.f32.mrf.mxu0
      %v1809 = vadd.f32 %v1733, %v1808
      %1810 = vdwg.mxu0
      %1811 = vmatpush.msra.mxu0 0.0
      %1812 = vmatpush.msra.mxu0 0.0
      %1813 = vmatpush.msra.mxu0 %v1749
      %1814 = vmatpush.msra.mxu0 %v1724
      %1815 = vmatpush.msra.mxu0 %v1720
      %1816 = vmatpush.msra.mxu0 %v1716
      %1817 = vmatpush.msra.mxu0 %v1712
      %1818 = vmatpush.msra.mxu0 %v1708
      %1819 = vmatpush.msra.mxu0 %v1704
      %1820 = vmatpush.msra.mxu0 %v1700
      %1821 = vmatpush.msra.mxu0 %v1696
      %1822 = vmatpush.msra.mxu0 %v1692
      %1823 = vmatpush.msra.mxu0 %v1688
      %1824 = vmatpush.msra.mxu0 %v1684
      %1825 = vmatpush.msra.mxu0 %v1680
      %1826 = vmatpush.msra.mxu0 %v1676
      %1827 = vmatmul.f32.gmra.mxu0 %v1737
      %v1828 = vpop.f32.mrf.mxu0
      %v1829 = vadd.f32 %v1733, %v1828
      %1830 = vdwg.mxu0
      %v1831 = vsel %vm960, %v1769, 0.0
      %v1832 = vsel %vm960, %v1789, 0.0
      %v1833 = vadd.f32 %v1831, %v1832
      %v1834 = vsel %vm960, %v1809, 0.0
      %v1835 = vadd.f32 %v1833, %v1834
      %v1836 = vsel %vm960, %v1829, 0.0
      %v1837 = vadd.f32 %v1835, %v1836
      %1838 = vadd.xlane.f32.xlu0 %v1837
      %v1839 = vpop.xlane.xlu0 %1838
      %v1840 = vrcp.pop 512.0
      %v1841 = vmul.f32 512.0, %v1840
      %v1842 = vsub.f32 1.0, %v1841
      %v1843 = vmul.f32 %v1840, %v1842
      %v1844 = vadd.f32 %v1840, %v1843
      %vm1845 = vweird.f32 %v1840
      %v1846 = vsel %vm1845, %v1840, %v1844
      %v1847 = vmul.f32 %v1839, %v1846
      %v1848 = vsub.f32 %v1769, %v1847
      %v1849 = vsub.f32 %v1789, %v1847
      %v1850 = vsub.f32 %v1809, %v1847
      %v1851 = vsub.f32 %v1829, %v1847
      %v1852 = vmul.f32 %v1848, %v1848
      %v1853 = vmul.f32 %v1849, %v1849
      %v1854 = vmul.f32 %v1850, %v1850
      %v1855 = vmul.f32 %v1851, %v1851
      %v1856 = vsel %vm960, %v1852, 0.0
      %v1857 = vsel %vm960, %v1853, 0.0
      %v1858 = vadd.f32 %v1856, %v1857
      %v1859 = vsel %vm960, %v1854, 0.0
      %v1860 = vadd.f32 %v1858, %v1859
      %v1861 = vsel %vm960, %v1855, 0.0
      %v1862 = vadd.f32 %v1860, %v1861
      %1863 = vadd.xlane.f32.xlu0 %v1862
      %v1864 = vpop.xlane.xlu0 %1863
      %v1865 = vmul.f32 %v1864, %v1846
      %v1866 = vadd.f32 %v1865, 1e-05
      %v1867 = vrsqrt.pop %v1866
      %v1868 = vmul.f32 %v1867, %v1866
      %v1869 = vmul.f32 %v1868, %v1867
      %v1870 = vmul.f32 0.5, %v1869
      %v1871 = vsub.f32 1.5, %v1870
      %v1872 = vmul.f32 %v1867, %v1871
      %vm1873 = vweird.f32 %v1866
      %vm1874 = vweird.f32 %v1867
      %vm1875 = vmor %vm1873, %vm1874
      %v1876 = vsel %vm1875, %v1867, %v1872
      %v1877 = vmul.f32 %v1848, %v1876
      %v1878 = vmul.f32 %v1849, %v1876
      %v1879 = vmul.f32 %v1850, %v1876
      %v1880 = vmul.f32 %v1851, %v1876
      %vm1881 = vcmp.ge.f32.partialorder %v1877, 0.0
      %vm1882 = vcmp.ge.f32.partialorder %v1878, 0.0
      %vm1883 = vcmp.ge.f32.partialorder %v1879, 0.0
      %vm1884 = vcmp.ge.f32.partialorder %v1880, 0.0
      %v1885 = vmul.f32 %v1877, 0.2
      %v1886 = vmul.f32 %v1878, 0.2
      %v1887 = vmul.f32 %v1879, 0.2
      %v1888 = vmul.f32 %v1880, 0.2
      %v1889 = vsel %vm1881, %v1877, %v1885
      %v1890 = vsel %vm1882, %v1878, %v1886
      %v1891 = vsel %vm1883, %v1879, %v1887
      %v1892 = vsel %vm1884, %v1880, %v1888
      %1894 = vrot.lane.b32.xlu0 %v1892, 73
      %v1895 = vpop.permute.xlu0 %1894
      %1900 = vrot.lane.b32.xlu0 %v1889, 73
      %v1901 = vpop.permute.xlu0 %1900
      %1902 = vrot.lane.b32.xlu0 %v1890, 73
      %v1903 = vpop.permute.xlu0 %1902
      %1904 = vrot.lane.b32.xlu0 %v1891, 73
      %v1905 = vpop.permute.xlu0 %1904
      %v1906 = vsel %vm276, %v1901, %v1903
      %v1907 = vsel %vm276, %v1903, %v1905
      %v1908 = vsel %vm276, %v1905, %v1895
      %v1913 = vsel %vm276, %v1895, %v1901
      %v1914 = vld [vmem:[%s5] ss:$8 sm:$0xf]
      %v1916 = vperm.slane %v1914, 0
      %v1917 = vperm.slane %v1914, 1
      %v1918 = vperm.slane %v1914, 2
      %v1919 = vperm.slane %v1914, 3
      %v1924 = vmul.f32 %v1913, %v1916
      %v1925 = vmul.f32 %v1906, %v1917
      %v1926 = vmul.f32 %v1907, %v1918
      %v1927 = vmul.f32 %v1908, %v1919
      %1928 = vst [vmem:[#allocation3] sm:$0xf] %v1924
      %1929 = vst [vmem:[#allocation3 + $0x8] sm:$0xf] %v1925
      %1930 = vst [vmem:[#allocation3 + $0x10] sm:$0xf] %v1926
      %1931 = vst [vmem:[#allocation3 + $0x18] sm:$0xf] %v1927
      %1932 = vrot.lane.b32.xlu0 %v1892, 72
      %v1933 = vpop.permute.xlu0 %1932
      %1935 = vrot.lane.b32.xlu0 %v1889, 72
      %v1936 = vpop.permute.xlu0 %1935
      %1937 = vrot.lane.b32.xlu0 %v1890, 72
      %v1938 = vpop.permute.xlu0 %1937
      %1939 = vrot.lane.b32.xlu0 %v1891, 72
      %v1940 = vpop.permute.xlu0 %1939
      %v1941 = vsel %vm323, %v1936, %v1938
      %v1942 = vsel %vm323, %v1938, %v1940
      %v1943 = vsel %vm323, %v1940, %v1933
      %v1948 = vsel %vm323, %v1933, %v1936
      %v1949 = vld [vmem:[%s332] ss:$8 sm:$0xf]
      %v1951 = vperm.slane %v1949, 0
      %v1952 = vperm.slane %v1949, 1
      %v1953 = vperm.slane %v1949, 2
      %v1954 = vperm.slane %v1949, 3
      %v1959 = vmul.f32 %v1948, %v1951
      %v1960 = vmul.f32 %v1941, %v1952
      %v1961 = vmul.f32 %v1942, %v1953
      %v1962 = vmul.f32 %v1943, %v1954
      %v1967 = vrot.slane %v1959, 4
      %v1968 = vrot.slane %v1960, 4
      %v1969 = vrot.slane %v1961, 4
      %v1970 = vrot.slane %v1962, 4
      %1975 = vst [vmem:[#allocation3] sm:$0xf0] %v1967
      %1976 = vst [vmem:[#allocation3 + $0x8] sm:$0xf0] %v1968
      %1977 = vst [vmem:[#allocation3 + $0x10] sm:$0xf0] %v1969
      %1978 = vst [vmem:[#allocation3 + $0x18] sm:$0xf0] %v1970
      %1979 = vrot.lane.b32.xlu0 %v1892, 71
      %v1980 = vpop.permute.xlu0 %1979
      %1982 = vrot.lane.b32.xlu0 %v1889, 71
      %v1983 = vpop.permute.xlu0 %1982
      %1984 = vrot.lane.b32.xlu0 %v1890, 71
      %v1985 = vpop.permute.xlu0 %1984
      %1986 = vrot.lane.b32.xlu0 %v1891, 71
      %v1987 = vpop.permute.xlu0 %1986
      %v1988 = vsel %vm383, %v1983, %v1985
      %v1989 = vsel %vm383, %v1985, %v1987
      %v1990 = vsel %vm383, %v1987, %v1980
      %v1995 = vsel %vm383, %v1980, %v1983
      %v1996 = vld [vmem:[%s392] ss:$8 sm:$0xf]
      %v1998 = vperm.slane %v1996, 0
      %v1999 = vperm.slane %v1996, 1
      %v2000 = vperm.slane %v1996, 2
      %v2001 = vperm.slane %v1996, 3
      %v2006 = vmul.f32 %v1995, %v1998
      %v2007 = vmul.f32 %v1988, %v1999
      %v2008 = vmul.f32 %v1989, %v2000
      %v2009 = vmul.f32 %v1990, %v2001
      %2010 = vst [vmem:[#allocation3 + $0x20] sm:$0xf] %v2006
      %2011 = vst [vmem:[#allocation3 + $0x28] sm:$0xf] %v2007
      %2012 = vst [vmem:[#allocation3 + $0x30] sm:$0xf] %v2008
      %2013 = vst [vmem:[#allocation3 + $0x38] sm:$0xf] %v2009
      %2014 = vrot.lane.b32.xlu0 %v1892, 65
      %v2015 = vpop.permute.xlu0 %2014
      %2017 = vrot.lane.b32.xlu0 %v1889, 65
      %v2018 = vpop.permute.xlu0 %2017
      %2019 = vrot.lane.b32.xlu0 %v1890, 65
      %v2020 = vpop.permute.xlu0 %2019
      %2021 = vrot.lane.b32.xlu0 %v1891, 65
      %v2022 = vpop.permute.xlu0 %2021
      %v2023 = vsel %vm431, %v2018, %v2020
      %v2024 = vsel %vm431, %v2020, %v2022
      %v2025 = vsel %vm431, %v2022, %v2015
      %v2030 = vsel %vm431, %v2015, %v2018
      %v2031 = vld [vmem:[%s440] ss:$8 sm:$0xf]
      %v2033 = vperm.slane %v2031, 0
      %v2034 = vperm.slane %v2031, 1
      %v2035 = vperm.slane %v2031, 2
      %v2036 = vperm.slane %v2031, 3
      %v2041 = vmul.f32 %v2030, %v2033
      %v2042 = vmul.f32 %v2023, %v2034
      %v2043 = vmul.f32 %v2024, %v2035
      %v2044 = vmul.f32 %v2025, %v2036
      %v2049 = vrot.slane %v2041, 4
      %v2050 = vrot.slane %v2042, 4
      %v2051 = vrot.slane %v2043, 4
      %v2052 = vrot.slane %v2044, 4
      %2057 = vst [vmem:[#allocation3 + $0x20] sm:$0xf0] %v2049
      %2058 = vst [vmem:[#allocation3 + $0x28] sm:$0xf0] %v2050
      %2059 = vst [vmem:[#allocation3 + $0x30] sm:$0xf0] %v2051
      %2060 = vst [vmem:[#allocation3 + $0x38] sm:$0xf0] %v2052
      %2061 = vrot.lane.b32.xlu0 %v1892, 64
      %v2062 = vpop.permute.xlu0 %2061
      %2064 = vrot.lane.b32.xlu0 %v1889, 64
      %v2065 = vpop.permute.xlu0 %2064
      %2066 = vrot.lane.b32.xlu0 %v1890, 64
      %v2067 = vpop.permute.xlu0 %2066
      %2068 = vrot.lane.b32.xlu0 %v1891, 64
      %v2069 = vpop.permute.xlu0 %2068
      %v2070 = vsel %vm491, %v2065, %v2067
      %v2071 = vsel %vm491, %v2067, %v2069
      %v2072 = vsel %vm491, %v2069, %v2062
      %v2077 = vsel %vm491, %v2062, %v2065
      %v2078 = vld [vmem:[%s500] ss:$8 sm:$0xf]
      %v2080 = vperm.slane %v2078, 0
      %v2081 = vperm.slane %v2078, 1
      %v2082 = vperm.slane %v2078, 2
      %v2083 = vperm.slane %v2078, 3
      %v2088 = vmul.f32 %v2077, %v2080
      %v2089 = vmul.f32 %v2070, %v2081
      %v2090 = vmul.f32 %v2071, %v2082
      %v2091 = vmul.f32 %v2072, %v2083
      %2092 = vst [vmem:[#allocation3 + $0x40] sm:$0xf] %v2088
      %2093 = vst [vmem:[#allocation3 + $0x48] sm:$0xf] %v2089
      %2094 = vst [vmem:[#allocation3 + $0x50] sm:$0xf] %v2090
      %2095 = vst [vmem:[#allocation3 + $0x58] sm:$0xf] %v2091
      %2096 = vrot.lane.b32.xlu0 %v1892, 63
      %v2097 = vpop.permute.xlu0 %2096
      %2099 = vrot.lane.b32.xlu0 %v1889, 63
      %v2100 = vpop.permute.xlu0 %2099
      %2101 = vrot.lane.b32.xlu0 %v1890, 63
      %v2102 = vpop.permute.xlu0 %2101
      %2103 = vrot.lane.b32.xlu0 %v1891, 63
      %v2104 = vpop.permute.xlu0 %2103
      %v2105 = vsel %vm539, %v2100, %v2102
      %v2106 = vsel %vm539, %v2102, %v2104
      %v2107 = vsel %vm539, %v2104, %v2097
      %v2112 = vsel %vm539, %v2097, %v2100
      %v2113 = vld [vmem:[%s548] ss:$8 sm:$0xf]
      %v2115 = vperm.slane %v2113, 0
      %v2116 = vperm.slane %v2113, 1
      %v2117 = vperm.slane %v2113, 2
      %v2118 = vperm.slane %v2113, 3
      %v2123 = vmul.f32 %v2112, %v2115
      %v2124 = vmul.f32 %v2105, %v2116
      %v2125 = vmul.f32 %v2106, %v2117
      %v2126 = vmul.f32 %v2107, %v2118
      %v2131 = vrot.slane %v2123, 4
      %v2132 = vrot.slane %v2124, 4
      %v2133 = vrot.slane %v2125, 4
      %v2134 = vrot.slane %v2126, 4
      %2139 = vst [vmem:[#allocation3 + $0x40] sm:$0xf0] %v2131
      %2140 = vst [vmem:[#allocation3 + $0x48] sm:$0xf0] %v2132
      %2141 = vst [vmem:[#allocation3 + $0x50] sm:$0xf0] %v2133
      %2142 = vst [vmem:[#allocation3 + $0x58] sm:$0xf0] %v2134
      %2143 = vrot.lane.b32.xlu0 %v1892, 57
      %v2144 = vpop.permute.xlu0 %2143
      %2146 = vrot.lane.b32.xlu0 %v1889, 57
      %v2147 = vpop.permute.xlu0 %2146
      %2148 = vrot.lane.b32.xlu0 %v1890, 57
      %v2149 = vpop.permute.xlu0 %2148
      %2150 = vrot.lane.b32.xlu0 %v1891, 57
      %v2151 = vpop.permute.xlu0 %2150
      %v2152 = vsel %vm599, %v2147, %v2149
      %v2153 = vsel %vm599, %v2149, %v2151
      %v2154 = vsel %vm599, %v2151, %v2144
      %v2159 = vsel %vm599, %v2144, %v2147
      %v2160 = vld [vmem:[%s608] ss:$8 sm:$0xf]
      %v2162 = vperm.slane %v2160, 0
      %v2163 = vperm.slane %v2160, 1
      %v2164 = vperm.slane %v2160, 2
      %v2165 = vperm.slane %v2160, 3
      %v2170 = vmul.f32 %v2159, %v2162
      %v2171 = vmul.f32 %v2152, %v2163
      %v2172 = vmul.f32 %v2153, %v2164
      %v2173 = vmul.f32 %v2154, %v2165
      %2174 = vst [vmem:[#allocation3 + $0x60] sm:$0xf] %v2170
      %2175 = vst [vmem:[#allocation3 + $0x68] sm:$0xf] %v2171
      %2176 = vst [vmem:[#allocation3 + $0x70] sm:$0xf] %v2172
      %2177 = vst [vmem:[#allocation3 + $0x78] sm:$0xf] %v2173
      %2178 = vrot.lane.b32.xlu0 %v1892, 56
      %v2179 = vpop.permute.xlu0 %2178
      %2181 = vrot.lane.b32.xlu0 %v1889, 56
      %v2182 = vpop.permute.xlu0 %2181
      %2183 = vrot.lane.b32.xlu0 %v1890, 56
      %v2184 = vpop.permute.xlu0 %2183
      %2185 = vrot.lane.b32.xlu0 %v1891, 56
      %v2186 = vpop.permute.xlu0 %2185
      %v2187 = vsel %vm647, %v2182, %v2184
      %v2188 = vsel %vm647, %v2184, %v2186
      %v2189 = vsel %vm647, %v2186, %v2179
      %v2194 = vsel %vm647, %v2179, %v2182
      %v2195 = vld [vmem:[%s656] ss:$8 sm:$0xf]
      %v2197 = vperm.slane %v2195, 0
      %v2198 = vperm.slane %v2195, 1
      %v2199 = vperm.slane %v2195, 2
      %v2200 = vperm.slane %v2195, 3
      %v2205 = vmul.f32 %v2194, %v2197
      %v2206 = vmul.f32 %v2187, %v2198
      %v2207 = vmul.f32 %v2188, %v2199
      %v2208 = vmul.f32 %v2189, %v2200
      %v2213 = vrot.slane %v2205, 4
      %v2214 = vrot.slane %v2206, 4
      %v2215 = vrot.slane %v2207, 4
      %v2216 = vrot.slane %v2208, 4
      %2221 = vst [vmem:[#allocation3 + $0x60] sm:$0xf0] %v2213
      %2222 = vst [vmem:[#allocation3 + $0x68] sm:$0xf0] %v2214
      %2223 = vst [vmem:[#allocation3 + $0x70] sm:$0xf0] %v2215
      %2224 = vst [vmem:[#allocation3 + $0x78] sm:$0xf0] %v2216
      %2225 = vrot.lane.b32.xlu0 %v1892, 55
      %v2226 = vpop.permute.xlu0 %2225
      %2228 = vrot.lane.b32.xlu0 %v1889, 55
      %v2229 = vpop.permute.xlu0 %2228
      %2230 = vrot.lane.b32.xlu0 %v1890, 55
      %v2231 = vpop.permute.xlu0 %2230
      %2232 = vrot.lane.b32.xlu0 %v1891, 55
      %v2233 = vpop.permute.xlu0 %2232
      %v2234 = vsel %vm707, %v2229, %v2231
      %v2235 = vsel %vm707, %v2231, %v2233
      %v2236 = vsel %vm707, %v2233, %v2226
      %v2241 = vsel %vm707, %v2226, %v2229
      %v2242 = vld [vmem:[%s716] ss:$8 sm:$0xf]
      %v2244 = vperm.slane %v2242, 0
      %v2245 = vperm.slane %v2242, 1
      %v2246 = vperm.slane %v2242, 2
      %v2247 = vperm.slane %v2242, 3
      %v2252 = vmul.f32 %v2241, %v2244
      %v2253 = vmul.f32 %v2234, %v2245
      %v2254 = vmul.f32 %v2235, %v2246
      %v2255 = vmul.f32 %v2236, %v2247
      %2256 = vst [vmem:[#allocation3 + $0x80] sm:$0xf] %v2252
      %2257 = vst [vmem:[#allocation3 + $0x88] sm:$0xf] %v2253
      %2258 = vst [vmem:[#allocation3 + $0x90] sm:$0xf] %v2254
      %2259 = vst [vmem:[#allocation3 + $0x98] sm:$0xf] %v2255
      %2260 = vrot.lane.b32.xlu0 %v1892, 9
      %v2261 = vpop.permute.xlu0 %2260
      %2263 = vrot.lane.b32.xlu0 %v1889, 9
      %v2264 = vpop.permute.xlu0 %2263
      %2265 = vrot.lane.b32.xlu0 %v1890, 9
      %v2266 = vpop.permute.xlu0 %2265
      %2267 = vrot.lane.b32.xlu0 %v1891, 9
      %v2268 = vpop.permute.xlu0 %2267
      %v2269 = vsel %vm755, %v2264, %v2266
      %v2270 = vsel %vm755, %v2266, %v2268
      %v2271 = vsel %vm755, %v2268, %v2261
      %v2276 = vsel %vm755, %v2261, %v2264
      %v2277 = vld [vmem:[%s764] ss:$8 sm:$0xf]
      %v2279 = vperm.slane %v2277, 0
      %v2280 = vperm.slane %v2277, 1
      %v2281 = vperm.slane %v2277, 2
      %v2282 = vperm.slane %v2277, 3
      %v2287 = vmul.f32 %v2276, %v2279
      %v2288 = vmul.f32 %v2269, %v2280
      %v2289 = vmul.f32 %v2270, %v2281
      %v2290 = vmul.f32 %v2271, %v2282
      %v2295 = vrot.slane %v2287, 4
      %v2296 = vrot.slane %v2288, 4
      %v2297 = vrot.slane %v2289, 4
      %v2298 = vrot.slane %v2290, 4
      %2303 = vst [vmem:[#allocation3 + $0x80] sm:$0xf0] %v2295
      %2304 = vst [vmem:[#allocation3 + $0x88] sm:$0xf0] %v2296
      %2305 = vst [vmem:[#allocation3 + $0x90] sm:$0xf0] %v2297
      %2306 = vst [vmem:[#allocation3 + $0x98] sm:$0xf0] %v2298
      %2307 = vrot.lane.b32.xlu0 %v1892, 8
      %v2308 = vpop.permute.xlu0 %2307
      %2310 = vrot.lane.b32.xlu0 %v1889, 8
      %v2311 = vpop.permute.xlu0 %2310
      %2312 = vrot.lane.b32.xlu0 %v1890, 8
      %v2313 = vpop.permute.xlu0 %2312
      %2314 = vrot.lane.b32.xlu0 %v1891, 8
      %v2315 = vpop.permute.xlu0 %2314
      %v2316 = vsel %vm815, %v2311, %v2313
      %v2317 = vsel %vm815, %v2313, %v2315
      %v2318 = vsel %vm815, %v2315, %v2308
      %v2323 = vsel %vm815, %v2308, %v2311
      %v2324 = vld [vmem:[%s824] ss:$8 sm:$0xf]
      %v2326 = vperm.slane %v2324, 0
      %v2327 = vperm.slane %v2324, 1
      %v2328 = vperm.slane %v2324, 2
      %v2329 = vperm.slane %v2324, 3
      %v2334 = vmul.f32 %v2323, %v2326
      %v2335 = vmul.f32 %v2316, %v2327
      %v2336 = vmul.f32 %v2317, %v2328
      %v2337 = vmul.f32 %v2318, %v2329
      %2338 = vst [vmem:[#allocation3 + $0xa0] sm:$0xf] %v2334
      %2339 = vst [vmem:[#allocation3 + $0xa8] sm:$0xf] %v2335
      %2340 = vst [vmem:[#allocation3 + $0xb0] sm:$0xf] %v2336
      %2341 = vst [vmem:[#allocation3 + $0xb8] sm:$0xf] %v2337
      %2342 = vrot.lane.b32.xlu0 %v1892, 7
      %v2343 = vpop.permute.xlu0 %2342
      %2345 = vrot.lane.b32.xlu0 %v1889, 7
      %v2346 = vpop.permute.xlu0 %2345
      %2347 = vrot.lane.b32.xlu0 %v1890, 7
      %v2348 = vpop.permute.xlu0 %2347
      %2349 = vrot.lane.b32.xlu0 %v1891, 7
      %v2350 = vpop.permute.xlu0 %2349
      %v2351 = vsel %vm863, %v2346, %v2348
      %v2352 = vsel %vm863, %v2348, %v2350
      %v2353 = vsel %vm863, %v2350, %v2343
      %v2358 = vsel %vm863, %v2343, %v2346
      %v2359 = vld [vmem:[%s872] ss:$8 sm:$0xf]
      %v2361 = vperm.slane %v2359, 0
      %v2362 = vperm.slane %v2359, 1
      %v2363 = vperm.slane %v2359, 2
      %v2364 = vperm.slane %v2359, 3
      %v2369 = vmul.f32 %v2358, %v2361
      %v2370 = vmul.f32 %v2351, %v2362
      %v2371 = vmul.f32 %v2352, %v2363
      %v2372 = vmul.f32 %v2353, %v2364
      %v2377 = vrot.slane %v2369, 4
      %v2378 = vrot.slane %v2370, 4
      %v2379 = vrot.slane %v2371, 4
      %v2380 = vrot.slane %v2372, 4
      %2385 = vst [vmem:[#allocation3 + $0xa0] sm:$0xf0] %v2377
      %2386 = vst [vmem:[#allocation3 + $0xa8] sm:$0xf0] %v2378
      %2387 = vst [vmem:[#allocation3 + $0xb0] sm:$0xf0] %v2379
      %2388 = vst [vmem:[#allocation3 + $0xb8] sm:$0xf0] %v2380
      %2389 = vrot.lane.b32.xlu0 %v1892, 1
      %v2390 = vpop.permute.xlu0 %2389
      %2392 = vrot.lane.b32.xlu0 %v1889, 1
      %v2393 = vpop.permute.xlu0 %2392
      %2394 = vrot.lane.b32.xlu0 %v1890, 1
      %v2395 = vpop.permute.xlu0 %2394
      %2396 = vrot.lane.b32.xlu0 %v1891, 1
      %v2397 = vpop.permute.xlu0 %2396
      %v2398 = vsel %vm923, %v2393, %v2395
      %v2399 = vsel %vm923, %v2395, %v2397
      %v2400 = vsel %vm923, %v2397, %v2390
      %v2405 = vsel %vm923, %v2390, %v2393
      %v2406 = vld [vmem:[%s932] ss:$8 sm:$0xf]
      %v2408 = vperm.slane %v2406, 0
      %v2409 = vperm.slane %v2406, 1
      %v2410 = vperm.slane %v2406, 2
      %v2411 = vperm.slane %v2406, 3
      %v2416 = vmul.f32 %v2405, %v2408
      %v2417 = vmul.f32 %v2398, %v2409
      %v2418 = vmul.f32 %v2399, %v2410
      %v2419 = vmul.f32 %v2400, %v2411
      %2420 = vst [vmem:[#allocation3 + $0xc0] sm:$0xf] %v2416
      %2421 = vst [vmem:[#allocation3 + $0xc8] sm:$0xf] %v2417
      %2422 = vst [vmem:[#allocation3 + $0xd0] sm:$0xf] %v2418
      %2423 = vst [vmem:[#allocation3 + $0xd8] sm:$0xf] %v2419
      %v2424 = vld [vmem:[%s951] ss:$8 sm:$0xf]
      %v2426 = vperm.slane %v2424, 0
      %v2427 = vperm.slane %v2424, 1
      %v2428 = vperm.slane %v2424, 2
      %v2429 = vperm.slane %v2424, 3
      %v2434 = vmul.f32 %v1889, %v2426
      %v2435 = vmul.f32 %v1890, %v2427
      %v2436 = vmul.f32 %v1891, %v2428
      %v2437 = vmul.f32 %v1892, %v2429
      %v2442 = vrot.slane %v2434, 4
      %v2443 = vrot.slane %v2435, 4
      %v2444 = vrot.slane %v2436, 4
      %v2445 = vrot.slane %v2437, 4
      %2450 = vst [vmem:[#allocation3 + $0xc0] sm:$0xf0] %v2442
      %2451 = vst [vmem:[#allocation3 + $0xc8] sm:$0xf0] %v2443
      %2452 = vst [vmem:[#allocation3 + $0xd0] sm:$0xf0] %v2444
      %2453 = vst [vmem:[#allocation3 + $0xd8] sm:$0xf0] %v2445
      %2454 = vrot.lane.b32.xlu0 %v1889, 127
      %v2455 = vpop.permute.xlu0 %2454
      %2456 = vrot.lane.b32.xlu0 %v1890, 127
      %v2457 = vpop.permute.xlu0 %2456
      %2458 = vrot.lane.b32.xlu0 %v1891, 127
      %v2459 = vpop.permute.xlu0 %2458
      %2460 = vrot.lane.b32.xlu0 %v1892, 127
      %v2461 = vpop.permute.xlu0 %2460
      %v2462 = vsel %vm1000, %v2455, %v2457
      %v2463 = vsel %vm1000, %v2457, %v2459
      %v2464 = vsel %vm1000, %v2459, %v2461
      %v2470 = vsel %vm1000, %v2461, %v2455
      %v2471 = vld [vmem:[%s1014] ss:$8 sm:$0xf]
      %v2473 = vperm.slane %v2471, 0
      %v2474 = vperm.slane %v2471, 1
      %v2475 = vperm.slane %v2471, 2
      %v2476 = vperm.slane %v2471, 3
      %v2481 = vmul.f32 %v2462, %v2473
      %v2482 = vmul.f32 %v2463, %v2474
      %v2483 = vmul.f32 %v2464, %v2475
      %v2484 = vmul.f32 %v2470, %v2476
      %2485 = vst [vmem:[#allocation3 + $0xe0] sm:$0xf] %v2481
      %2486 = vst [vmem:[#allocation3 + $0xe8] sm:$0xf] %v2482
      %2487 = vst [vmem:[#allocation3 + $0xf0] sm:$0xf] %v2483
      %2488 = vst [vmem:[#allocation3 + $0xf8] sm:$0xf] %v2484
      %2489 = vrot.lane.b32.xlu0 %v1889, 121
      %v2490 = vpop.permute.xlu0 %2489
      %2491 = vrot.lane.b32.xlu0 %v1890, 121
      %v2492 = vpop.permute.xlu0 %2491
      %2493 = vrot.lane.b32.xlu0 %v1891, 121
      %v2494 = vpop.permute.xlu0 %2493
      %2495 = vrot.lane.b32.xlu0 %v1892, 121
      %v2496 = vpop.permute.xlu0 %2495
      %v2497 = vsel %vm1048, %v2490, %v2492
      %v2498 = vsel %vm1048, %v2492, %v2494
      %v2499 = vsel %vm1048, %v2494, %v2496
      %v2505 = vsel %vm1048, %v2496, %v2490
      %v2506 = vld [vmem:[%s1062] ss:$8 sm:$0xf]
      %v2508 = vperm.slane %v2506, 0
      %v2509 = vperm.slane %v2506, 1
      %v2510 = vperm.slane %v2506, 2
      %v2511 = vperm.slane %v2506, 3
      %v2516 = vmul.f32 %v2497, %v2508
      %v2517 = vmul.f32 %v2498, %v2509
      %v2518 = vmul.f32 %v2499, %v2510
      %v2519 = vmul.f32 %v2505, %v2511
      %v2524 = vrot.slane %v2516, 4
      %v2525 = vrot.slane %v2517, 4
      %v2526 = vrot.slane %v2518, 4
      %v2527 = vrot.slane %v2519, 4
      %2532 = vst [vmem:[#allocation3 + $0xe0] sm:$0xf0] %v2524
      %2533 = vst [vmem:[#allocation3 + $0xe8] sm:$0xf0] %v2525
      %2534 = vst [vmem:[#allocation3 + $0xf0] sm:$0xf0] %v2526
      %2535 = vst [vmem:[#allocation3 + $0xf8] sm:$0xf0] %v2527
      %2536 = vrot.lane.b32.xlu0 %v1889, 120
      %v2537 = vpop.permute.xlu0 %2536
      %2538 = vrot.lane.b32.xlu0 %v1890, 120
      %v2539 = vpop.permute.xlu0 %2538
      %2540 = vrot.lane.b32.xlu0 %v1891, 120
      %v2541 = vpop.permute.xlu0 %2540
      %2542 = vrot.lane.b32.xlu0 %v1892, 120
      %v2543 = vpop.permute.xlu0 %2542
      %v2544 = vsel %vm1108, %v2537, %v2539
      %v2545 = vsel %vm1108, %v2539, %v2541
      %v2546 = vsel %vm1108, %v2541, %v2543
      %v2552 = vsel %vm1108, %v2543, %v2537
      %v2553 = vld [vmem:[%s1122] ss:$8 sm:$0xf]
      %v2555 = vperm.slane %v2553, 0
      %v2556 = vperm.slane %v2553, 1
      %v2557 = vperm.slane %v2553, 2
      %v2558 = vperm.slane %v2553, 3
      %v2563 = vmul.f32 %v2544, %v2555
      %v2564 = vmul.f32 %v2545, %v2556
      %v2565 = vmul.f32 %v2546, %v2557
      %v2566 = vmul.f32 %v2552, %v2558
      %2567 = vst [vmem:[#allocation3 + $0x100] sm:$0xf] %v2563
      %2568 = vst [vmem:[#allocation3 + $0x108] sm:$0xf] %v2564
      %2569 = vst [vmem:[#allocation3 + $0x110] sm:$0xf] %v2565
      %2570 = vst [vmem:[#allocation3 + $0x118] sm:$0xf] %v2566
      %2571 = vrot.lane.b32.xlu0 %v1889, 119
      %v2572 = vpop.permute.xlu0 %2571
      %2573 = vrot.lane.b32.xlu0 %v1890, 119
      %v2574 = vpop.permute.xlu0 %2573
      %2575 = vrot.lane.b32.xlu0 %v1891, 119
      %v2576 = vpop.permute.xlu0 %2575
      %2577 = vrot.lane.b32.xlu0 %v1892, 119
      %v2578 = vpop.permute.xlu0 %2577
      %v2579 = vsel %vm1156, %v2572, %v2574
      %v2580 = vsel %vm1156, %v2574, %v2576
      %v2581 = vsel %vm1156, %v2576, %v2578
      %v2587 = vsel %vm1156, %v2578, %v2572
      %v2588 = vld [vmem:[%s1170] ss:$8 sm:$0xf]
      %v2590 = vperm.slane %v2588, 0
      %v2591 = vperm.slane %v2588, 1
      %v2592 = vperm.slane %v2588, 2
      %v2593 = vperm.slane %v2588, 3
      %v2598 = vmul.f32 %v2579, %v2590
      %v2599 = vmul.f32 %v2580, %v2591
      %v2600 = vmul.f32 %v2581, %v2592
      %v2601 = vmul.f32 %v2587, %v2593
      %v2606 = vrot.slane %v2598, 4
      %v2607 = vrot.slane %v2599, 4
      %v2608 = vrot.slane %v2600, 4
      %v2609 = vrot.slane %v2601, 4
      %2614 = vst [vmem:[#allocation3 + $0x100] sm:$0xf0] %v2606
      %2615 = vst [vmem:[#allocation3 + $0x108] sm:$0xf0] %v2607
      %2616 = vst [vmem:[#allocation3 + $0x110] sm:$0xf0] %v2608
      %2617 = vst [vmem:[#allocation3 + $0x118] sm:$0xf0] %v2609
      %v2618 = vld [vmem:[%s1229] ss:$8 sm:$0xf]
      %v2620 = vperm.slane %v2618, 0
      %v2621 = vperm.slane %v2618, 1
      %v2622 = vperm.slane %v2618, 2
      %v2623 = vperm.slane %v2618, 3
      %v2628 = vmul.f32 %v1906, %v2620
      %v2629 = vmul.f32 %v1907, %v2621
      %v2630 = vmul.f32 %v1908, %v2622
      %v2631 = vmul.f32 %v1913, %v2623
      %2632 = vst [vmem:[#allocation3 + $0x120] sm:$0xf] %v2628
      %2633 = vst [vmem:[#allocation3 + $0x128] sm:$0xf] %v2629
      %2634 = vst [vmem:[#allocation3 + $0x130] sm:$0xf] %v2630
      %2635 = vst [vmem:[#allocation3 + $0x138] sm:$0xf] %v2631
      %v2636 = vld [vmem:[%s1276] ss:$8 sm:$0xf]
      %v2638 = vperm.slane %v2636, 0
      %v2639 = vperm.slane %v2636, 1
      %v2640 = vperm.slane %v2636, 2
      %v2641 = vperm.slane %v2636, 3
      %v2646 = vmul.f32 %v1941, %v2638
      %v2647 = vmul.f32 %v1942, %v2639
      %v2648 = vmul.f32 %v1943, %v2640
      %v2649 = vmul.f32 %v1948, %v2641
      %v2654 = vrot.slane %v2646, 4
      %v2655 = vrot.slane %v2647, 4
      %v2656 = vrot.slane %v2648, 4
      %v2657 = vrot.slane %v2649, 4
      %2662 = vst [vmem:[#allocation3 + $0x120] sm:$0xf0] %v2654
      %2663 = vst [vmem:[#allocation3 + $0x128] sm:$0xf0] %v2655
      %2664 = vst [vmem:[#allocation3 + $0x130] sm:$0xf0] %v2656
      %2665 = vst [vmem:[#allocation3 + $0x138] sm:$0xf0] %v2657
      %v2666 = vld [vmem:[%s1335] ss:$8 sm:$0xf]
      %v2668 = vperm.slane %v2666, 0
      %v2669 = vperm.slane %v2666, 1
      %v2670 = vperm.slane %v2666, 2
      %v2671 = vperm.slane %v2666, 3
      %v2676 = vmul.f32 %v1988, %v2668
      %v2677 = vmul.f32 %v1989, %v2669
      %v2678 = vmul.f32 %v1990, %v2670
      %v2679 = vmul.f32 %v1995, %v2671
      %2680 = vst [vmem:[#allocation3 + $0x140] sm:$0xf] %v2676
      %2681 = vst [vmem:[#allocation3 + $0x148] sm:$0xf] %v2677
      %2682 = vst [vmem:[#allocation3 + $0x150] sm:$0xf] %v2678
      %2683 = vst [vmem:[#allocation3 + $0x158] sm:$0xf] %v2679
      %v2684 = vld [vmem:[%s1382] ss:$8 sm:$0xf]
      %v2686 = vperm.slane %v2684, 0
      %v2687 = vperm.slane %v2684, 1
      %v2688 = vperm.slane %v2684, 2
      %v2689 = vperm.slane %v2684, 3
      %v2694 = vmul.f32 %v2023, %v2686
      %v2695 = vmul.f32 %v2024, %v2687
      %v2696 = vmul.f32 %v2025, %v2688
      %v2697 = vmul.f32 %v2030, %v2689
      %v2702 = vrot.slane %v2694, 4
      %v2703 = vrot.slane %v2695, 4
      %v2704 = vrot.slane %v2696, 4
      %v2705 = vrot.slane %v2697, 4
      %2710 = vst [vmem:[#allocation3 + $0x140] sm:$0xf0] %v2702
      %2711 = vst [vmem:[#allocation3 + $0x148] sm:$0xf0] %v2703
      %2712 = vst [vmem:[#allocation3 + $0x150] sm:$0xf0] %v2704
      %2713 = vst [vmem:[#allocation3 + $0x158] sm:$0xf0] %v2705
      %v2714 = vld [vmem:[%s1441] ss:$8 sm:$0xf]
      %v2716 = vperm.slane %v2714, 0
      %v2717 = vperm.slane %v2714, 1
      %v2718 = vperm.slane %v2714, 2
      %v2719 = vperm.slane %v2714, 3
      %v2724 = vmul.f32 %v2070, %v2716
      %v2725 = vmul.f32 %v2071, %v2717
      %v2726 = vmul.f32 %v2072, %v2718
      %v2727 = vmul.f32 %v2077, %v2719
      %2728 = vst [vmem:[#allocation3 + $0x160] sm:$0xf] %v2724
      %2729 = vst [vmem:[#allocation3 + $0x168] sm:$0xf] %v2725
      %2730 = vst [vmem:[#allocation3 + $0x170] sm:$0xf] %v2726
      %2731 = vst [vmem:[#allocation3 + $0x178] sm:$0xf] %v2727
      %v2732 = vld [vmem:[%s1488] ss:$8 sm:$0xf]
      %v2734 = vperm.slane %v2732, 0
      %v2735 = vperm.slane %v2732, 1
      %v2736 = vperm.slane %v2732, 2
      %v2737 = vperm.slane %v2732, 3
      %v2742 = vmul.f32 %v2105, %v2734
      %v2743 = vmul.f32 %v2106, %v2735
      %v2744 = vmul.f32 %v2107, %v2736
      %v2745 = vmul.f32 %v2112, %v2737
      %v2750 = vrot.slane %v2742, 4
      %v2751 = vrot.slane %v2743, 4
      %v2752 = vrot.slane %v2744, 4
      %v2753 = vrot.slane %v2745, 4
      %2758 = vst [vmem:[#allocation3 + $0x160] sm:$0xf0] %v2750
      %2759 = vst [vmem:[#allocation3 + $0x168] sm:$0xf0] %v2751
      %2760 = vst [vmem:[#allocation3 + $0x170] sm:$0xf0] %v2752
      %2761 = vst [vmem:[#allocation3 + $0x178] sm:$0xf0] %v2753
      %v2762 = vld [vmem:[%s1547] ss:$8 sm:$0xf]
      %v2764 = vperm.slane %v2762, 0
      %v2765 = vperm.slane %v2762, 1
      %v2766 = vperm.slane %v2762, 2
      %v2767 = vperm.slane %v2762, 3
      %v2772 = vmul.f32 %v2152, %v2764
      %v2773 = vmul.f32 %v2153, %v2765
      %v2774 = vmul.f32 %v2154, %v2766
      %v2775 = vmul.f32 %v2159, %v2767
      %2776 = vst [vmem:[#allocation3 + $0x180] sm:$0xf] %v2772
      %2777 = vst [vmem:[#allocation3 + $0x188] sm:$0xf] %v2773
      %2778 = vst [vmem:[#allocation3 + $0x190] sm:$0xf] %v2774
      %2779 = vst [vmem:[#allocation3 + $0x198] sm:$0xf] %v2775
      %v2780 = vld [vmem:[%s1594] ss:$8 sm:$0xf]
      %v2782 = vperm.slane %v2780, 0
      %v2783 = vperm.slane %v2780, 1
      %v2784 = vperm.slane %v2780, 2
      %v2785 = vperm.slane %v2780, 3
      %v2790 = vmul.f32 %v2187, %v2782
      %v2791 = vmul.f32 %v2188, %v2783
      %v2792 = vmul.f32 %v2189, %v2784
      %v2793 = vmul.f32 %v2194, %v2785
      %v2798 = vrot.slane %v2790, 4
      %v2799 = vrot.slane %v2791, 4
      %v2800 = vrot.slane %v2792, 4
      %v2801 = vrot.slane %v2793, 4
      %2806 = vst [vmem:[#allocation3 + $0x180] sm:$0xf0] %v2798
      %2807 = vst [vmem:[#allocation3 + $0x188] sm:$0xf0] %v2799
      %2808 = vst [vmem:[#allocation3 + $0x190] sm:$0xf0] %v2800
      %2809 = vst [vmem:[#allocation3 + $0x198] sm:$0xf0] %v2801
      %v2810 = vld [vmem:[%s1653] ss:$8 sm:$0xf]
      %v2812 = vperm.slane %v2810, 0
      %v2813 = vperm.slane %v2810, 1
      %v2814 = vperm.slane %v2810, 2
      %v2815 = vperm.slane %v2810, 3
      %v2820 = vmul.f32 %v2234, %v2812
      %v2821 = vmul.f32 %v2235, %v2813
      %v2822 = vmul.f32 %v2236, %v2814
      %v2823 = vmul.f32 %v2241, %v2815
      %2824 = vst [vmem:[#allocation3 + $0x1a0] sm:$0xf] %v2820
      %2825 = vst [vmem:[#allocation3 + $0x1a8] sm:$0xf] %v2821
      %2826 = vst [vmem:[#allocation3 + $0x1b0] sm:$0xf] %v2822
      %2827 = vst [vmem:[#allocation3 + $0x1b8] sm:$0xf] %v2823
      %v2828 = vld [vmem:[%s3] sm:$0xf]
      %v2829 = vld [vmem:[#allocation3] sm:$0xff]
      %v2830 = vld [vmem:[#allocation3 + $0x8] sm:$0xff]
      %v2831 = vld [vmem:[#allocation3 + $0x10] sm:$0xff]
      %v2832 = vld [vmem:[#allocation3 + $0x18] sm:$0xff]
      %v2833 = vld [vmem:[#allocation3 + $0x20] sm:$0xff]
      %v2834 = vld [vmem:[#allocation3 + $0x28] sm:$0xff]
      %v2835 = vld [vmem:[#allocation3 + $0x30] sm:$0xff]
      %v2836 = vld [vmem:[#allocation3 + $0x38] sm:$0xff]
      %v2837 = vld [vmem:[#allocation3 + $0x40] sm:$0xff]
      %v2838 = vld [vmem:[#allocation3 + $0x48] sm:$0xff]
      %v2839 = vld [vmem:[#allocation3 + $0x50] sm:$0xff]
      %v2840 = vld [vmem:[#allocation3 + $0x58] sm:$0xff]
      %v2841 = vld [vmem:[#allocation3 + $0x60] sm:$0xff]
      %v2842 = vld [vmem:[#allocation3 + $0x68] sm:$0xff]
      %v2843 = vld [vmem:[#allocation3 + $0x70] sm:$0xff]
      %v2844 = vld [vmem:[#allocation3 + $0x78] sm:$0xff]
      %v2845 = vld [vmem:[#allocation3 + $0x80] sm:$0xff]
      %v2846 = vld [vmem:[#allocation3 + $0x88] sm:$0xff]
      %v2847 = vld [vmem:[#allocation3 + $0x90] sm:$0xff]
      %v2848 = vld [vmem:[#allocation3 + $0x98] sm:$0xff]
      %v2849 = vld [vmem:[#allocation3 + $0xa0] sm:$0xff]
      %v2850 = vld [vmem:[#allocation3 + $0xa8] sm:$0xff]
      %v2851 = vld [vmem:[#allocation3 + $0xb0] sm:$0xff]
      %v2852 = vld [vmem:[#allocation3 + $0xb8] sm:$0xff]
      %v2853 = vld [vmem:[#allocation3 + $0xc0] sm:$0xff]
      %v2854 = vld [vmem:[#allocation3 + $0xc8] sm:$0xff]
      %v2855 = vld [vmem:[#allocation3 + $0xd0] sm:$0xff]
      %v2856 = vld [vmem:[#allocation3 + $0xd8] sm:$0xff]
      %v2857 = vld [vmem:[#allocation3 + $0xe0] sm:$0xff]
      %v2858 = vld [vmem:[#allocation3 + $0xe8] sm:$0xff]
      %v2859 = vld [vmem:[#allocation3 + $0xf0] sm:$0xff]
      %v2860 = vld [vmem:[#allocation3 + $0xf8] sm:$0xff]
      %v2861 = vld [vmem:[#allocation3 + $0x100] sm:$0xff]
      %v2862 = vld [vmem:[#allocation3 + $0x108] sm:$0xff]
      %v2863 = vld [vmem:[#allocation3 + $0x110] sm:$0xff]
      %v2864 = vld [vmem:[#allocation3 + $0x118] sm:$0xff]
      %v2865 = vld [vmem:[#allocation3 + $0x120] sm:$0xff]
      %v2866 = vld [vmem:[#allocation3 + $0x128] sm:$0xff]
      %v2867 = vld [vmem:[#allocation3 + $0x130] sm:$0xff]
      %v2868 = vld [vmem:[#allocation3 + $0x138] sm:$0xff]
      %v2869 = vld [vmem:[#allocation3 + $0x140] sm:$0xff]
      %v2870 = vld [vmem:[#allocation3 + $0x148] sm:$0xff]
      %v2871 = vld [vmem:[#allocation3 + $0x150] sm:$0xff]
      %v2872 = vld [vmem:[#allocation3 + $0x158] sm:$0xff]
      %v2873 = vld [vmem:[#allocation3 + $0x160] sm:$0xff]
      %v2874 = vld [vmem:[#allocation3 + $0x168] sm:$0xff]
      %v2875 = vld [vmem:[#allocation3 + $0x170] sm:$0xff]
      %v2876 = vld [vmem:[#allocation3 + $0x178] sm:$0xff]
      %v2877 = vld [vmem:[#allocation3 + $0x180] sm:$0xff]
      %v2878 = vld [vmem:[#allocation3 + $0x188] sm:$0xff]
      %v2879 = vld [vmem:[#allocation3 + $0x190] sm:$0xff]
      %v2880 = vld [vmem:[#allocation3 + $0x198] sm:$0xff]
      %v2881 = vld [vmem:[#allocation3 + $0x1a0] sm:$0xf]
      %v2882 = vld [vmem:[#allocation3 + $0x1a8] sm:$0xf]
      %v2883 = vld [vmem:[#allocation3 + $0x1b0] sm:$0xf]
      %v2884 = vld [vmem:[#allocation3 + $0x1b8] sm:$0xf]
      %v2885 = vld [vmem:[%s4] sm:$0xf]
      %2887 = vset.pattern.permute.xlu0 0
      %2888 = vperm.xlu0 %2887, %v2885
      %v2889 = vpop.permute.xlu0 %2888
      %v2892 = vsel %vm1735, %v2828, 0
      %v2895 = vsel %vm960, %v2881, 0
      %v2898 = vsel %vm960, %v2882, 0
      %v2901 = vsel %vm960, %v2883, 0
      %v2904 = vsel %vm960, %v2884, 0
      %2906 = vmatpush.msra.mxu0 0.0
      %2907 = vmatpush.msra.mxu0 0.0
      %2908 = vmatpush.msra.mxu0 %v2895
      %2909 = vmatpush.msra.mxu0 %v2877
      %2910 = vmatpush.msra.mxu0 %v2873
      %2911 = vmatpush.msra.mxu0 %v2869
      %2912 = vmatpush.msra.mxu0 %v2865
      %2913 = vmatpush.msra.mxu0 %v2861
      %2914 = vmatpush.msra.mxu0 %v2857
      %2915 = vmatpush.msra.mxu0 %v2853
      %2916 = vmatpush.msra.mxu0 %v2849
      %2917 = vmatpush.msra.mxu0 %v2845
      %2918 = vmatpush.msra.mxu0 %v2841
      %2919 = vmatpush.msra.mxu0 %v2837
      %2920 = vmatpush.msra.mxu0 %v2833
      %2921 = vmatpush.msra.mxu0 %v2829
      %2922 = vmatmul.f32.gmra.mxu0 %v2892
      %v2923 = vpop.f32.mrf.mxu0
      %v2924 = vadd.f32 %v2889, %v2923
      %2925 = vdwg.mxu0
      %2926 = vmatpush.msra.mxu0 0.0
      %2927 = vmatpush.msra.mxu0 0.0
      %2928 = vmatpush.msra.mxu0 %v2898
      %2929 = vmatpush.msra.mxu0 %v2878
      %2930 = vmatpush.msra.mxu0 %v2874
      %2931 = vmatpush.msra.mxu0 %v2870
      %2932 = vmatpush.msra.mxu0 %v2866
      %2933 = vmatpush.msra.mxu0 %v2862
      %2934 = vmatpush.msra.mxu0 %v2858
      %2935 = vmatpush.msra.mxu0 %v2854
      %2936 = vmatpush.msra.mxu0 %v2850
      %2937 = vmatpush.msra.mxu0 %v2846
      %2938 = vmatpush.msra.mxu0 %v2842
      %2939 = vmatpush.msra.mxu0 %v2838
      %2940 = vmatpush.msra.mxu0 %v2834
      %2941 = vmatpush.msra.mxu0 %v2830
      %2942 = vmatmul.f32.gmra.mxu0 %v2892
      %v2943 = vpop.f32.mrf.mxu0
      %v2944 = vadd.f32 %v2889, %v2943
      %2945 = vdwg.mxu0
      %2946 = vmatpush.msra.mxu0 0.0
      %2947 = vmatpush.msra.mxu0 0.0
      %2948 = vmatpush.msra.mxu0 %v2901
      %2949 = vmatpush.msra.mxu0 %v2879
      %2950 = vmatpush.msra.mxu0 %v2875
      %2951 = vmatpush.msra.mxu0 %v2871
      %2952 = vmatpush.msra.mxu0 %v2867
      %2953 = vmatpush.msra.mxu0 %v2863
      %2954 = vmatpush.msra.mxu0 %v2859
      %2955 = vmatpush.msra.mxu0 %v2855
      %2956 = vmatpush.msra.mxu0 %v2851
      %2957 = vmatpush.msra.mxu0 %v2847
      %2958 = vmatpush.msra.mxu0 %v2843
      %2959 = vmatpush.msra.mxu0 %v2839
      %2960 = vmatpush.msra.mxu0 %v2835
      %2961 = vmatpush.msra.mxu0 %v2831
      %2962 = vmatmul.f32.gmra.mxu0 %v2892
      %v2963 = vpop.f32.mrf.mxu0
      %v2964 = vadd.f32 %v2889, %v2963
      %2965 = vdwg.mxu0
      %2966 = vmatpush.msra.mxu0 0.0
      %2967 = vmatpush.msra.mxu0 0.0
      %2968 = vmatpush.msra.mxu0 %v2904
      %2969 = vmatpush.msra.mxu0 %v2880
      %2970 = vmatpush.msra.mxu0 %v2876
      %2971 = vmatpush.msra.mxu0 %v2872
      %2972 = vmatpush.msra.mxu0 %v2868
      %2973 = vmatpush.msra.mxu0 %v2864
      %2974 = vmatpush.msra.mxu0 %v2860
      %2975 = vmatpush.msra.mxu0 %v2856
      %2976 = vmatpush.msra.mxu0 %v2852
      %2977 = vmatpush.msra.mxu0 %v2848
      %2978 = vmatpush.msra.mxu0 %v2844
      %2979 = vmatpush.msra.mxu0 %v2840
      %2980 = vmatpush.msra.mxu0 %v2836
      %2981 = vmatpush.msra.mxu0 %v2832
      %2982 = vmatmul.f32.gmra.mxu0 %v2892
      %v2983 = vpop.f32.mrf.mxu0
      %v2984 = vadd.f32 %v2889, %v2983
      %2985 = vdwg.mxu0
      %v2986 = vsel %vm960, %v2924, 0.0
      %v2987 = vsel %vm960, %v2944, 0.0
      %v2988 = vadd.f32 %v2986, %v2987
      %v2989 = vsel %vm960, %v2964, 0.0
      %v2990 = vadd.f32 %v2988, %v2989
      %v2991 = vsel %vm960, %v2984, 0.0
      %v2992 = vadd.f32 %v2990, %v2991
      %2993 = vadd.xlane.f32.xlu0 %v2992
      %v2994 = vpop.xlane.xlu0 %2993
      %v2995 = vmul.f32 %v2994, %v1846
      %v2996 = vsub.f32 %v2924, %v2995
      %v2997 = vsub.f32 %v2944, %v2995
      %v2998 = vsub.f32 %v2964, %v2995
      %v2999 = vsub.f32 %v2984, %v2995
      %v3000 = vmul.f32 %v2996, %v2996
      %v3001 = vmul.f32 %v2997, %v2997
      %v3002 = vmul.f32 %v2998, %v2998
      %v3003 = vmul.f32 %v2999, %v2999
      %v3004 = vsel %vm960, %v3000, 0.0
      %v3005 = vsel %vm960, %v3001, 0.0
      %v3006 = vadd.f32 %v3004, %v3005
      %v3007 = vsel %vm960, %v3002, 0.0
      %v3008 = vadd.f32 %v3006, %v3007
      %v3009 = vsel %vm960, %v3003, 0.0
      %v3010 = vadd.f32 %v3008, %v3009
      %3011 = vadd.xlane.f32.xlu0 %v3010
      %v3012 = vpop.xlane.xlu0 %3011
      %v3013 = vmul.f32 %v3012, %v1846
      %v3014 = vadd.f32 %v3013, 1e-05
      %v3015 = vrsqrt.pop %v3014
      %v3016 = vmul.f32 %v3015, %v3014
      %v3017 = vmul.f32 %v3016, %v3015
      %v3018 = vmul.f32 0.5, %v3017
      %v3019 = vsub.f32 1.5, %v3018
      %v3020 = vmul.f32 %v3015, %v3019
      %vm3021 = vweird.f32 %v3014
      %vm3022 = vweird.f32 %v3015
      %vm3023 = vmor %vm3021, %vm3022
      %v3024 = vsel %vm3023, %v3015, %v3020
      %v3025 = vmul.f32 %v2996, %v3024
      %v3026 = vmul.f32 %v2997, %v3024
      %v3027 = vmul.f32 %v2998, %v3024
      %v3028 = vmul.f32 %v2999, %v3024
      %vm3029 = vcmp.ge.f32.partialorder %v3025, 0.0
      %vm3030 = vcmp.ge.f32.partialorder %v3026, 0.0
      %vm3031 = vcmp.ge.f32.partialorder %v3027, 0.0
      %vm3032 = vcmp.ge.f32.partialorder %v3028, 0.0
      %v3033 = vmul.f32 %v3025, 0.2
      %v3034 = vmul.f32 %v3026, 0.2
      %v3035 = vmul.f32 %v3027, 0.2
      %v3036 = vmul.f32 %v3028, 0.2
      %v3037 = vsel %vm3029, %v3025, %v3033
      %v3038 = vsel %vm3030, %v3026, %v3034
      %v3039 = vsel %vm3031, %v3027, %v3035
      %v3040 = vsel %vm3032, %v3028, %v3036
      %v3045 = vrot.slane %v3038, 4
      %v3046 = vrot.slane %v3040, 4
      %v3047 = vsel %vm960, %v3037, %v3045
      %v3048 = vsel %vm960, %v3039, %v3046
      %3051 = vst [vmem:[%s251] sm:$0xff] %v3047
      %3052 = vst [vmem:[%s251 + $0x8] sm:$0xff] %v3048
      %p3053 = scmp.lt.s32.totalorder %s17, 1
      %s3054 = scalar_select %p3053, %s17, 1
      %s3055 = smul.addr %s3054, 4
      %s3056 = smul.addr %s3055, 4
      %s3057 = scalar_lea.vmem %s6, %s3056
      // Predicated region
      $region45: #{res_block_instance_forward.1} parent=43 // pred_check
        %p3058 = pneg %p166
      $region46: #{res_block_instance_forward.1} parent=43 // pred_check_branch
        %3060 = sbr.rel (%p3058) target = $region48
      $region47: #{res_block_instance_forward.1} parent=43 // pred_region
        _
      $region48: #{res_block_instance_forward.1} parent=43 // pred_fallthru
        _
    $region44: #{res_block_instance_forward.1} parent=5 // pred_fallthru
      _
    %p3061 = scmp.le.s32.totalorder 2, %s12
    // Predicated region
    $region49: #{res_block_instance_forward.1} parent=5 // pred_check
      %p3062 = pneg %p3061
    $region50: #{res_block_instance_forward.1} parent=5 // pred_check_branch
      %3064 = sbr.rel (%p3062) target = $region52
    $region51: #{res_block_instance_forward.1} parent=5 // pred_region
      %s3065 = ssub.s32 %s12, 2
      // Predicated region
      $region53: #{res_block_instance_forward.1} parent=51 // pred_check
        %p3066 = pneg %p172
      $region54: #{res_block_instance_forward.1} parent=51 // pred_check_branch
        %3068 = sbr.rel (%p3066) target = $region56
      $region55: #{res_block_instance_forward.1} parent=51 // pred_region
        %p3069 = scmp.lt.s32.totalorder %s18, 1
        %s3070 = scalar_select %p3069, %s18, 1
        %s3071 = smul.addr %s3070, 4
        %s3072 = smul.addr %s3071, 4
        %s3073 = scalar_lea.vmem %s6, %s3072
      $region56: #{res_block_instance_forward.1} parent=51 // pred_fallthru
        _
    $region52: #{res_block_instance_forward.1} parent=5 // pred_fallthru
      _
  $region6: #{res_block_instance_forward.1} parent=0 // loop_footer
    %s16 = sadd.s32 1, %s12
  $region7: #{res_block_instance_forward.1} parent=0 // loop_footer_branch
    %11 = sbr.rel target = $region3
  $region8: #{res_block_instance_forward.1} parent=0 // loop_exit
    _

</llo_original>
